<compile_context>
chip_gen: v5e
topology: v5e:2x2
jax: 0.10.0
libtpu: 0.0.40
codegen_flags: <defaults>
</compile_context>

<pallas_src>
import functools

import jax
import jax.numpy as jnp
from jax.experimental import pallas as pl
from jax.experimental.pallas import tpu as pltpu

WIDTH = 128      # RML2016.10a frame length (W)
N_LAYERS = 6     # 5 max-pool conv blocks + 1 avg-pool conv block


# ----------------------------------------------------------------------------
# Fused kernel: 6 conv blocks + flatten + MLP head
# ----------------------------------------------------------------------------
def rmlnet_kernel(x_ref, w0_ref, wr_ref, shift_ref, w1_ref, b1_ref, w2_ref, b2_ref,
                  o_ref, *, samples):
    f32 = jnp.float32
    bf16 = jnp.bfloat16
    R = samples * WIDTH

    # Per-sample position of every slab row (row = n*WIDTH + w); hoisted once.
    pos = jax.lax.broadcasted_iota(jnp.int32, (R, 64), 0) % WIDTH

    x = x_ref[...]                       # (R, 8) f32, IQ channels padded to 8 lanes
    stride = 1                           # valid rows are the multiples of `stride`
    for l in range(N_LAYERS):
        cin = x.shape[1]
        m = pos[:, :cin]
        zpad = jnp.zeros((stride, cin), f32)

        # Neighbours along W: x[w-1] / x[w+1] live `stride` slab rows away.
        x_left = jnp.concatenate([zpad, x[:-stride, :]], axis=0)     # row p <- x[p-stride]
        x_right = jnp.concatenate([x[stride:, :], zpad], axis=0)     # row p <- x[p+stride]
        x_left = jnp.where(m == 0, 0.0, x_left)                      # w == 0 (conv zero pad)
        x_right = jnp.where(m == WIDTH - stride, 0.0, x_right)       # w == W_l - 1

        # 1x3 conv (BN scale pre-folded into the taps): bf16 MXU matmuls, f32 accumulate.
        if l == 0:
            taps = (w0_ref[0], w0_ref[1], w0_ref[2])                 # (8, 64) bf16 each
        else:
            taps = (wr_ref[l - 1, 0], wr_ref[l - 1, 1], wr_ref[l - 1, 2])  # (64, 64) bf16
        y = (jnp.dot(x_left.astype(bf16), taps[0], preferred_element_type=f32)
             + jnp.dot(x.astype(bf16), taps[1], preferred_element_type=f32)
             + jnp.dot(x_right.astype(bf16), taps[2], preferred_element_type=f32))
        y = jnp.maximum(y + shift_ref[l], 0.0)       # folded BN shift + ReLU (f32)

        # Pool along W (window 2, stride 2): partner row sits `stride` rows away.
        y_pair = jnp.concatenate([y[stride:, :], jnp.zeros((stride, 64), f32)], axis=0)
        if l == N_LAYERS - 1:
            x = (y + y_pair) * 0.5                   # AvgPool2d((1, 2))
        else:
            x = jnp.maximum(y, y_pair)               # MaxPool2d((1, 2), stride (1, 2))
        stride *= 2

    # Flatten: sample n features = [x[n*W + 0, :], x[n*W + W/2, :]]  (w-major, c-minor).
    # Gather the two valid rows per sample with tiny 0/1 selection matmuls
    # (MXU row-gather; avoids strided sublane compaction / relayouts).
    a = x.astype(bf16)                                               # (R, 64)
    n_iota = jax.lax.broadcasted_iota(jnp.int32, (samples, R), 0)
    r_iota = jax.lax.broadcasted_iota(jnp.int32, (samples, R), 1)
    s0 = jnp.where(r_iota == n_iota * WIDTH, 1.0, 0.0).astype(bf16)
    s1 = jnp.where(r_iota == n_iota * WIDTH + WIDTH // 2, 1.0, 0.0).astype(bf16)
    h0 = jnp.dot(s0, a, preferred_element_type=f32).astype(bf16)     # (samples, 64)  w=0
    h1 = jnp.dot(s1, a, preferred_element_type=f32).astype(bf16)     # (samples, 64)  w=1

    # Linear(128, 128) + ReLU, done as two K=64 matmuls against the split weight.
    z = (jnp.dot(h0, w1_ref[0], preferred_element_type=f32)
         + jnp.dot(h1, w1_ref[1], preferred_element_type=f32)
         + b1_ref[...])
    z = jnp.maximum(z, 0.0)
    # TODO(synk): Dropout(p=0.5) is inference-mode identity (train-mode RNG not reproduced).

    # Linear(128, n_classes), classes padded to 128 lanes -> lane-dense store.
    o_ref[...] = (jnp.dot(z.astype(bf16), w2_ref[...], preferred_element_type=f32)
                  + b2_ref[...])


# ----------------------------------------------------------------------------
# pallas_call wrapper
# ----------------------------------------------------------------------------
def rmlnet_forward(x, params, *, samples_per_tile=None):
    n, c, hgt, w = x.shape
    assert c == 2 and hgt == 1 and w == WIDTH

    if samples_per_tile is None:
        samples_per_tile = next((t for t in (16, 8) if n % t == 0), n)
    spt = samples_per_tile
    assert n % spt == 0 and (spt % 8 == 0 or spt == n)

    # NCHW -> channels-last slab (N*W, 2), pad the 2 IQ channels to 8 lanes.
    slab = jnp.transpose(x[:, :, 0, :], (0, 2, 1)).reshape(n * w, c).astype(jnp.float32)
    slab = jnp.pad(slab, ((0, 0), (0, 8 - c)))

    kern = functools.partial(rmlnet_kernel, samples=spt)
    out = pl.pallas_call(
        kern,
        out_shape=jax.ShapeDtypeStruct((n, 128), jnp.float32),
        grid=(n // spt,),
        in_specs=[
            # Activation slab: tiled over the batch grid axis.
            pl.BlockSpec((spt * WIDTH, 8), lambda i: (i, 0)),
            # Weights: grid-invariant blocks -> DMA'd into VMEM once, stay resident.
            pl.BlockSpec((3, 8, 64), lambda i: (0, 0, 0)),        # block-0 conv taps (bf16)
            pl.BlockSpec((5, 3, 64, 64), lambda i: (0, 0, 0, 0)),  # blocks 1-5 conv taps (bf16)
            pl.BlockSpec((6, 1, 64), lambda i: (0, 0, 0)),        # folded BN shifts (f32)
            pl.BlockSpec((2, 64, 128), lambda i: (0, 0, 0)),      # Linear1 weight, split (bf16)
            pl.BlockSpec((1, 128), lambda i: (0, 0)),             # Linear1 bias (f32)
            pl.BlockSpec((128, 128), lambda i: (0, 0)),           # Linear2 weight, padded (bf16)
            pl.BlockSpec((1, 128), lambda i: (0, 0)),             # Linear2 bias, padded (f32)
        ],
        out_specs=pl.BlockSpec((spt, 128), lambda i: (i, 0)),     # lane-dense padded logits
        compiler_params=pltpu.CompilerParams(
            dimension_semantics=("parallel",),       # batch split across v7x's 2 TensorCores
            vmem_limit_bytes=32 * 1024 * 1024,       # explicit; safe on v5e/v6e/v7x
        ),
    )(slab, params["w0"], params["w_rest"], params["shifts"],
      params["w1"], params["b1"], params["w2"], params["b2"])
    return out[:, :params["n_classes"]]


# ----------------------------------------------------------------------------
# Deterministic parameter construction (PyTorch shapes, converted to kernel layout)
# ----------------------------------------------------------------------------
def init_params(key, n_classes=11):
    eps = 1e-5
    in_channels = [2, 64, 64, 64, 64, 64]
    blk_key, head_key = jax.random.split(key)

    w0 = None
    w_rest = []
    shifts = []
    for i, cin in enumerate(in_channels):
        k = jax.random.fold_in(blk_key, i)
        kw, kb, kg, kbe, km, kv = jax.random.split(k, 6)
        # PyTorch Conv2d weight (64, cin, 1, 3) + bias (64,).
        w_pt = 0.05 * jax.random.normal(kw, (64, cin, 1, 3), jnp.float32)
        b_pt = 0.05 * jax.random.normal(kb, (64,), jnp.float32)
        # BatchNorm2d(64) parameters + running stats (inference mode).
        gamma = jax.random.uniform(kg, (64,), jnp.float32, 0.5, 1.5)
        beta = 0.05 * jax.random.normal(kbe, (64,), jnp.float32)
        rmean = 0.05 * jax.random.normal(km, (64,), jnp.float32)
        rvar = jax.random.uniform(kv, (64,), jnp.float32, 0.5, 1.5)

        scale = gamma / jnp.sqrt(rvar + eps)                  # BN scale (per out channel)
        shift = beta + (b_pt - rmean) * scale                 # conv bias folded in

        # Tap t multiplies x[w + t - 1]; fold the BN scale into the taps, store bf16.
        cpad = 8 if i == 0 else cin                           # pad IQ channels to 8 lanes
        taps = jnp.stack(
            [jnp.pad(w_pt[:, :, 0, t].T * scale[None, :], ((0, cpad - cin), (0, 0)))
             for t in range(3)], axis=0).astype(jnp.bfloat16)  # (3, cpad, 64)
        if i == 0:
            w0 = taps
        else:
            w_rest.append(taps)
        shifts.append(shift.reshape(1, 64))

    w_rest = jnp.stack(w_rest, axis=0)                        # (5, 3, 64, 64) bf16
    shifts = jnp.stack(shifts, axis=0)                        # (6, 1, 64)     f32

    k1, k2, k3, k4 = jax.random.split(head_key, 4)
    # PyTorch Linear weights are (out, in); flatten order there is (c, w): in = c*2 + w.
    lin1_w_pt = 0.05 * jax.random.normal(k1, (128, 128), jnp.float32)
    lin1_b = 0.05 * jax.random.normal(k2, (128,), jnp.float32)
    lin2_w_pt = 0.05 * jax.random.normal(k3, (n_classes, 128), jnp.float32)
    lin2_b = 0.05 * jax.random.normal(k4, (n_classes,), jnp.float32)

    # Kernel flatten order is j = w*64 + c -> permute Linear1's input dim, then
    # split it into the w=0 / w=1 halves used by the two K=64 head matmuls.
    j = jnp.arange(128)
    perm = (j % 64) * 2 + (j // 64)
    w1 = lin1_w_pt.T[perm, :].reshape(2, 64, 128).astype(jnp.bfloat16)
    b1 = lin1_b.reshape(1, 128)
    # Pad classes n_classes -> 128 so the logits store is lane-dense (sliced outside).
    w2 = jnp.pad(lin2_w_pt.T, ((0, 0), (0, 128 - n_classes))).astype(jnp.bfloat16)
    b2 = jnp.pad(lin2_b, (0, 128 - n_classes)).reshape(1, 128)

    return dict(w0=w0, w_rest=w_rest, shifts=shifts,
                w1=w1, b1=b1, w2=w2, b2=b2, n_classes=n_classes)


if __name__ == "__main__":
    key = jax.random.PRNGKey(0)
    kx, kp = jax.random.split(key)
    x = jax.random.normal(kx, (2, 2, 1, 128), jnp.float32)    # batch=2, IQ=2, H=1, W=128
    params = init_params(kp, n_classes=11)

    fwd = jax.jit(lambda inp: rmlnet_forward(inp, params))
    logits = fwd(x)
    jax.block_until_ready(logits)
    assert logits.shape == (2, 11) and logits.dtype == jnp.float32
    print("KERNEL_OK")
</pallas_src>

<mosaic_0001>
module attributes {stable_mosaic.version = 11 : i64} {
  func.func @rmlnet_kernel(%arg0: i32, %arg1: memref<256x8xf32, #tpu.memory_space<vmem>>, %arg2: memref<3x8x64xbf16, #tpu.memory_space<vmem>>, %arg3: memref<5x3x64x64xbf16, #tpu.memory_space<vmem>>, %arg4: memref<6x1x64xf32, #tpu.memory_space<vmem>>, %arg5: memref<2x64x128xbf16, #tpu.memory_space<vmem>>, %arg6: memref<1x128xf32, #tpu.memory_space<vmem>>, %arg7: memref<128x128xbf16, #tpu.memory_space<vmem>>, %arg8: memref<1x128xf32, #tpu.memory_space<vmem>>, %arg9: memref<2x128xf32, #tpu.memory_space<vmem>>) attributes {dimension_semantics = [#tpu.dimension_semantics<parallel>], iteration_bounds = array<i64: 1>, scalar_prefetch = 0 : i64, scratch_operands = 0 : i64, tpu.core_type = #tpu.core_type<tc>, window_params = [{transform_indices = @transform_0, window_bounds = array<i64: 256, 8>}, {pipeline_mode = #tpu.pipeline_mode<synchronous>, transform_indices = @transform_1, window_bounds = array<i64: 3, 8, 64>}, {pipeline_mode = #tpu.pipeline_mode<synchronous>, transform_indices = @transform_2, window_bounds = array<i64: 5, 3, 64, 64>}, {pipeline_mode = #tpu.pipeline_mode<synchronous>, transform_indices = @transform_3, window_bounds = array<i64: 6, 1, 64>}, {pipeline_mode = #tpu.pipeline_mode<synchronous>, transform_indices = @transform_4, window_bounds = array<i64: 2, 64, 128>}, {pipeline_mode = #tpu.pipeline_mode<synchronous>, transform_indices = @transform_5, window_bounds = array<i64: 1, 128>}, {pipeline_mode = #tpu.pipeline_mode<synchronous>, transform_indices = @transform_6, window_bounds = array<i64: 128, 128>}, {pipeline_mode = #tpu.pipeline_mode<synchronous>, transform_indices = @transform_7, window_bounds = array<i64: 1, 128>}, {transform_indices = @transform_8, window_bounds = array<i64: 2, 128>}]} {
    %0 = tpu.iota {dimensions = array<i32: 0>} : vector<256x64xi32>
    %c128_i32 = arith.constant 128 : i32
    %c0_i32 = arith.constant 0 : i32
    %1 = arith.cmpi eq, %c128_i32, %c0_i32 : i32
    %c1_i32 = arith.constant 1 : i32
    %2 = arith.select %1, %c1_i32, %c128_i32 : i32
    %3 = vector.broadcast %2 : i32 to vector<256x64xi32>
    %4 = arith.remsi %0, %3 : vector<256x64xi32>
    %c0_i32_0 = arith.constant 0 : i32
    %5 = vector.broadcast %c0_i32_0 : i32 to vector<256x64xi32>
    %6 = arith.cmpi ne, %4, %5 : vector<256x64xi32>
    %c0_i32_1 = arith.constant 0 : i32
    %7 = vector.broadcast %c0_i32_1 : i32 to vector<256x64xi32>
    %8 = arith.cmpi slt, %4, %7 : vector<256x64xi32>
    %c0_i32_2 = arith.constant 0 : i32
    %9 = arith.cmpi slt, %2, %c0_i32_2 : i32
    %10 = vector.broadcast %9 : i1 to vector<256x64xi1>
    %11 = vector.broadcast %10 : vector<256x64xi1> to vector<256x64xi1>
    %12 = arith.xori %8, %11 : vector<256x64xi1>
    %13 = arith.andi %12, %6 : vector<256x64xi1>
    %14 = vector.broadcast %2 : i32 to vector<256x64xi32>
    %15 = arith.addi %4, %14 : vector<256x64xi32>
    %16 = arith.select %13, %15, %4 : vector<256x64xi1>, vector<256x64xi32>
    %c0 = arith.constant 0 : index
    %c0_3 = arith.constant 0 : index
    %17 = vector.load %arg1[%c0, %c0_3] : memref<256x8xf32, #tpu.memory_space<vmem>>, vector<256x8xf32>
    %18 = vector.extract_strided_slice %16 {offsets = [0, 0], sizes = [256, 8], strides = [1, 1]} : vector<256x64xi32> to vector<256x8xi32>
    %cst = arith.constant 0.000000e+00 : f32
    %19 = vector.broadcast %cst : f32 to vector<1x8xf32>
    %20 = vector.extract_strided_slice %17 {offsets = [0, 0], sizes = [255, 8], strides = [1, 1]} : vector<256x8xf32> to vector<255x8xf32>
    %21 = tpu.concatenate %19, %20 in 0 : vector<1x8xf32>, vector<255x8xf32> -> vector<256x8xf32>
    %22 = vector.extract_strided_slice %17 {offsets = [1, 0], sizes = [255, 8], strides = [1, 1]} : vector<256x8xf32> to vector<255x8xf32>
    %23 = tpu.concatenate %22, %19 in 0 : vector<255x8xf32>, vector<1x8xf32> -> vector<256x8xf32>
    %c0_i32_4 = arith.constant 0 : i32
    %24 = vector.broadcast %c0_i32_4 : i32 to vector<256x8xi32>
    %25 = arith.cmpi eq, %18, %24 : vector<256x8xi32>
    %cst_5 = arith.constant 0.000000e+00 : f32
    %26 = vector.broadcast %cst_5 : f32 to vector<256x8xf32>
    %27 = arith.select %25, %26, %21 : vector<256x8xi1>, vector<256x8xf32>
    %c127_i32 = arith.constant 127 : i32
    %28 = vector.broadcast %c127_i32 : i32 to vector<256x8xi32>
    %29 = arith.cmpi eq, %18, %28 : vector<256x8xi32>
    %cst_6 = arith.constant 0.000000e+00 : f32
    %30 = vector.broadcast %cst_6 : f32 to vector<256x8xf32>
    %31 = arith.select %29, %30, %23 : vector<256x8xi1>, vector<256x8xf32>
    %c0_7 = arith.constant 0 : index
    %c0_8 = arith.constant 0 : index
    %c0_9 = arith.constant 0 : index
    %32 = vector.load %arg2[%c0_7, %c0_8, %c0_9] : memref<3x8x64xbf16, #tpu.memory_space<vmem>>, vector<1x8x64xbf16>
    %33 = vector.shape_cast %32 : vector<1x8x64xbf16> to vector<8x64xbf16>
    %c1 = arith.constant 1 : index
    %c0_10 = arith.constant 0 : index
    %c0_11 = arith.constant 0 : index
    %34 = vector.load %arg2[%c1, %c0_10, %c0_11] : memref<3x8x64xbf16, #tpu.memory_space<vmem>>, vector<1x8x64xbf16>
    %35 = vector.shape_cast %34 : vector<1x8x64xbf16> to vector<8x64xbf16>
    %c2 = arith.constant 2 : index
    %c0_12 = arith.constant 0 : index
    %c0_13 = arith.constant 0 : index
    %36 = vector.load %arg2[%c2, %c0_12, %c0_13] : memref<3x8x64xbf16, #tpu.memory_space<vmem>>, vector<1x8x64xbf16>
    %37 = vector.shape_cast %36 : vector<1x8x64xbf16> to vector<8x64xbf16>
    %38 = arith.truncf %27 : vector<256x8xf32> to vector<256x8xbf16>
    %cst_14 = arith.constant dense<0.000000e+00> : vector<256x64xf32>
    %39 = tpu.matmul %38, %33, %cst_14 {dimension_numbers = #tpu.dot_dimension_numbers<[1], [0], [0], [1], [0, 0, 1, 1], [], []>} : vector<256x8xbf16>, vector<8x64xbf16>, vector<256x64xf32> -> vector<256x64xf32>
    %40 = arith.truncf %17 : vector<256x8xf32> to vector<256x8xbf16>
    %cst_15 = arith.constant dense<0.000000e+00> : vector<256x64xf32>
    %41 = tpu.matmul %40, %35, %cst_15 {dimension_numbers = #tpu.dot_dimension_numbers<[1], [0], [0], [1], [0, 0, 1, 1], [], []>} : vector<256x8xbf16>, vector<8x64xbf16>, vector<256x64xf32> -> vector<256x64xf32>
    %42 = arith.addf %39, %41 : vector<256x64xf32>
    %43 = arith.truncf %31 : vector<256x8xf32> to vector<256x8xbf16>
    %cst_16 = arith.constant dense<0.000000e+00> : vector<256x64xf32>
    %44 = tpu.matmul %43, %37, %cst_16 {dimension_numbers = #tpu.dot_dimension_numbers<[1], [0], [0], [1], [0, 0, 1, 1], [], []>} : vector<256x8xbf16>, vector<8x64xbf16>, vector<256x64xf32> -> vector<256x64xf32>
    %45 = arith.addf %42, %44 : vector<256x64xf32>
    %c0_17 = arith.constant 0 : index
    %c0_18 = arith.constant 0 : index
    %c0_19 = arith.constant 0 : index
    %46 = vector.load %arg4[%c0_17, %c0_18, %c0_19] : memref<6x1x64xf32, #tpu.memory_space<vmem>>, vector<1x1x64xf32>
    %47 = vector.shape_cast %46 : vector<1x1x64xf32> to vector<1x64xf32>
    %48 = vector.broadcast %47 : vector<1x64xf32> to vector<256x64xf32>
    %49 = arith.addf %45, %48 : vector<256x64xf32>
    %cst_20 = arith.constant 0.000000e+00 : f32
    %50 = vector.broadcast %cst_20 : f32 to vector<256x64xf32>
    %51 = arith.maximumf %49, %50 : vector<256x64xf32>
    %52 = vector.extract_strided_slice %51 {offsets = [1, 0], sizes = [255, 64], strides = [1, 1]} : vector<256x64xf32> to vector<255x64xf32>
    %cst_21 = arith.constant 0.000000e+00 : f32
    %53 = vector.broadcast %cst_21 : f32 to vector<1x64xf32>
    %54 = tpu.concatenate %52, %53 in 0 : vector<255x64xf32>, vector<1x64xf32> -> vector<256x64xf32>
    %55 = arith.maximumf %51, %54 : vector<256x64xf32>
    %cst_22 = arith.constant 0.000000e+00 : f32
    %56 = vector.broadcast %cst_22 : f32 to vector<2x64xf32>
    %57 = vector.extract_strided_slice %55 {offsets = [0, 0], sizes = [254, 64], strides = [1, 1]} : vector<256x64xf32> to vector<254x64xf32>
    %58 = tpu.concatenate %56, %57 in 0 : vector<2x64xf32>, vector<254x64xf32> -> vector<256x64xf32>
    %59 = vector.extract_strided_slice %55 {offsets = [2, 0], sizes = [254, 64], strides = [1, 1]} : vector<256x64xf32> to vector<254x64xf32>
    %60 = tpu.concatenate %59, %56 in 0 : vector<254x64xf32>, vector<2x64xf32> -> vector<256x64xf32>
    %c0_i32_23 = arith.constant 0 : i32
    %61 = vector.broadcast %c0_i32_23 : i32 to vector<256x64xi32>
    %62 = arith.cmpi eq, %16, %61 : vector<256x64xi32>
    %cst_24 = arith.constant 0.000000e+00 : f32
    %63 = vector.broadcast %cst_24 : f32 to vector<256x64xf32>
    %64 = arith.select %62, %63, %58 : vector<256x64xi1>, vector<256x64xf32>
    %c126_i32 = arith.constant 126 : i32
    %65 = vector.broadcast %c126_i32 : i32 to vector<256x64xi32>
    %66 = arith.cmpi eq, %16, %65 : vector<256x64xi32>
    %cst_25 = arith.constant 0.000000e+00 : f32
    %67 = vector.broadcast %cst_25 : f32 to vector<256x64xf32>
    %68 = arith.select %66, %67, %60 : vector<256x64xi1>, vector<256x64xf32>
    %c0_26 = arith.constant 0 : index
    %c0_27 = arith.constant 0 : index
    %c0_28 = arith.constant 0 : index
    %c0_29 = arith.constant 0 : index
    %69 = vector.load %arg3[%c0_26, %c0_27, %c0_28, %c0_29] : memref<5x3x64x64xbf16, #tpu.memory_space<vmem>>, vector<1x1x64x64xbf16>
    %70 = vector.shape_cast %69 : vector<1x1x64x64xbf16> to vector<64x64xbf16>
    %c0_30 = arith.constant 0 : index
    %c1_31 = arith.constant 1 : index
    %c0_32 = arith.constant 0 : index
    %c0_33 = arith.constant 0 : index
    %71 = vector.load %arg3[%c0_30, %c1_31, %c0_32, %c0_33] : memref<5x3x64x64xbf16, #tpu.memory_space<vmem>>, vector<1x1x64x64xbf16>
    %72 = vector.shape_cast %71 : vector<1x1x64x64xbf16> to vector<64x64xbf16>
    %c0_34 = arith.constant 0 : index
    %c2_35 = arith.constant 2 : index
    %c0_36 = arith.constant 0 : index
    %c0_37 = arith.constant 0 : index
    %73 = vector.load %arg3[%c0_34, %c2_35, %c0_36, %c0_37] : memref<5x3x64x64xbf16, #tpu.memory_space<vmem>>, vector<1x1x64x64xbf16>
    %74 = vector.shape_cast %73 : vector<1x1x64x64xbf16> to vector<64x64xbf16>
    %75 = arith.truncf %64 : vector<256x64xf32> to vector<256x64xbf16>
    %cst_38 = arith.constant dense<0.000000e+00> : vector<256x64xf32>
    %76 = tpu.matmul %75, %70, %cst_38 {dimension_numbers = #tpu.dot_dimension_numbers<[1], [0], [0], [1], [0, 0, 1, 1], [], []>} : vector<256x64xbf16>, vector<64x64xbf16>, vector<256x64xf32> -> vector<256x64xf32>
    %77 = arith.truncf %55 : vector<256x64xf32> to vector<256x64xbf16>
    %cst_39 = arith.constant dense<0.000000e+00> : vector<256x64xf32>
    %78 = tpu.matmul %77, %72, %cst_39 {dimension_numbers = #tpu.dot_dimension_numbers<[1], [0], [0], [1], [0, 0, 1, 1], [], []>} : vector<256x64xbf16>, vector<64x64xbf16>, vector<256x64xf32> -> vector<256x64xf32>
    %79 = arith.addf %76, %78 : vector<256x64xf32>
    %80 = arith.truncf %68 : vector<256x64xf32> to vector<256x64xbf16>
    %cst_40 = arith.constant dense<0.000000e+00> : vector<256x64xf32>
    %81 = tpu.matmul %80, %74, %cst_40 {dimension_numbers = #tpu.dot_dimension_numbers<[1], [0], [0], [1], [0, 0, 1, 1], [], []>} : vector<256x64xbf16>, vector<64x64xbf16>, vector<256x64xf32> -> vector<256x64xf32>
    %82 = arith.addf %79, %81 : vector<256x64xf32>
    %c1_41 = arith.constant 1 : index
    %c0_42 = arith.constant 0 : index
    %c0_43 = arith.constant 0 : index
    %83 = vector.load %arg4[%c1_41, %c0_42, %c0_43] : memref<6x1x64xf32, #tpu.memory_space<vmem>>, vector<1x1x64xf32>
    %84 = vector.shape_cast %83 : vector<1x1x64xf32> to vector<1x64xf32>
    %85 = vector.broadcast %84 : vector<1x64xf32> to vector<256x64xf32>
    %86 = arith.addf %82, %85 : vector<256x64xf32>
    %cst_44 = arith.constant 0.000000e+00 : f32
    %87 = vector.broadcast %cst_44 : f32 to vector<256x64xf32>
    %88 = arith.maximumf %86, %87 : vector<256x64xf32>
    %89 = vector.extract_strided_slice %88 {offsets = [2, 0], sizes = [254, 64], strides = [1, 1]} : vector<256x64xf32> to vector<254x64xf32>
    %cst_45 = arith.constant 0.000000e+00 : f32
    %90 = vector.broadcast %cst_45 : f32 to vector<2x64xf32>
    %91 = tpu.concatenate %89, %90 in 0 : vector<254x64xf32>, vector<2x64xf32> -> vector<256x64xf32>
    %92 = arith.maximumf %88, %91 : vector<256x64xf32>
    %cst_46 = arith.constant 0.000000e+00 : f32
    %93 = vector.broadcast %cst_46 : f32 to vector<4x64xf32>
    %94 = vector.extract_strided_slice %92 {offsets = [0, 0], sizes = [252, 64], strides = [1, 1]} : vector<256x64xf32> to vector<252x64xf32>
    %95 = tpu.concatenate %93, %94 in 0 : vector<4x64xf32>, vector<252x64xf32> -> vector<256x64xf32>
    %96 = vector.extract_strided_slice %92 {offsets = [4, 0], sizes = [252, 64], strides = [1, 1]} : vector<256x64xf32> to vector<252x64xf32>
    %97 = tpu.concatenate %96, %93 in 0 : vector<252x64xf32>, vector<4x64xf32> -> vector<256x64xf32>
    %c0_i32_47 = arith.constant 0 : i32
    %98 = vector.broadcast %c0_i32_47 : i32 to vector<256x64xi32>
    %99 = arith.cmpi eq, %16, %98 : vector<256x64xi32>
    %cst_48 = arith.constant 0.000000e+00 : f32
    %100 = vector.broadcast %cst_48 : f32 to vector<256x64xf32>
    %101 = arith.select %99, %100, %95 : vector<256x64xi1>, vector<256x64xf32>
    %c124_i32 = arith.constant 124 : i32
    %102 = vector.broadcast %c124_i32 : i32 to vector<256x64xi32>
    %103 = arith.cmpi eq, %16, %102 : vector<256x64xi32>
    %cst_49 = arith.constant 0.000000e+00 : f32
    %104 = vector.broadcast %cst_49 : f32 to vector<256x64xf32>
    %105 = arith.select %103, %104, %97 : vector<256x64xi1>, vector<256x64xf32>
    %c1_50 = arith.constant 1 : index
    %c0_51 = arith.constant 0 : index
    %c0_52 = arith.constant 0 : index
    %c0_53 = arith.constant 0 : index
    %106 = vector.load %arg3[%c1_50, %c0_51, %c0_52, %c0_53] : memref<5x3x64x64xbf16, #tpu.memory_space<vmem>>, vector<1x1x64x64xbf16>
    %107 = vector.shape_cast %106 : vector<1x1x64x64xbf16> to vector<64x64xbf16>
    %c1_54 = arith.constant 1 : index
    %c1_55 = arith.constant 1 : index
    %c0_56 = arith.constant 0 : index
    %c0_57 = arith.constant 0 : index
    %108 = vector.load %arg3[%c1_54, %c1_55, %c0_56, %c0_57] : memref<5x3x64x64xbf16, #tpu.memory_space<vmem>>, vector<1x1x64x64xbf16>
    %109 = vector.shape_cast %108 : vector<1x1x64x64xbf16> to vector<64x64xbf16>
    %c1_58 = arith.constant 1 : index
    %c2_59 = arith.constant 2 : index
    %c0_60 = arith.constant 0 : index
    %c0_61 = arith.constant 0 : index
    %110 = vector.load %arg3[%c1_58, %c2_59, %c0_60, %c0_61] : memref<5x3x64x64xbf16, #tpu.memory_space<vmem>>, vector<1x1x64x64xbf16>
    %111 = vector.shape_cast %110 : vector<1x1x64x64xbf16> to vector<64x64xbf16>
    %112 = arith.truncf %101 : vector<256x64xf32> to vector<256x64xbf16>
    %cst_62 = arith.constant dense<0.000000e+00> : vector<256x64xf32>
    %113 = tpu.matmul %112, %107, %cst_62 {dimension_numbers = #tpu.dot_dimension_numbers<[1], [0], [0], [1], [0, 0, 1, 1], [], []>} : vector<256x64xbf16>, vector<64x64xbf16>, vector<256x64xf32> -> vector<256x64xf32>
    %114 = arith.truncf %92 : vector<256x64xf32> to vector<256x64xbf16>
    %cst_63 = arith.constant dense<0.000000e+00> : vector<256x64xf32>
    %115 = tpu.matmul %114, %109, %cst_63 {dimension_numbers = #tpu.dot_dimension_numbers<[1], [0], [0], [1], [0, 0, 1, 1], [], []>} : vector<256x64xbf16>, vector<64x64xbf16>, vector<256x64xf32> -> vector<256x64xf32>
    %116 = arith.addf %113, %115 : vector<256x64xf32>
    %117 = arith.truncf %105 : vector<256x64xf32> to vector<256x64xbf16>
    %cst_64 = arith.constant dense<0.000000e+00> : vector<256x64xf32>
    %118 = tpu.matmul %117, %111, %cst_64 {dimension_numbers = #tpu.dot_dimension_numbers<[1], [0], [0], [1], [0, 0, 1, 1], [], []>} : vector<256x64xbf16>, vector<64x64xbf16>, vector<256x64xf32> -> vector<256x64xf32>
    %119 = arith.addf %116, %118 : vector<256x64xf32>
    %c2_65 = arith.constant 2 : index
    %c0_66 = arith.constant 0 : index
    %c0_67 = arith.constant 0 : index
    %120 = vector.load %arg4[%c2_65, %c0_66, %c0_67] : memref<6x1x64xf32, #tpu.memory_space<vmem>>, vector<1x1x64xf32>
    %121 = vector.shape_cast %120 : vector<1x1x64xf32> to vector<1x64xf32>
    %122 = vector.broadcast %121 : vector<1x64xf32> to vector<256x64xf32>
    %123 = arith.addf %119, %122 : vector<256x64xf32>
    %cst_68 = arith.constant 0.000000e+00 : f32
    %124 = vector.broadcast %cst_68 : f32 to vector<256x64xf32>
    %125 = arith.maximumf %123, %124 : vector<256x64xf32>
    %126 = vector.extract_strided_slice %125 {offsets = [4, 0], sizes = [252, 64], strides = [1, 1]} : vector<256x64xf32> to vector<252x64xf32>
    %cst_69 = arith.constant 0.000000e+00 : f32
    %127 = vector.broadcast %cst_69 : f32 to vector<4x64xf32>
    %128 = tpu.concatenate %126, %127 in 0 : vector<252x64xf32>, vector<4x64xf32> -> vector<256x64xf32>
    %129 = arith.maximumf %125, %128 : vector<256x64xf32>
    %cst_70 = arith.constant 0.000000e+00 : f32
    %130 = vector.broadcast %cst_70 : f32 to vector<8x64xf32>
    %131 = vector.extract_strided_slice %129 {offsets = [0, 0], sizes = [248, 64], strides = [1, 1]} : vector<256x64xf32> to vector<248x64xf32>
    %132 = tpu.concatenate %130, %131 in 0 : vector<8x64xf32>, vector<248x64xf32> -> vector<256x64xf32>
    %133 = vector.extract_strided_slice %129 {offsets = [8, 0], sizes = [248, 64], strides = [1, 1]} : vector<256x64xf32> to vector<248x64xf32>
    %134 = tpu.concatenate %133, %130 in 0 : vector<248x64xf32>, vector<8x64xf32> -> vector<256x64xf32>
    %c0_i32_71 = arith.constant 0 : i32
    %135 = vector.broadcast %c0_i32_71 : i32 to vector<256x64xi32>
    %136 = arith.cmpi eq, %16, %135 : vector<256x64xi32>
    %cst_72 = arith.constant 0.000000e+00 : f32
    %137 = vector.broadcast %cst_72 : f32 to vector<256x64xf32>
    %138 = arith.select %136, %137, %132 : vector<256x64xi1>, vector<256x64xf32>
    %c120_i32 = arith.constant 120 : i32
    %139 = vector.broadcast %c120_i32 : i32 to vector<256x64xi32>
    %140 = arith.cmpi eq, %16, %139 : vector<256x64xi32>
    %cst_73 = arith.constant 0.000000e+00 : f32
    %141 = vector.broadcast %cst_73 : f32 to vector<256x64xf32>
    %142 = arith.select %140, %141, %134 : vector<256x64xi1>, vector<256x64xf32>
    %c2_74 = arith.constant 2 : index
    %c0_75 = arith.constant 0 : index
    %c0_76 = arith.constant 0 : index
    %c0_77 = arith.constant 0 : index
    %143 = vector.load %arg3[%c2_74, %c0_75, %c0_76, %c0_77] : memref<5x3x64x64xbf16, #tpu.memory_space<vmem>>, vector<1x1x64x64xbf16>
    %144 = vector.shape_cast %143 : vector<1x1x64x64xbf16> to vector<64x64xbf16>
    %c2_78 = arith.constant 2 : index
    %c1_79 = arith.constant 1 : index
    %c0_80 = arith.constant 0 : index
    %c0_81 = arith.constant 0 : index
    %145 = vector.load %arg3[%c2_78, %c1_79, %c0_80, %c0_81] : memref<5x3x64x64xbf16, #tpu.memory_space<vmem>>, vector<1x1x64x64xbf16>
    %146 = vector.shape_cast %145 : vector<1x1x64x64xbf16> to vector<64x64xbf16>
    %c2_82 = arith.constant 2 : index
    %c2_83 = arith.constant 2 : index
    %c0_84 = arith.constant 0 : index
    %c0_85 = arith.constant 0 : index
    %147 = vector.load %arg3[%c2_82, %c2_83, %c0_84, %c0_85] : memref<5x3x64x64xbf16, #tpu.memory_space<vmem>>, vector<1x1x64x64xbf16>
    %148 = vector.shape_cast %147 : vector<1x1x64x64xbf16> to vector<64x64xbf16>
    %149 = arith.truncf %138 : vector<256x64xf32> to vector<256x64xbf16>
    %cst_86 = arith.constant dense<0.000000e+00> : vector<256x64xf32>
    %150 = tpu.matmul %149, %144, %cst_86 {dimension_numbers = #tpu.dot_dimension_numbers<[1], [0], [0], [1], [0, 0, 1, 1], [], []>} : vector<256x64xbf16>, vector<64x64xbf16>, vector<256x64xf32> -> vector<256x64xf32>
    %151 = arith.truncf %129 : vector<256x64xf32> to vector<256x64xbf16>
    %cst_87 = arith.constant dense<0.000000e+00> : vector<256x64xf32>
    %152 = tpu.matmul %151, %146, %cst_87 {dimension_numbers = #tpu.dot_dimension_numbers<[1], [0], [0], [1], [0, 0, 1, 1], [], []>} : vector<256x64xbf16>, vector<64x64xbf16>, vector<256x64xf32> -> vector<256x64xf32>
    %153 = arith.addf %150, %152 : vector<256x64xf32>
    %154 = arith.truncf %142 : vector<256x64xf32> to vector<256x64xbf16>
    %cst_88 = arith.constant dense<0.000000e+00> : vector<256x64xf32>
    %155 = tpu.matmul %154, %148, %cst_88 {dimension_numbers = #tpu.dot_dimension_numbers<[1], [0], [0], [1], [0, 0, 1, 1], [], []>} : vector<256x64xbf16>, vector<64x64xbf16>, vector<256x64xf32> -> vector<256x64xf32>
    %156 = arith.addf %153, %155 : vector<256x64xf32>
    %c3 = arith.constant 3 : index
    %c0_89 = arith.constant 0 : index
    %c0_90 = arith.constant 0 : index
    %157 = vector.load %arg4[%c3, %c0_89, %c0_90] : memref<6x1x64xf32, #tpu.memory_space<vmem>>, vector<1x1x64xf32>
    %158 = vector.shape_cast %157 : vector<1x1x64xf32> to vector<1x64xf32>
    %159 = vector.broadcast %158 : vector<1x64xf32> to vector<256x64xf32>
    %160 = arith.addf %156, %159 : vector<256x64xf32>
    %cst_91 = arith.constant 0.000000e+00 : f32
    %161 = vector.broadcast %cst_91 : f32 to vector<256x64xf32>
    %162 = arith.maximumf %160, %161 : vector<256x64xf32>
    %163 = vector.extract_strided_slice %162 {offsets = [8, 0], sizes = [248, 64], strides = [1, 1]} : vector<256x64xf32> to vector<248x64xf32>
    %cst_92 = arith.constant 0.000000e+00 : f32
    %164 = vector.broadcast %cst_92 : f32 to vector<8x64xf32>
    %165 = tpu.concatenate %163, %164 in 0 : vector<248x64xf32>, vector<8x64xf32> -> vector<256x64xf32>
    %166 = arith.maximumf %162, %165 : vector<256x64xf32>
    %cst_93 = arith.constant 0.000000e+00 : f32
    %167 = vector.broadcast %cst_93 : f32 to vector<16x64xf32>
    %168 = vector.extract_strided_slice %166 {offsets = [0, 0], sizes = [240, 64], strides = [1, 1]} : vector<256x64xf32> to vector<240x64xf32>
    %169 = tpu.concatenate %167, %168 in 0 : vector<16x64xf32>, vector<240x64xf32> -> vector<256x64xf32>
    %170 = vector.extract_strided_slice %166 {offsets = [16, 0], sizes = [240, 64], strides = [1, 1]} : vector<256x64xf32> to vector<240x64xf32>
    %171 = tpu.concatenate %170, %167 in 0 : vector<240x64xf32>, vector<16x64xf32> -> vector<256x64xf32>
    %c0_i32_94 = arith.constant 0 : i32
    %172 = vector.broadcast %c0_i32_94 : i32 to vector<256x64xi32>
    %173 = arith.cmpi eq, %16, %172 : vector<256x64xi32>
    %cst_95 = arith.constant 0.000000e+00 : f32
    %174 = vector.broadcast %cst_95 : f32 to vector<256x64xf32>
    %175 = arith.select %173, %174, %169 : vector<256x64xi1>, vector<256x64xf32>
    %c112_i32 = arith.constant 112 : i32
    %176 = vector.broadcast %c112_i32 : i32 to vector<256x64xi32>
    %177 = arith.cmpi eq, %16, %176 : vector<256x64xi32>
    %cst_96 = arith.constant 0.000000e+00 : f32
    %178 = vector.broadcast %cst_96 : f32 to vector<256x64xf32>
    %179 = arith.select %177, %178, %171 : vector<256x64xi1>, vector<256x64xf32>
    %c3_97 = arith.constant 3 : index
    %c0_98 = arith.constant 0 : index
    %c0_99 = arith.constant 0 : index
    %c0_100 = arith.constant 0 : index
    %180 = vector.load %arg3[%c3_97, %c0_98, %c0_99, %c0_100] : memref<5x3x64x64xbf16, #tpu.memory_space<vmem>>, vector<1x1x64x64xbf16>
    %181 = vector.shape_cast %180 : vector<1x1x64x64xbf16> to vector<64x64xbf16>
    %c3_101 = arith.constant 3 : index
    %c1_102 = arith.constant 1 : index
    %c0_103 = arith.constant 0 : index
    %c0_104 = arith.constant 0 : index
    %182 = vector.load %arg3[%c3_101, %c1_102, %c0_103, %c0_104] : memref<5x3x64x64xbf16, #tpu.memory_space<vmem>>, vector<1x1x64x64xbf16>
    %183 = vector.shape_cast %182 : vector<1x1x64x64xbf16> to vector<64x64xbf16>
    %c3_105 = arith.constant 3 : index
    %c2_106 = arith.constant 2 : index
    %c0_107 = arith.constant 0 : index
    %c0_108 = arith.constant 0 : index
    %184 = vector.load %arg3[%c3_105, %c2_106, %c0_107, %c0_108] : memref<5x3x64x64xbf16, #tpu.memory_space<vmem>>, vector<1x1x64x64xbf16>
    %185 = vector.shape_cast %184 : vector<1x1x64x64xbf16> to vector<64x64xbf16>
    %186 = arith.truncf %175 : vector<256x64xf32> to vector<256x64xbf16>
    %cst_109 = arith.constant dense<0.000000e+00> : vector<256x64xf32>
    %187 = tpu.matmul %186, %181, %cst_109 {dimension_numbers = #tpu.dot_dimension_numbers<[1], [0], [0], [1], [0, 0, 1, 1], [], []>} : vector<256x64xbf16>, vector<64x64xbf16>, vector<256x64xf32> -> vector<256x64xf32>
    %188 = arith.truncf %166 : vector<256x64xf32> to vector<256x64xbf16>
    %cst_110 = arith.constant dense<0.000000e+00> : vector<256x64xf32>
    %189 = tpu.matmul %188, %183, %cst_110 {dimension_numbers = #tpu.dot_dimension_numbers<[1], [0], [0], [1], [0, 0, 1, 1], [], []>} : vector<256x64xbf16>, vector<64x64xbf16>, vector<256x64xf32> -> vector<256x64xf32>
    %190 = arith.addf %187, %189 : vector<256x64xf32>
    %191 = arith.truncf %179 : vector<256x64xf32> to vector<256x64xbf16>
    %cst_111 = arith.constant dense<0.000000e+00> : vector<256x64xf32>
    %192 = tpu.matmul %191, %185, %cst_111 {dimension_numbers = #tpu.dot_dimension_numbers<[1], [0], [0], [1], [0, 0, 1, 1], [], []>} : vector<256x64xbf16>, vector<64x64xbf16>, vector<256x64xf32> -> vector<256x64xf32>
    %193 = arith.addf %190, %192 : vector<256x64xf32>
    %c4 = arith.constant 4 : index
    %c0_112 = arith.constant 0 : index
    %c0_113 = arith.constant 0 : index
    %194 = vector.load %arg4[%c4, %c0_112, %c0_113] : memref<6x1x64xf32, #tpu.memory_space<vmem>>, vector<1x1x64xf32>
    %195 = vector.shape_cast %194 : vector<1x1x64xf32> to vector<1x64xf32>
    %196 = vector.broadcast %195 : vector<1x64xf32> to vector<256x64xf32>
    %197 = arith.addf %193, %196 : vector<256x64xf32>
    %cst_114 = arith.constant 0.000000e+00 : f32
    %198 = vector.broadcast %cst_114 : f32 to vector<256x64xf32>
    %199 = arith.maximumf %197, %198 : vector<256x64xf32>
    %200 = vector.extract_strided_slice %199 {offsets = [16, 0], sizes = [240, 64], strides = [1, 1]} : vector<256x64xf32> to vector<240x64xf32>
    %cst_115 = arith.constant 0.000000e+00 : f32
    %201 = vector.broadcast %cst_115 : f32 to vector<16x64xf32>
    %202 = tpu.concatenate %200, %201 in 0 : vector<240x64xf32>, vector<16x64xf32> -> vector<256x64xf32>
    %203 = arith.maximumf %199, %202 : vector<256x64xf32>
    %cst_116 = arith.constant 0.000000e+00 : f32
    %204 = vector.broadcast %cst_116 : f32 to vector<32x64xf32>
    %205 = vector.extract_strided_slice %203 {offsets = [0, 0], sizes = [224, 64], strides = [1, 1]} : vector<256x64xf32> to vector<224x64xf32>
    %206 = tpu.concatenate %204, %205 in 0 : vector<32x64xf32>, vector<224x64xf32> -> vector<256x64xf32>
    %207 = vector.extract_strided_slice %203 {offsets = [32, 0], sizes = [224, 64], strides = [1, 1]} : vector<256x64xf32> to vector<224x64xf32>
    %208 = tpu.concatenate %207, %204 in 0 : vector<224x64xf32>, vector<32x64xf32> -> vector<256x64xf32>
    %c0_i32_117 = arith.constant 0 : i32
    %209 = vector.broadcast %c0_i32_117 : i32 to vector<256x64xi32>
    %210 = arith.cmpi eq, %16, %209 : vector<256x64xi32>
    %cst_118 = arith.constant 0.000000e+00 : f32
    %211 = vector.broadcast %cst_118 : f32 to vector<256x64xf32>
    %212 = arith.select %210, %211, %206 : vector<256x64xi1>, vector<256x64xf32>
    %c96_i32 = arith.constant 96 : i32
    %213 = vector.broadcast %c96_i32 : i32 to vector<256x64xi32>
    %214 = arith.cmpi eq, %16, %213 : vector<256x64xi32>
    %cst_119 = arith.constant 0.000000e+00 : f32
    %215 = vector.broadcast %cst_119 : f32 to vector<256x64xf32>
    %216 = arith.select %214, %215, %208 : vector<256x64xi1>, vector<256x64xf32>
    %c4_120 = arith.constant 4 : index
    %c0_121 = arith.constant 0 : index
    %c0_122 = arith.constant 0 : index
    %c0_123 = arith.constant 0 : index
    %217 = vector.load %arg3[%c4_120, %c0_121, %c0_122, %c0_123] : memref<5x3x64x64xbf16, #tpu.memory_space<vmem>>, vector<1x1x64x64xbf16>
    %218 = vector.shape_cast %217 : vector<1x1x64x64xbf16> to vector<64x64xbf16>
    %c4_124 = arith.constant 4 : index
    %c1_125 = arith.constant 1 : index
    %c0_126 = arith.constant 0 : index
    %c0_127 = arith.constant 0 : index
    %219 = vector.load %arg3[%c4_124, %c1_125, %c0_126, %c0_127] : memref<5x3x64x64xbf16, #tpu.memory_space<vmem>>, vector<1x1x64x64xbf16>
    %220 = vector.shape_cast %219 : vector<1x1x64x64xbf16> to vector<64x64xbf16>
    %c4_128 = arith.constant 4 : index
    %c2_129 = arith.constant 2 : index
    %c0_130 = arith.constant 0 : index
    %c0_131 = arith.constant 0 : index
    %221 = vector.load %arg3[%c4_128, %c2_129, %c0_130, %c0_131] : memref<5x3x64x64xbf16, #tpu.memory_space<vmem>>, vector<1x1x64x64xbf16>
    %222 = vector.shape_cast %221 : vector<1x1x64x64xbf16> to vector<64x64xbf16>
    %223 = arith.truncf %212 : vector<256x64xf32> to vector<256x64xbf16>
    %cst_132 = arith.constant dense<0.000000e+00> : vector<256x64xf32>
    %224 = tpu.matmul %223, %218, %cst_132 {dimension_numbers = #tpu.dot_dimension_numbers<[1], [0], [0], [1], [0, 0, 1, 1], [], []>} : vector<256x64xbf16>, vector<64x64xbf16>, vector<256x64xf32> -> vector<256x64xf32>
    %225 = arith.truncf %203 : vector<256x64xf32> to vector<256x64xbf16>
    %cst_133 = arith.constant dense<0.000000e+00> : vector<256x64xf32>
    %226 = tpu.matmul %225, %220, %cst_133 {dimension_numbers = #tpu.dot_dimension_numbers<[1], [0], [0], [1], [0, 0, 1, 1], [], []>} : vector<256x64xbf16>, vector<64x64xbf16>, vector<256x64xf32> -> vector<256x64xf32>
    %227 = arith.addf %224, %226 : vector<256x64xf32>
    %228 = arith.truncf %216 : vector<256x64xf32> to vector<256x64xbf16>
    %cst_134 = arith.constant dense<0.000000e+00> : vector<256x64xf32>
    %229 = tpu.matmul %228, %222, %cst_134 {dimension_numbers = #tpu.dot_dimension_numbers<[1], [0], [0], [1], [0, 0, 1, 1], [], []>} : vector<256x64xbf16>, vector<64x64xbf16>, vector<256x64xf32> -> vector<256x64xf32>
    %230 = arith.addf %227, %229 : vector<256x64xf32>
    %c5 = arith.constant 5 : index
    %c0_135 = arith.constant 0 : index
    %c0_136 = arith.constant 0 : index
    %231 = vector.load %arg4[%c5, %c0_135, %c0_136] : memref<6x1x64xf32, #tpu.memory_space<vmem>>, vector<1x1x64xf32>
    %232 = vector.shape_cast %231 : vector<1x1x64xf32> to vector<1x64xf32>
    %233 = vector.broadcast %232 : vector<1x64xf32> to vector<256x64xf32>
    %234 = arith.addf %230, %233 : vector<256x64xf32>
    %cst_137 = arith.constant 0.000000e+00 : f32
    %235 = vector.broadcast %cst_137 : f32 to vector<256x64xf32>
    %236 = arith.maximumf %234, %235 : vector<256x64xf32>
    %237 = vector.extract_strided_slice %236 {offsets = [32, 0], sizes = [224, 64], strides = [1, 1]} : vector<256x64xf32> to vector<224x64xf32>
    %cst_138 = arith.constant 0.000000e+00 : f32
    %238 = vector.broadcast %cst_138 : f32 to vector<32x64xf32>
    %239 = tpu.concatenate %237, %238 in 0 : vector<224x64xf32>, vector<32x64xf32> -> vector<256x64xf32>
    %240 = arith.addf %236, %239 : vector<256x64xf32>
    %cst_139 = arith.constant 5.000000e-01 : f32
    %241 = vector.broadcast %cst_139 : f32 to vector<256x64xf32>
    %242 = arith.mulf %240, %241 : vector<256x64xf32>
    %243 = arith.truncf %242 : vector<256x64xf32> to vector<256x64xbf16>
    %244 = tpu.iota {dimensions = array<i32: 0>} : vector<2x256xi32>
    %245 = tpu.iota {dimensions = array<i32: 1>} : vector<2x256xi32>
    %c128_i32_140 = arith.constant 128 : i32
    %246 = vector.broadcast %c128_i32_140 : i32 to vector<2x256xi32>
    %247 = arith.muli %244, %246 : vector<2x256xi32>
    %248 = arith.cmpi eq, %245, %247 : vector<2x256xi32>
    %cst_141 = arith.constant 1.000000e+00 : f32
    %cst_142 = arith.constant 0.000000e+00 : f32
    %249 = vector.broadcast %cst_141 : f32 to vector<2x256xf32>
    %250 = vector.broadcast %cst_142 : f32 to vector<2x256xf32>
    %251 = arith.select %248, %249, %250 : vector<2x256xi1>, vector<2x256xf32>
    %252 = arith.truncf %251 : vector<2x256xf32> to vector<2x256xbf16>
    %c128_i32_143 = arith.constant 128 : i32
    %253 = vector.broadcast %c128_i32_143 : i32 to vector<2x256xi32>
    %254 = arith.muli %244, %253 : vector<2x256xi32>
    %c64_i32 = arith.constant 64 : i32
    %255 = vector.broadcast %c64_i32 : i32 to vector<2x256xi32>
    %256 = arith.addi %254, %255 : vector<2x256xi32>
    %257 = arith.cmpi eq, %245, %256 : vector<2x256xi32>
    %cst_144 = arith.constant 1.000000e+00 : f32
    %cst_145 = arith.constant 0.000000e+00 : f32
    %258 = vector.broadcast %cst_144 : f32 to vector<2x256xf32>
    %259 = vector.broadcast %cst_145 : f32 to vector<2x256xf32>
    %260 = arith.select %257, %258, %259 : vector<2x256xi1>, vector<2x256xf32>
    %261 = arith.truncf %260 : vector<2x256xf32> to vector<2x256xbf16>
    %cst_146 = arith.constant dense<0.000000e+00> : vector<2x64xf32>
    %262 = tpu.matmul %252, %243, %cst_146 {dimension_numbers = #tpu.dot_dimension_numbers<[1], [0], [0], [1], [0, 0, 1, 1], [], []>} : vector<2x256xbf16>, vector<256x64xbf16>, vector<2x64xf32> -> vector<2x64xf32>
    %263 = arith.truncf %262 : vector<2x64xf32> to vector<2x64xbf16>
    %cst_147 = arith.constant dense<0.000000e+00> : vector<2x64xf32>
    %264 = tpu.matmul %261, %243, %cst_147 {dimension_numbers = #tpu.dot_dimension_numbers<[1], [0], [0], [1], [0, 0, 1, 1], [], []>} : vector<2x256xbf16>, vector<256x64xbf16>, vector<2x64xf32> -> vector<2x64xf32>
    %265 = arith.truncf %264 : vector<2x64xf32> to vector<2x64xbf16>
    %c0_148 = arith.constant 0 : index
    %c0_149 = arith.constant 0 : index
    %c0_150 = arith.constant 0 : index
    %266 = vector.load %arg5[%c0_148, %c0_149, %c0_150] : memref<2x64x128xbf16, #tpu.memory_space<vmem>>, vector<1x64x128xbf16>
    %267 = vector.shape_cast %266 : vector<1x64x128xbf16> to vector<64x128xbf16>
    %cst_151 = arith.constant dense<0.000000e+00> : vector<2x128xf32>
    %268 = tpu.matmul %263, %267, %cst_151 {dimension_numbers = #tpu.dot_dimension_numbers<[1], [0], [0], [1], [0, 0, 1, 1], [], []>} : vector<2x64xbf16>, vector<64x128xbf16>, vector<2x128xf32> -> vector<2x128xf32>
    %c1_152 = arith.constant 1 : index
    %c0_153 = arith.constant 0 : index
    %c0_154 = arith.constant 0 : index
    %269 = vector.load %arg5[%c1_152, %c0_153, %c0_154] : memref<2x64x128xbf16, #tpu.memory_space<vmem>>, vector<1x64x128xbf16>
    %270 = vector.shape_cast %269 : vector<1x64x128xbf16> to vector<64x128xbf16>
    %cst_155 = arith.constant dense<0.000000e+00> : vector<2x128xf32>
    %271 = tpu.matmul %265, %270, %cst_155 {dimension_numbers = #tpu.dot_dimension_numbers<[1], [0], [0], [1], [0, 0, 1, 1], [], []>} : vector<2x64xbf16>, vector<64x128xbf16>, vector<2x128xf32> -> vector<2x128xf32>
    %272 = arith.addf %268, %271 : vector<2x128xf32>
    %c0_156 = arith.constant 0 : index
    %c0_157 = arith.constant 0 : index
    %273 = vector.load %arg6[%c0_156, %c0_157] : memref<1x128xf32, #tpu.memory_space<vmem>>, vector<1x128xf32>
    %274 = vector.broadcast %273 : vector<1x128xf32> to vector<2x128xf32>
    %275 = arith.addf %272, %274 : vector<2x128xf32>
    %cst_158 = arith.constant 0.000000e+00 : f32
    %276 = vector.broadcast %cst_158 : f32 to vector<2x128xf32>
    %277 = arith.maximumf %275, %276 : vector<2x128xf32>
    %278 = arith.truncf %277 : vector<2x128xf32> to vector<2x128xbf16>
    %c0_159 = arith.constant 0 : index
    %c0_160 = arith.constant 0 : index
    %279 = vector.load %arg7[%c0_159, %c0_160] : memref<128x128xbf16, #tpu.memory_space<vmem>>, vector<128x128xbf16>
    %cst_161 = arith.constant dense<0.000000e+00> : vector<2x128xf32>
    %280 = tpu.matmul %278, %279, %cst_161 {dimension_numbers = #tpu.dot_dimension_numbers<[1], [0], [0], [1], [0, 0, 1, 1], [], []>} : vector<2x128xbf16>, vector<128x128xbf16>, vector<2x128xf32> -> vector<2x128xf32>
    %c0_162 = arith.constant 0 : index
    %c0_163 = arith.constant 0 : index
    %281 = vector.load %arg8[%c0_162, %c0_163] : memref<1x128xf32, #tpu.memory_space<vmem>>, vector<1x128xf32>
    %282 = vector.broadcast %281 : vector<1x128xf32> to vector<2x128xf32>
    %283 = arith.addf %280, %282 : vector<2x128xf32>
    %c0_164 = arith.constant 0 : index
    %c0_165 = arith.constant 0 : index
    %284 = vector.load %arg9[%c0_164, %c0_165] : memref<2x128xf32, #tpu.memory_space<vmem>>, vector<2x128xf32>
    tpu.vector_store %arg9[%c0_164, %c0_165], %283 {strides = array<i32>} : memref<2x128xf32, #tpu.memory_space<vmem>>, vector<2x128xf32>,
    return
  }
  func.func @transform_0(%arg0: i32) -> (i32, i32) {
    %c0_i32 = arith.constant 0 : i32
    %c0_i32_0 = arith.constant 0 : i32
    return %arg0, %c0_i32 : i32, i32
  }
  func.func @transform_1(%arg0: i32) -> (i32, i32, i32) {
    %c0_i32 = arith.constant 0 : i32
    %c0_i32_0 = arith.constant 0 : i32
    %c0_i32_1 = arith.constant 0 : i32
    %c0_i32_2 = arith.constant 0 : i32
    return %c0_i32, %c0_i32_0, %c0_i32_1 : i32, i32, i32
  }
  func.func @transform_2(%arg0: i32) -> (i32, i32, i32, i32) {
    %c0_i32 = arith.constant 0 : i32
    %c0_i32_0 = arith.constant 0 : i32
    %c0_i32_1 = arith.constant 0 : i32
    %c0_i32_2 = arith.constant 0 : i32
    %c0_i32_3 = arith.constant 0 : i32
    return %c0_i32, %c0_i32_0, %c0_i32_1, %c0_i32_2 : i32, i32, i32, i32
  }
  func.func @transform_3(%arg0: i32) -> (i32, i32, i32) {
    %c0_i32 = arith.constant 0 : i32
    %c0_i32_0 = arith.constant 0 : i32
    %c0_i32_1 = arith.constant 0 : i32
    %c0_i32_2 = arith.constant 0 : i32
    return %c0_i32, %c0_i32_0, %c0_i32_1 : i32, i32, i32
  }
  func.func @transform_4(%arg0: i32) -> (i32, i32, i32) {
    %c0_i32 = arith.constant 0 : i32
    %c0_i32_0 = arith.constant 0 : i32
    %c0_i32_1 = arith.constant 0 : i32
    %c0_i32_2 = arith.constant 0 : i32
    return %c0_i32, %c0_i32_0, %c0_i32_1 : i32, i32, i32
  }
  func.func @transform_5(%arg0: i32) -> (i32, i32) {
    %c0_i32 = arith.constant 0 : i32
    %c0_i32_0 = arith.constant 0 : i32
    %c0_i32_1 = arith.constant 0 : i32
    return %c0_i32, %c0_i32_0 : i32, i32
  }
  func.func @transform_6(%arg0: i32) -> (i32, i32) {
    %c0_i32 = arith.constant 0 : i32
    %c0_i32_0 = arith.constant 0 : i32
    %c0_i32_1 = arith.constant 0 : i32
    return %c0_i32, %c0_i32_0 : i32, i32
  }
  func.func @transform_7(%arg0: i32) -> (i32, i32) {
    %c0_i32 = arith.constant 0 : i32
    %c0_i32_0 = arith.constant 0 : i32
    %c0_i32_1 = arith.constant 0 : i32
    return %c0_i32, %c0_i32_0 : i32, i32
  }
  func.func @transform_8(%arg0: i32) -> (i32, i32) {
    %c0_i32 = arith.constant 0 : i32
    %c0_i32_0 = arith.constant 0 : i32
    return %arg0, %c0_i32 : i32, i32
  }
}

</mosaic_0001>

<llo_original>
// kernel: _lambda_.1
$region0: #{_lambda_.1}
  #allocation0 [shape = 'u32[]', space=smem, size = 0x4, offset = 0x4, fixed_abs, tag = 'smem constant byte address 0x4 - core index']
  #allocation1 [shape = 'u32[72,128]{1,0:T(1,128)}', space=vmem, size = 0x9000, scoped, tag = 'internal scratch']
  %s0 = inlined_call_operand.vmem [shape: f32[256,8], index: 0, kind: input, shape index: {}]
  %s1 = inlined_call_operand.vmem [shape: bf16[3,8,64], index: 1, kind: input, shape index: {}]
  %s2 = inlined_call_operand.vmem [shape: bf16[5,3,64,64], index: 2, kind: input, shape index: {}]
  %s3 = inlined_call_operand.vmem [shape: f32[6,1,64], index: 3, kind: input, shape index: {}]
  %s4 = inlined_call_operand.vmem [shape: bf16[2,64,128], index: 4, kind: input, shape index: {}]
  %s5 = inlined_call_operand.vmem [shape: f32[1,128], index: 5, kind: input, shape index: {}]
  %s6 = inlined_call_operand.vmem [shape: bf16[128,128], index: 6, kind: input, shape index: {}]
  %s7 = inlined_call_operand.vmem [shape: f32[1,128], index: 7, kind: input, shape index: {}]
  %s8 = inlined_call_operand.hbm [shape: f32[2,128], index: 8, kind: output, shape index: {}]
  %s9 = sld [smem:[#allocation0]]
  $region42: #{_lambda_.1} parent=0
    _
  %s11 = ssub.s32 1, %s9
  %s12 = scalar_select 0, %s11, %s9
  $region1: #{_lambda_.1} parent=0
    #allocation2 [shape = 'u8[1024]{0}', space=vmem, size = 0x400, scoped, tag = 'output window, operand 0, single buffered']
    #allocation3 [shape = 's32[1]{0}', space=sflag, size = 0x4, scoped, tag = 'scoped memory for _lambda_.1']
    %13 = vsyncpa [#allocation3], 0
    // Predicated region
    $region2: #{_lambda_.1} parent=1 // pred_check
      _
    $region3: #{_lambda_.1} parent=1 // pred_check_branch
      %15 = sbr.rel (0) target = $region5
    $region4: #{_lambda_.1} parent=1 // pred_region
      _
    $region5: #{_lambda_.1} parent=1 // pred_fallthru
      _
    // Predicated region
    $region6: #{_lambda_.1} parent=1 // pred_check
      _
    $region7: #{_lambda_.1} parent=1 // pred_check_branch
      %17 = sbr.rel (0) target = $region9
    $region8: #{_lambda_.1} parent=1 // pred_region
      _
    $region9: #{_lambda_.1} parent=1 // pred_fallthru
      _
    // Predicated region
    $region10: #{_lambda_.1} parent=1 // pred_check
      _
    $region11: #{_lambda_.1} parent=1 // pred_check_branch
      %19 = sbr.rel (0) target = $region13
    $region12: #{_lambda_.1} parent=1 // pred_region
      _
    $region13: #{_lambda_.1} parent=1 // pred_fallthru
      _
    // Predicated region
    $region14: #{_lambda_.1} parent=1 // pred_check
      _
    $region15: #{_lambda_.1} parent=1 // pred_check_branch
      %21 = sbr.rel (0) target = $region17
    $region16: #{_lambda_.1} parent=1 // pred_region
      _
    $region17: #{_lambda_.1} parent=1 // pred_fallthru
      _
    // Predicated region
    $region18: #{_lambda_.1} parent=1 // pred_check
      _
    $region19: #{_lambda_.1} parent=1 // pred_check_branch
      %23 = sbr.rel (0) target = $region21
    $region20: #{_lambda_.1} parent=1 // pred_region
      _
    $region21: #{_lambda_.1} parent=1 // pred_fallthru
      _
    // Predicated region
    $region22: #{_lambda_.1} parent=1 // pred_check
      _
    $region23: #{_lambda_.1} parent=1 // pred_check_branch
      %25 = sbr.rel (0) target = $region25
    $region24: #{_lambda_.1} parent=1 // pred_region
      _
    $region25: #{_lambda_.1} parent=1 // pred_fallthru
      _
    // Predicated region
    $region26: #{_lambda_.1} parent=1 // pred_check
      _
    $region27: #{_lambda_.1} parent=1 // pred_check_branch
      %27 = sbr.rel (0) target = $region29
    $region28: #{_lambda_.1} parent=1 // pred_region
      _
    $region29: #{_lambda_.1} parent=1 // pred_fallthru
      _
    // Predicated region
    $region30: #{_lambda_.1} parent=1 // pred_check
      _
    $region31: #{_lambda_.1} parent=1 // pred_check_branch
      %29 = sbr.rel (0) target = $region33
    $region32: #{_lambda_.1} parent=1 // pred_region
      _
    $region33: #{_lambda_.1} parent=1 // pred_fallthru
      _
    %v31 = vlaneseq
    %v32 = vshrl.u32 %v31, 7
    %v33 = vadd.s32 %v32, 8
    %v34 = vadd.s32 %v32, 16
    %v35 = vadd.s32 %v32, 24
    %v36 = vadd.s32 %v32, 32
    %v37 = vadd.s32 %v32, 40
    %v38 = vadd.s32 %v32, 48
    %v39 = vadd.s32 %v32, 56
    %v40 = vadd.s32 %v32, 64
    %v41 = vadd.s32 %v32, 72
    %v42 = vadd.s32 %v32, 80
    %v43 = vadd.s32 %v32, 88
    %v44 = vadd.s32 %v32, 96
    %v45 = vadd.s32 %v32, 104
    %v46 = vadd.s32 %v32, 112
    %v47 = vadd.s32 %v32, 120
    %v48 = vadd.s32 %v32, 128
    %v49 = vadd.s32 %v32, 136
    %v50 = vadd.s32 %v32, 144
    %v51 = vadd.s32 %v32, 152
    %v52 = vadd.s32 %v32, 160
    %v53 = vadd.s32 %v32, 168
    %v54 = vadd.s32 %v32, 176
    %v55 = vadd.s32 %v32, 184
    %v56 = vadd.s32 %v32, 192
    %v57 = vadd.s32 %v32, 200
    %v58 = vadd.s32 %v32, 208
    %v59 = vadd.s32 %v32, 216
    %v60 = vadd.s32 %v32, 224
    %v61 = vadd.s32 %v32, 232
    %v62 = vadd.s32 %v32, 240
    %v63 = vadd.s32 %v32, 248
    %vm64 = vcmp.lt.s32.totalorder %v32, 0
    %v65 = vsub.s32 0, %v32
    %v66 = vsel %vm64, %v65, %v32
    %v67 = vshrl.u32 %v66, 7
    %v68 = vand.u32 %v66, 127
    %v69 = vsub.s32 0, %v68
    %v70 = vsel %vm64, %v69, %v68
    %vm71 = vcmp.lt.s32.totalorder %v33, 0
    %v72 = vsub.s32 0, %v33
    %v73 = vsel %vm71, %v72, %v33
    %v74 = vshrl.u32 %v73, 7
    %v75 = vand.u32 %v73, 127
    %v76 = vsub.s32 0, %v75
    %v77 = vsel %vm71, %v76, %v75
    %vm78 = vcmp.lt.s32.totalorder %v34, 0
    %v79 = vsub.s32 0, %v34
    %v80 = vsel %vm78, %v79, %v34
    %v81 = vshrl.u32 %v80, 7
    %v82 = vand.u32 %v80, 127
    %v83 = vsub.s32 0, %v82
    %v84 = vsel %vm78, %v83, %v82
    %vm85 = vcmp.lt.s32.totalorder %v35, 0
    %v86 = vsub.s32 0, %v35
    %v87 = vsel %vm85, %v86, %v35
    %v88 = vshrl.u32 %v87, 7
    %v89 = vand.u32 %v87, 127
    %v90 = vsub.s32 0, %v89
    %v91 = vsel %vm85, %v90, %v89
    %vm92 = vcmp.lt.s32.totalorder %v36, 0
    %v93 = vsub.s32 0, %v36
    %v94 = vsel %vm92, %v93, %v36
    %v95 = vshrl.u32 %v94, 7
    %v96 = vand.u32 %v94, 127
    %v97 = vsub.s32 0, %v96
    %v98 = vsel %vm92, %v97, %v96
    %vm99 = vcmp.lt.s32.totalorder %v37, 0
    %v100 = vsub.s32 0, %v37
    %v101 = vsel %vm99, %v100, %v37
    %v102 = vshrl.u32 %v101, 7
    %v103 = vand.u32 %v101, 127
    %v104 = vsub.s32 0, %v103
    %v105 = vsel %vm99, %v104, %v103
    %vm106 = vcmp.lt.s32.totalorder %v38, 0
    %v107 = vsub.s32 0, %v38
    %v108 = vsel %vm106, %v107, %v38
    %v109 = vshrl.u32 %v108, 7
    %v110 = vand.u32 %v108, 127
    %v111 = vsub.s32 0, %v110
    %v112 = vsel %vm106, %v111, %v110
    %vm113 = vcmp.lt.s32.totalorder %v39, 0
    %v114 = vsub.s32 0, %v39
    %v115 = vsel %vm113, %v114, %v39
    %v116 = vshrl.u32 %v115, 7
    %v117 = vand.u32 %v115, 127
    %v118 = vsub.s32 0, %v117
    %v119 = vsel %vm113, %v118, %v117
    %vm120 = vcmp.lt.s32.totalorder %v40, 0
    %v121 = vsub.s32 0, %v40
    %v122 = vsel %vm120, %v121, %v40
    %v123 = vshrl.u32 %v122, 7
    %v124 = vand.u32 %v122, 127
    %v125 = vsub.s32 0, %v124
    %v126 = vsel %vm120, %v125, %v124
    %vm127 = vcmp.lt.s32.totalorder %v41, 0
    %v128 = vsub.s32 0, %v41
    %v129 = vsel %vm127, %v128, %v41
    %v130 = vshrl.u32 %v129, 7
    %v131 = vand.u32 %v129, 127
    %v132 = vsub.s32 0, %v131
    %v133 = vsel %vm127, %v132, %v131
    %vm134 = vcmp.lt.s32.totalorder %v42, 0
    %v135 = vsub.s32 0, %v42
    %v136 = vsel %vm134, %v135, %v42
    %v137 = vshrl.u32 %v136, 7
    %v138 = vand.u32 %v136, 127
    %v139 = vsub.s32 0, %v138
    %v140 = vsel %vm134, %v139, %v138
    %vm141 = vcmp.lt.s32.totalorder %v43, 0
    %v142 = vsub.s32 0, %v43
    %v143 = vsel %vm141, %v142, %v43
    %v144 = vshrl.u32 %v143, 7
    %v145 = vand.u32 %v143, 127
    %v146 = vsub.s32 0, %v145
    %v147 = vsel %vm141, %v146, %v145
    %vm148 = vcmp.lt.s32.totalorder %v44, 0
    %v149 = vsub.s32 0, %v44
    %v150 = vsel %vm148, %v149, %v44
    %v151 = vshrl.u32 %v150, 7
    %v152 = vand.u32 %v150, 127
    %v153 = vsub.s32 0, %v152
    %v154 = vsel %vm148, %v153, %v152
    %vm155 = vcmp.lt.s32.totalorder %v45, 0
    %v156 = vsub.s32 0, %v45
    %v157 = vsel %vm155, %v156, %v45
    %v158 = vshrl.u32 %v157, 7
    %v159 = vand.u32 %v157, 127
    %v160 = vsub.s32 0, %v159
    %v161 = vsel %vm155, %v160, %v159
    %vm162 = vcmp.lt.s32.totalorder %v46, 0
    %v163 = vsub.s32 0, %v46
    %v164 = vsel %vm162, %v163, %v46
    %v165 = vshrl.u32 %v164, 7
    %v166 = vand.u32 %v164, 127
    %v167 = vsub.s32 0, %v166
    %v168 = vsel %vm162, %v167, %v166
    %vm169 = vcmp.lt.s32.totalorder %v47, 0
    %v170 = vsub.s32 0, %v47
    %v171 = vsel %vm169, %v170, %v47
    %v172 = vshrl.u32 %v171, 7
    %v173 = vand.u32 %v171, 127
    %v174 = vsub.s32 0, %v173
    %v175 = vsel %vm169, %v174, %v173
    %vm176 = vcmp.lt.s32.totalorder %v48, 0
    %v177 = vsub.s32 0, %v48
    %v178 = vsel %vm176, %v177, %v48
    %v179 = vshrl.u32 %v178, 7
    %v180 = vand.u32 %v178, 127
    %v181 = vsub.s32 0, %v180
    %v182 = vsel %vm176, %v181, %v180
    %vm183 = vcmp.lt.s32.totalorder %v49, 0
    %v184 = vsub.s32 0, %v49
    %v185 = vsel %vm183, %v184, %v49
    %v186 = vshrl.u32 %v185, 7
    %v187 = vand.u32 %v185, 127
    %v188 = vsub.s32 0, %v187
    %v189 = vsel %vm183, %v188, %v187
    %vm190 = vcmp.lt.s32.totalorder %v50, 0
    %v191 = vsub.s32 0, %v50
    %v192 = vsel %vm190, %v191, %v50
    %v193 = vshrl.u32 %v192, 7
    %v194 = vand.u32 %v192, 127
    %v195 = vsub.s32 0, %v194
    %v196 = vsel %vm190, %v195, %v194
    %vm197 = vcmp.lt.s32.totalorder %v51, 0
    %v198 = vsub.s32 0, %v51
    %v199 = vsel %vm197, %v198, %v51
    %v200 = vshrl.u32 %v199, 7
    %v201 = vand.u32 %v199, 127
    %v202 = vsub.s32 0, %v201
    %v203 = vsel %vm197, %v202, %v201
    %vm204 = vcmp.lt.s32.totalorder %v52, 0
    %v205 = vsub.s32 0, %v52
    %v206 = vsel %vm204, %v205, %v52
    %v207 = vshrl.u32 %v206, 7
    %v208 = vand.u32 %v206, 127
    %v209 = vsub.s32 0, %v208
    %v210 = vsel %vm204, %v209, %v208
    %vm211 = vcmp.lt.s32.totalorder %v53, 0
    %v212 = vsub.s32 0, %v53
    %v213 = vsel %vm211, %v212, %v53
    %v214 = vshrl.u32 %v213, 7
    %v215 = vand.u32 %v213, 127
    %v216 = vsub.s32 0, %v215
    %v217 = vsel %vm211, %v216, %v215
    %vm218 = vcmp.lt.s32.totalorder %v54, 0
    %v219 = vsub.s32 0, %v54
    %v220 = vsel %vm218, %v219, %v54
    %v221 = vshrl.u32 %v220, 7
    %v222 = vand.u32 %v220, 127
    %v223 = vsub.s32 0, %v222
    %v224 = vsel %vm218, %v223, %v222
    %vm225 = vcmp.lt.s32.totalorder %v55, 0
    %v226 = vsub.s32 0, %v55
    %v227 = vsel %vm225, %v226, %v55
    %v228 = vshrl.u32 %v227, 7
    %v229 = vand.u32 %v227, 127
    %v230 = vsub.s32 0, %v229
    %v231 = vsel %vm225, %v230, %v229
    %vm232 = vcmp.lt.s32.totalorder %v56, 0
    %v233 = vsub.s32 0, %v56
    %v234 = vsel %vm232, %v233, %v56
    %v235 = vshrl.u32 %v234, 7
    %v236 = vand.u32 %v234, 127
    %v237 = vsub.s32 0, %v236
    %v238 = vsel %vm232, %v237, %v236
    %vm239 = vcmp.lt.s32.totalorder %v57, 0
    %v240 = vsub.s32 0, %v57
    %v241 = vsel %vm239, %v240, %v57
    %v242 = vshrl.u32 %v241, 7
    %v243 = vand.u32 %v241, 127
    %v244 = vsub.s32 0, %v243
    %v245 = vsel %vm239, %v244, %v243
    %vm246 = vcmp.lt.s32.totalorder %v58, 0
    %v247 = vsub.s32 0, %v58
    %v248 = vsel %vm246, %v247, %v58
    %v249 = vshrl.u32 %v248, 7
    %v250 = vand.u32 %v248, 127
    %v251 = vsub.s32 0, %v250
    %v252 = vsel %vm246, %v251, %v250
    %vm253 = vcmp.lt.s32.totalorder %v59, 0
    %v254 = vsub.s32 0, %v59
    %v255 = vsel %vm253, %v254, %v59
    %v256 = vshrl.u32 %v255, 7
    %v257 = vand.u32 %v255, 127
    %v258 = vsub.s32 0, %v257
    %v259 = vsel %vm253, %v258, %v257
    %vm260 = vcmp.lt.s32.totalorder %v60, 0
    %v261 = vsub.s32 0, %v60
    %v262 = vsel %vm260, %v261, %v60
    %v263 = vshrl.u32 %v262, 7
    %v264 = vand.u32 %v262, 127
    %v265 = vsub.s32 0, %v264
    %v266 = vsel %vm260, %v265, %v264
    %vm267 = vcmp.lt.s32.totalorder %v61, 0
    %v268 = vsub.s32 0, %v61
    %v269 = vsel %vm267, %v268, %v61
    %v270 = vshrl.u32 %v269, 7
    %v271 = vand.u32 %v269, 127
    %v272 = vsub.s32 0, %v271
    %v273 = vsel %vm267, %v272, %v271
    %vm274 = vcmp.lt.s32.totalorder %v62, 0
    %v275 = vsub.s32 0, %v62
    %v276 = vsel %vm274, %v275, %v62
    %v277 = vshrl.u32 %v276, 7
    %v278 = vand.u32 %v276, 127
    %v279 = vsub.s32 0, %v278
    %v280 = vsel %vm274, %v279, %v278
    %vm281 = vcmp.lt.s32.totalorder %v63, 0
    %v282 = vsub.s32 0, %v63
    %v283 = vsel %vm281, %v282, %v63
    %v284 = vshrl.u32 %v283, 7
    %v285 = vand.u32 %v283, 127
    %v286 = vsub.s32 0, %v285
    %v287 = vsel %vm281, %v286, %v285
    %vm288 = vcmp.ne.s32.totalorder %v70, 0
    %vm289 = vcmp.ne.s32.totalorder %v77, 0
    %vm290 = vcmp.ne.s32.totalorder %v84, 0
    %vm291 = vcmp.ne.s32.totalorder %v91, 0
    %vm292 = vcmp.ne.s32.totalorder %v98, 0
    %vm293 = vcmp.ne.s32.totalorder %v105, 0
    %vm294 = vcmp.ne.s32.totalorder %v112, 0
    %vm295 = vcmp.ne.s32.totalorder %v119, 0
    %vm296 = vcmp.ne.s32.totalorder %v126, 0
    %vm297 = vcmp.ne.s32.totalorder %v133, 0
    %vm298 = vcmp.ne.s32.totalorder %v140, 0
    %vm299 = vcmp.ne.s32.totalorder %v147, 0
    %vm300 = vcmp.ne.s32.totalorder %v154, 0
    %vm301 = vcmp.ne.s32.totalorder %v161, 0
    %vm302 = vcmp.ne.s32.totalorder %v168, 0
    %vm303 = vcmp.ne.s32.totalorder %v175, 0
    %vm304 = vcmp.ne.s32.totalorder %v182, 0
    %vm305 = vcmp.ne.s32.totalorder %v189, 0
    %vm306 = vcmp.ne.s32.totalorder %v196, 0
    %vm307 = vcmp.ne.s32.totalorder %v203, 0
    %vm308 = vcmp.ne.s32.totalorder %v210, 0
    %vm309 = vcmp.ne.s32.totalorder %v217, 0
    %vm310 = vcmp.ne.s32.totalorder %v224, 0
    %vm311 = vcmp.ne.s32.totalorder %v231, 0
    %vm312 = vcmp.ne.s32.totalorder %v238, 0
    %vm313 = vcmp.ne.s32.totalorder %v245, 0
    %vm314 = vcmp.ne.s32.totalorder %v252, 0
    %vm315 = vcmp.ne.s32.totalorder %v259, 0
    %vm316 = vcmp.ne.s32.totalorder %v266, 0
    %vm317 = vcmp.ne.s32.totalorder %v273, 0
    %vm318 = vcmp.ne.s32.totalorder %v280, 0
    %vm319 = vcmp.ne.s32.totalorder %v287, 0
    %vm320 = vcmp.lt.s32.totalorder %v70, 0
    %vm321 = vcmp.lt.s32.totalorder %v77, 0
    %vm322 = vcmp.lt.s32.totalorder %v84, 0
    %vm323 = vcmp.lt.s32.totalorder %v91, 0
    %vm324 = vcmp.lt.s32.totalorder %v98, 0
    %vm325 = vcmp.lt.s32.totalorder %v105, 0
    %vm326 = vcmp.lt.s32.totalorder %v112, 0
    %vm327 = vcmp.lt.s32.totalorder %v119, 0
    %vm328 = vcmp.lt.s32.totalorder %v126, 0
    %vm329 = vcmp.lt.s32.totalorder %v133, 0
    %vm330 = vcmp.lt.s32.totalorder %v140, 0
    %vm331 = vcmp.lt.s32.totalorder %v147, 0
    %vm332 = vcmp.lt.s32.totalorder %v154, 0
    %vm333 = vcmp.lt.s32.totalorder %v161, 0
    %vm334 = vcmp.lt.s32.totalorder %v168, 0
    %vm335 = vcmp.lt.s32.totalorder %v175, 0
    %vm336 = vcmp.lt.s32.totalorder %v182, 0
    %vm337 = vcmp.lt.s32.totalorder %v189, 0
    %vm338 = vcmp.lt.s32.totalorder %v196, 0
    %vm339 = vcmp.lt.s32.totalorder %v203, 0
    %vm340 = vcmp.lt.s32.totalorder %v210, 0
    %vm341 = vcmp.lt.s32.totalorder %v217, 0
    %vm342 = vcmp.lt.s32.totalorder %v224, 0
    %vm343 = vcmp.lt.s32.totalorder %v231, 0
    %vm344 = vcmp.lt.s32.totalorder %v238, 0
    %vm345 = vcmp.lt.s32.totalorder %v245, 0
    %vm346 = vcmp.lt.s32.totalorder %v252, 0
    %vm347 = vcmp.lt.s32.totalorder %v259, 0
    %vm348 = vcmp.lt.s32.totalorder %v266, 0
    %vm349 = vcmp.lt.s32.totalorder %v273, 0
    %vm350 = vcmp.lt.s32.totalorder %v280, 0
    %vm351 = vcmp.lt.s32.totalorder %v287, 0
    %vm352 = vmand %vm320, %vm288
    %vm353 = vmand %vm321, %vm289
    %vm354 = vmand %vm322, %vm290
    %vm355 = vmand %vm323, %vm291
    %vm356 = vmand %vm324, %vm292
    %vm357 = vmand %vm325, %vm293
    %vm358 = vmand %vm326, %vm294
    %vm359 = vmand %vm327, %vm295
    %vm360 = vmand %vm328, %vm296
    %vm361 = vmand %vm329, %vm297
    %vm362 = vmand %vm330, %vm298
    %vm363 = vmand %vm331, %vm299
    %vm364 = vmand %vm332, %vm300
    %vm365 = vmand %vm333, %vm301
    %vm366 = vmand %vm334, %vm302
    %vm367 = vmand %vm335, %vm303
    %vm368 = vmand %vm336, %vm304
    %vm369 = vmand %vm337, %vm305
    %vm370 = vmand %vm338, %vm306
    %vm371 = vmand %vm339, %vm307
    %vm372 = vmand %vm340, %vm308
    %vm373 = vmand %vm341, %vm309
    %vm374 = vmand %vm342, %vm310
    %vm375 = vmand %vm343, %vm311
    %vm376 = vmand %vm344, %vm312
    %vm377 = vmand %vm345, %vm313
    %vm378 = vmand %vm346, %vm314
    %vm379 = vmand %vm347, %vm315
    %vm380 = vmand %vm348, %vm316
    %vm381 = vmand %vm349, %vm317
    %vm382 = vmand %vm350, %vm318
    %vm383 = vmand %vm351, %vm319
    %v384 = vadd.s32 %v70, 128
    %v385 = vadd.s32 %v77, 128
    %v386 = vadd.s32 %v84, 128
    %v387 = vadd.s32 %v91, 128
    %v388 = vadd.s32 %v98, 128
    %v389 = vadd.s32 %v105, 128
    %v390 = vadd.s32 %v112, 128
    %v391 = vadd.s32 %v119, 128
    %v392 = vadd.s32 %v126, 128
    %v393 = vadd.s32 %v133, 128
    %v394 = vadd.s32 %v140, 128
    %v395 = vadd.s32 %v147, 128
    %v396 = vadd.s32 %v154, 128
    %v397 = vadd.s32 %v161, 128
    %v398 = vadd.s32 %v168, 128
    %v399 = vadd.s32 %v175, 128
    %v400 = vadd.s32 %v182, 128
    %v401 = vadd.s32 %v189, 128
    %v402 = vadd.s32 %v196, 128
    %v403 = vadd.s32 %v203, 128
    %v404 = vadd.s32 %v210, 128
    %v405 = vadd.s32 %v217, 128
    %v406 = vadd.s32 %v224, 128
    %v407 = vadd.s32 %v231, 128
    %v408 = vadd.s32 %v238, 128
    %v409 = vadd.s32 %v245, 128
    %v410 = vadd.s32 %v252, 128
    %v411 = vadd.s32 %v259, 128
    %v412 = vadd.s32 %v266, 128
    %v413 = vadd.s32 %v273, 128
    %v414 = vadd.s32 %v280, 128
    %v415 = vadd.s32 %v287, 128
    %v416 = vsel %vm352, %v384, %v70
    %v417 = vsel %vm353, %v385, %v77
    %v418 = vsel %vm354, %v386, %v84
    %v419 = vsel %vm355, %v387, %v91
    %v420 = vsel %vm356, %v388, %v98
    %v421 = vsel %vm357, %v389, %v105
    %v422 = vsel %vm358, %v390, %v112
    %v423 = vsel %vm359, %v391, %v119
    %v424 = vsel %vm360, %v392, %v126
    %v425 = vsel %vm361, %v393, %v133
    %v426 = vsel %vm362, %v394, %v140
    %v427 = vsel %vm363, %v395, %v147
    %v428 = vsel %vm364, %v396, %v154
    %v429 = vsel %vm365, %v397, %v161
    %v430 = vsel %vm366, %v398, %v168
    %v431 = vsel %vm367, %v399, %v175
    %v432 = vsel %vm368, %v400, %v182
    %v433 = vsel %vm369, %v401, %v189
    %v434 = vsel %vm370, %v402, %v196
    %v435 = vsel %vm371, %v403, %v203
    %v436 = vsel %vm372, %v404, %v210
    %v437 = vsel %vm373, %v405, %v217
    %v438 = vsel %vm374, %v406, %v224
    %v439 = vsel %vm375, %v407, %v231
    %v440 = vsel %vm376, %v408, %v238
    %v441 = vsel %vm377, %v409, %v245
    %v442 = vsel %vm378, %v410, %v252
    %v443 = vsel %vm379, %v411, %v259
    %v444 = vsel %vm380, %v412, %v266
    %v445 = vsel %vm381, %v413, %v273
    %v446 = vsel %vm382, %v414, %v280
    %v447 = vsel %vm383, %v415, %v287
    %v448 = vld [vmem:[%s0] sm:$0xff]
    %v449 = vld [vmem:[%s0 + $0x8] sm:$0xff]
    %v450 = vld [vmem:[%s0 + $0x10] sm:$0xff]
    %v451 = vld [vmem:[%s0 + $0x18] sm:$0xff]
    %v452 = vld [vmem:[%s0 + $0x20] sm:$0xff]
    %v453 = vld [vmem:[%s0 + $0x28] sm:$0xff]
    %v454 = vld [vmem:[%s0 + $0x30] sm:$0xff]
    %v455 = vld [vmem:[%s0 + $0x38] sm:$0xff]
    %v456 = vld [vmem:[%s0 + $0x40] sm:$0xff]
    %v457 = vld [vmem:[%s0 + $0x48] sm:$0xff]
    %v458 = vld [vmem:[%s0 + $0x50] sm:$0xff]
    %v459 = vld [vmem:[%s0 + $0x58] sm:$0xff]
    %v460 = vld [vmem:[%s0 + $0x60] sm:$0xff]
    %v461 = vld [vmem:[%s0 + $0x68] sm:$0xff]
    %v462 = vld [vmem:[%s0 + $0x70] sm:$0xff]
    %v463 = vld [vmem:[%s0 + $0x78] sm:$0xff]
    %v464 = vld [vmem:[%s0 + $0x80] sm:$0xff]
    %v465 = vld [vmem:[%s0 + $0x88] sm:$0xff]
    %v466 = vld [vmem:[%s0 + $0x90] sm:$0xff]
    %v467 = vld [vmem:[%s0 + $0x98] sm:$0xff]
    %v468 = vld [vmem:[%s0 + $0xa0] sm:$0xff]
    %v469 = vld [vmem:[%s0 + $0xa8] sm:$0xff]
    %v470 = vld [vmem:[%s0 + $0xb0] sm:$0xff]
    %v471 = vld [vmem:[%s0 + $0xb8] sm:$0xff]
    %v472 = vld [vmem:[%s0 + $0xc0] sm:$0xff]
    %v473 = vld [vmem:[%s0 + $0xc8] sm:$0xff]
    %v474 = vld [vmem:[%s0 + $0xd0] sm:$0xff]
    %v475 = vld [vmem:[%s0 + $0xd8] sm:$0xff]
    %v476 = vld [vmem:[%s0 + $0xe0] sm:$0xff]
    %v477 = vld [vmem:[%s0 + $0xe8] sm:$0xff]
    %v478 = vld [vmem:[%s0 + $0xf0] sm:$0xff]
    %v479 = vld [vmem:[%s0 + $0xf8] sm:$0xff]
    %vm512 = vcmask 1040384
    %v513 = vrot.slane %v448, 7
    %v514 = vrot.slane %v449, 7
    %v515 = vsel %vm512, %v513, %v514
    %v516 = vrot.slane %v450, 7
    %v517 = vsel %vm512, %v514, %v516
    %v518 = vrot.slane %v451, 7
    %v519 = vsel %vm512, %v516, %v518
    %v520 = vrot.slane %v452, 7
    %v521 = vsel %vm512, %v518, %v520
    %v522 = vrot.slane %v453, 7
    %v523 = vsel %vm512, %v520, %v522
    %v524 = vrot.slane %v454, 7
    %v525 = vsel %vm512, %v522, %v524
    %v526 = vrot.slane %v455, 7
    %v527 = vsel %vm512, %v524, %v526
    %v528 = vrot.slane %v456, 7
    %v529 = vsel %vm512, %v526, %v528
    %v530 = vrot.slane %v457, 7
    %v531 = vsel %vm512, %v528, %v530
    %v532 = vrot.slane %v458, 7
    %v533 = vsel %vm512, %v530, %v532
    %v534 = vrot.slane %v459, 7
    %v535 = vsel %vm512, %v532, %v534
    %v536 = vrot.slane %v460, 7
    %v537 = vsel %vm512, %v534, %v536
    %v538 = vrot.slane %v461, 7
    %v539 = vsel %vm512, %v536, %v538
    %v540 = vrot.slane %v462, 7
    %v541 = vsel %vm512, %v538, %v540
    %v542 = vrot.slane %v463, 7
    %v543 = vsel %vm512, %v540, %v542
    %v544 = vrot.slane %v464, 7
    %v545 = vsel %vm512, %v542, %v544
    %v546 = vrot.slane %v465, 7
    %v547 = vsel %vm512, %v544, %v546
    %v548 = vrot.slane %v466, 7
    %v549 = vsel %vm512, %v546, %v548
    %v550 = vrot.slane %v467, 7
    %v551 = vsel %vm512, %v548, %v550
    %v552 = vrot.slane %v468, 7
    %v553 = vsel %vm512, %v550, %v552
    %v554 = vrot.slane %v469, 7
    %v555 = vsel %vm512, %v552, %v554
    %v556 = vrot.slane %v470, 7
    %v557 = vsel %vm512, %v554, %v556
    %v558 = vrot.slane %v471, 7
    %v559 = vsel %vm512, %v556, %v558
    %v560 = vrot.slane %v472, 7
    %v561 = vsel %vm512, %v558, %v560
    %v562 = vrot.slane %v473, 7
    %v563 = vsel %vm512, %v560, %v562
    %v564 = vrot.slane %v474, 7
    %v565 = vsel %vm512, %v562, %v564
    %v566 = vrot.slane %v475, 7
    %v567 = vsel %vm512, %v564, %v566
    %v568 = vrot.slane %v476, 7
    %v569 = vsel %vm512, %v566, %v568
    %v570 = vrot.slane %v477, 7
    %v571 = vsel %vm512, %v568, %v570
    %v572 = vrot.slane %v478, 7
    %v573 = vsel %vm512, %v570, %v572
    %v574 = vrot.slane %v479, 7
    %v575 = vsel %vm512, %v572, %v574
    %v608 = vsel %vm512, 0.0, %v513
    %vm609 = vcmask 1046528
    %v610 = vrot.slane %v448, 1
    %v611 = vrot.slane %v449, 1
    %v612 = vsel %vm609, %v610, %v611
    %v613 = vrot.slane %v450, 1
    %v614 = vsel %vm609, %v611, %v613
    %v615 = vrot.slane %v451, 1
    %v616 = vsel %vm609, %v613, %v615
    %v617 = vrot.slane %v452, 1
    %v618 = vsel %vm609, %v615, %v617
    %v619 = vrot.slane %v453, 1
    %v620 = vsel %vm609, %v617, %v619
    %v621 = vrot.slane %v454, 1
    %v622 = vsel %vm609, %v619, %v621
    %v623 = vrot.slane %v455, 1
    %v624 = vsel %vm609, %v621, %v623
    %v625 = vrot.slane %v456, 1
    %v626 = vsel %vm609, %v623, %v625
    %v627 = vrot.slane %v457, 1
    %v628 = vsel %vm609, %v625, %v627
    %v629 = vrot.slane %v458, 1
    %v630 = vsel %vm609, %v627, %v629
    %v631 = vrot.slane %v459, 1
    %v632 = vsel %vm609, %v629, %v631
    %v633 = vrot.slane %v460, 1
    %v634 = vsel %vm609, %v631, %v633
    %v635 = vrot.slane %v461, 1
    %v636 = vsel %vm609, %v633, %v635
    %v637 = vrot.slane %v462, 1
    %v638 = vsel %vm609, %v635, %v637
    %v639 = vrot.slane %v463, 1
    %v640 = vsel %vm609, %v637, %v639
    %v641 = vrot.slane %v464, 1
    %v642 = vsel %vm609, %v639, %v641
    %v643 = vrot.slane %v465, 1
    %v644 = vsel %vm609, %v641, %v643
    %v645 = vrot.slane %v466, 1
    %v646 = vsel %vm609, %v643, %v645
    %v647 = vrot.slane %v467, 1
    %v648 = vsel %vm609, %v645, %v647
    %v649 = vrot.slane %v468, 1
    %v650 = vsel %vm609, %v647, %v649
    %v651 = vrot.slane %v469, 1
    %v652 = vsel %vm609, %v649, %v651
    %v653 = vrot.slane %v470, 1
    %v654 = vsel %vm609, %v651, %v653
    %v655 = vrot.slane %v471, 1
    %v656 = vsel %vm609, %v653, %v655
    %v657 = vrot.slane %v472, 1
    %v658 = vsel %vm609, %v655, %v657
    %v659 = vrot.slane %v473, 1
    %v660 = vsel %vm609, %v657, %v659
    %v661 = vrot.slane %v474, 1
    %v662 = vsel %vm609, %v659, %v661
    %v663 = vrot.slane %v475, 1
    %v664 = vsel %vm609, %v661, %v663
    %v665 = vrot.slane %v476, 1
    %v666 = vsel %vm609, %v663, %v665
    %v667 = vrot.slane %v477, 1
    %v668 = vsel %vm609, %v665, %v667
    %v669 = vrot.slane %v478, 1
    %v670 = vsel %vm609, %v667, %v669
    %v671 = vrot.slane %v479, 1
    %v672 = vsel %vm609, %v669, %v671
    %v705 = vsel %vm609, %v671, 0.0
    %vm706 = vcmp.eq.s32.totalorder %v416, 0
    %vm707 = vcmp.eq.s32.totalorder %v417, 0
    %vm708 = vcmp.eq.s32.totalorder %v418, 0
    %vm709 = vcmp.eq.s32.totalorder %v419, 0
    %vm710 = vcmp.eq.s32.totalorder %v420, 0
    %vm711 = vcmp.eq.s32.totalorder %v421, 0
    %vm712 = vcmp.eq.s32.totalorder %v422, 0
    %vm713 = vcmp.eq.s32.totalorder %v423, 0
    %vm714 = vcmp.eq.s32.totalorder %v424, 0
    %vm715 = vcmp.eq.s32.totalorder %v425, 0
    %vm716 = vcmp.eq.s32.totalorder %v426, 0
    %vm717 = vcmp.eq.s32.totalorder %v427, 0
    %vm718 = vcmp.eq.s32.totalorder %v428, 0
    %vm719 = vcmp.eq.s32.totalorder %v429, 0
    %vm720 = vcmp.eq.s32.totalorder %v430, 0
    %vm721 = vcmp.eq.s32.totalorder %v431, 0
    %vm722 = vcmp.eq.s32.totalorder %v432, 0
    %vm723 = vcmp.eq.s32.totalorder %v433, 0
    %vm724 = vcmp.eq.s32.totalorder %v434, 0
    %vm725 = vcmp.eq.s32.totalorder %v435, 0
    %vm726 = vcmp.eq.s32.totalorder %v436, 0
    %vm727 = vcmp.eq.s32.totalorder %v437, 0
    %vm728 = vcmp.eq.s32.totalorder %v438, 0
    %vm729 = vcmp.eq.s32.totalorder %v439, 0
    %vm730 = vcmp.eq.s32.totalorder %v440, 0
    %vm731 = vcmp.eq.s32.totalorder %v441, 0
    %vm732 = vcmp.eq.s32.totalorder %v442, 0
    %vm733 = vcmp.eq.s32.totalorder %v443, 0
    %vm734 = vcmp.eq.s32.totalorder %v444, 0
    %vm735 = vcmp.eq.s32.totalorder %v445, 0
    %vm736 = vcmp.eq.s32.totalorder %v446, 0
    %vm737 = vcmp.eq.s32.totalorder %v447, 0
    %v738 = vsel %vm706, 0.0, %v608
    %v739 = vsel %vm707, 0.0, %v515
    %v740 = vsel %vm708, 0.0, %v517
    %v741 = vsel %vm709, 0.0, %v519
    %v742 = vsel %vm710, 0.0, %v521
    %v743 = vsel %vm711, 0.0, %v523
    %v744 = vsel %vm712, 0.0, %v525
    %v745 = vsel %vm713, 0.0, %v527
    %v746 = vsel %vm714, 0.0, %v529
    %v747 = vsel %vm715, 0.0, %v531
    %v748 = vsel %vm716, 0.0, %v533
    %v749 = vsel %vm717, 0.0, %v535
    %v750 = vsel %vm718, 0.0, %v537
    %v751 = vsel %vm719, 0.0, %v539
    %v752 = vsel %vm720, 0.0, %v541
    %v753 = vsel %vm721, 0.0, %v543
    %v754 = vsel %vm722, 0.0, %v545
    %v755 = vsel %vm723, 0.0, %v547
    %v756 = vsel %vm724, 0.0, %v549
    %v757 = vsel %vm725, 0.0, %v551
    %v758 = vsel %vm726, 0.0, %v553
    %v759 = vsel %vm727, 0.0, %v555
    %v760 = vsel %vm728, 0.0, %v557
    %v761 = vsel %vm729, 0.0, %v559
    %v762 = vsel %vm730, 0.0, %v561
    %v763 = vsel %vm731, 0.0, %v563
    %v764 = vsel %vm732, 0.0, %v565
    %v765 = vsel %vm733, 0.0, %v567
    %v766 = vsel %vm734, 0.0, %v569
    %v767 = vsel %vm735, 0.0, %v571
    %v768 = vsel %vm736, 0.0, %v573
    %v769 = vsel %vm737, 0.0, %v575
    %vm770 = vcmp.eq.s32.totalorder %v416, 127
    %vm771 = vcmp.eq.s32.totalorder %v417, 127
    %vm772 = vcmp.eq.s32.totalorder %v418, 127
    %vm773 = vcmp.eq.s32.totalorder %v419, 127
    %vm774 = vcmp.eq.s32.totalorder %v420, 127
    %vm775 = vcmp.eq.s32.totalorder %v421, 127
    %vm776 = vcmp.eq.s32.totalorder %v422, 127
    %vm777 = vcmp.eq.s32.totalorder %v423, 127
    %vm778 = vcmp.eq.s32.totalorder %v424, 127
    %vm779 = vcmp.eq.s32.totalorder %v425, 127
    %vm780 = vcmp.eq.s32.totalorder %v426, 127
    %vm781 = vcmp.eq.s32.totalorder %v427, 127
    %vm782 = vcmp.eq.s32.totalorder %v428, 127
    %vm783 = vcmp.eq.s32.totalorder %v429, 127
    %vm784 = vcmp.eq.s32.totalorder %v430, 127
    %vm785 = vcmp.eq.s32.totalorder %v431, 127
    %vm786 = vcmp.eq.s32.totalorder %v432, 127
    %vm787 = vcmp.eq.s32.totalorder %v433, 127
    %vm788 = vcmp.eq.s32.totalorder %v434, 127
    %vm789 = vcmp.eq.s32.totalorder %v435, 127
    %vm790 = vcmp.eq.s32.totalorder %v436, 127
    %vm791 = vcmp.eq.s32.totalorder %v437, 127
    %vm792 = vcmp.eq.s32.totalorder %v438, 127
    %vm793 = vcmp.eq.s32.totalorder %v439, 127
    %vm794 = vcmp.eq.s32.totalorder %v440, 127
    %vm795 = vcmp.eq.s32.totalorder %v441, 127
    %vm796 = vcmp.eq.s32.totalorder %v442, 127
    %vm797 = vcmp.eq.s32.totalorder %v443, 127
    %vm798 = vcmp.eq.s32.totalorder %v444, 127
    %vm799 = vcmp.eq.s32.totalorder %v445, 127
    %vm800 = vcmp.eq.s32.totalorder %v446, 127
    %vm801 = vcmp.eq.s32.totalorder %v447, 127
    %v802 = vsel %vm770, 0.0, %v612
    %v803 = vsel %vm771, 0.0, %v614
    %v804 = vsel %vm772, 0.0, %v616
    %v805 = vsel %vm773, 0.0, %v618
    %v806 = vsel %vm774, 0.0, %v620
    %v807 = vsel %vm775, 0.0, %v622
    %v808 = vsel %vm776, 0.0, %v624
    %v809 = vsel %vm777, 0.0, %v626
    %v810 = vsel %vm778, 0.0, %v628
    %v811 = vsel %vm779, 0.0, %v630
    %v812 = vsel %vm780, 0.0, %v632
    %v813 = vsel %vm781, 0.0, %v634
    %v814 = vsel %vm782, 0.0, %v636
    %v815 = vsel %vm783, 0.0, %v638
    %v816 = vsel %vm784, 0.0, %v640
    %v817 = vsel %vm785, 0.0, %v642
    %v818 = vsel %vm786, 0.0, %v644
    %v819 = vsel %vm787, 0.0, %v646
    %v820 = vsel %vm788, 0.0, %v648
    %v821 = vsel %vm789, 0.0, %v650
    %v822 = vsel %vm790, 0.0, %v652
    %v823 = vsel %vm791, 0.0, %v654
    %v824 = vsel %vm792, 0.0, %v656
    %v825 = vsel %vm793, 0.0, %v658
    %v826 = vsel %vm794, 0.0, %v660
    %v827 = vsel %vm795, 0.0, %v662
    %v828 = vsel %vm796, 0.0, %v664
    %v829 = vsel %vm797, 0.0, %v666
    %v830 = vsel %vm798, 0.0, %v668
    %v831 = vsel %vm799, 0.0, %v670
    %v832 = vsel %vm800, 0.0, %v672
    %v833 = vsel %vm801, 0.0, %v705
    %v834 = vld [vmem:[%s1] sm:$0xf]
    %s835 = scalar_lea.vmem %s1, 4
    %v836 = vld [vmem:[%s835] sm:$0xf]
    %s837 = scalar_lea.vmem %s1, 8
    %v838 = vld [vmem:[%s837] sm:$0xf]
    %v839 = vpack.c.bf16 %v739, %v738
    %v840 = vpack.c.bf16 %v741, %v740
    %v841 = vpack.c.bf16 %v743, %v742
    %v842 = vpack.c.bf16 %v745, %v744
    %v843 = vpack.c.bf16 %v747, %v746
    %v844 = vpack.c.bf16 %v749, %v748
    %v845 = vpack.c.bf16 %v751, %v750
    %v846 = vpack.c.bf16 %v753, %v752
    %v847 = vpack.c.bf16 %v755, %v754
    %v848 = vpack.c.bf16 %v757, %v756
    %v849 = vpack.c.bf16 %v759, %v758
    %v850 = vpack.c.bf16 %v761, %v760
    %v851 = vpack.c.bf16 %v763, %v762
    %v852 = vpack.c.bf16 %v765, %v764
    %v853 = vpack.c.bf16 %v767, %v766
    %v854 = vpack.c.bf16 %v769, %v768
    %v855 = vpack.c.bf16 %v449, %v448
    %v856 = vpack.c.bf16 %v451, %v450
    %v857 = vpack.c.bf16 %v453, %v452
    %v858 = vpack.c.bf16 %v455, %v454
    %v859 = vpack.c.bf16 %v457, %v456
    %v860 = vpack.c.bf16 %v459, %v458
    %v861 = vpack.c.bf16 %v461, %v460
    %v862 = vpack.c.bf16 %v463, %v462
    %v863 = vpack.c.bf16 %v465, %v464
    %v864 = vpack.c.bf16 %v467, %v466
    %v865 = vpack.c.bf16 %v469, %v468
    %v866 = vpack.c.bf16 %v471, %v470
    %v867 = vpack.c.bf16 %v473, %v472
    %v868 = vpack.c.bf16 %v475, %v474
    %v869 = vpack.c.bf16 %v477, %v476
    %v870 = vpack.c.bf16 %v479, %v478
    %vm871 = vcmask 64512
    %v873 = vsel %vm871, %v855, 0
    %v876 = vsel %vm871, %v856, 0
    %v879 = vsel %vm871, %v857, 0
    %v882 = vsel %vm871, %v858, 0
    %v885 = vsel %vm871, %v859, 0
    %v888 = vsel %vm871, %v860, 0
    %v891 = vsel %vm871, %v861, 0
    %v894 = vsel %vm871, %v862, 0
    %v897 = vsel %vm871, %v863, 0
    %v900 = vsel %vm871, %v864, 0
    %v903 = vsel %vm871, %v865, 0
    %v906 = vsel %vm871, %v866, 0
    %v909 = vsel %vm871, %v867, 0
    %v912 = vsel %vm871, %v868, 0
    %v915 = vsel %vm871, %v869, 0
    %v918 = vsel %vm871, %v870, 0
    %vm920 = vcmask 1043456
    %v922 = vsel %vm920, %v836, 0
    %924 = vmatpush.bf16.msra.mxu0 0
    %925 = vmatpush.bf16.msra.mxu0 0
    %926 = vmatpush.bf16.msra.mxu0 0
    %927 = vmatpush.bf16.msra.mxu0 0
    %928 = vmatpush.bf16.msra.mxu0 0
    %929 = vmatpush.bf16.msra.mxu0 0
    %930 = vmatpush.bf16.msra.mxu0 0
    %931 = vmatpush.bf16.msra.mxu0 %v922
    %932 = vmatmul.bf16.gmra.mxu0 %v873
    %v933 = vpop.f32.mrf.mxu0
    %v934 = vadd.f32 0.0, %v933
    %v935 = vpop.f32.mrf.mxu0
    %v936 = vadd.f32 0.0, %v935
    %937 = vmatmul.bf16.gmra.mxu0 %v876
    %v938 = vpop.f32.mrf.mxu0
    %v939 = vadd.f32 0.0, %v938
    %v940 = vpop.f32.mrf.mxu0
    %v941 = vadd.f32 0.0, %v940
    %942 = vmatmul.bf16.gmra.mxu0 %v879
    %v943 = vpop.f32.mrf.mxu0
    %v944 = vadd.f32 0.0, %v943
    %v945 = vpop.f32.mrf.mxu0
    %v946 = vadd.f32 0.0, %v945
    %947 = vmatmul.bf16.gmra.mxu0 %v882
    %v948 = vpop.f32.mrf.mxu0
    %v949 = vadd.f32 0.0, %v948
    %v950 = vpop.f32.mrf.mxu0
    %v951 = vadd.f32 0.0, %v950
    %952 = vmatmul.bf16.gmra.mxu0 %v885
    %v953 = vpop.f32.mrf.mxu0
    %v954 = vadd.f32 0.0, %v953
    %v955 = vpop.f32.mrf.mxu0
    %v956 = vadd.f32 0.0, %v955
    %957 = vmatmul.bf16.gmra.mxu0 %v888
    %v958 = vpop.f32.mrf.mxu0
    %v959 = vadd.f32 0.0, %v958
    %v960 = vpop.f32.mrf.mxu0
    %v961 = vadd.f32 0.0, %v960
    %962 = vmatmul.bf16.gmra.mxu0 %v891
    %v963 = vpop.f32.mrf.mxu0
    %v964 = vadd.f32 0.0, %v963
    %v965 = vpop.f32.mrf.mxu0
    %v966 = vadd.f32 0.0, %v965
    %967 = vmatmul.bf16.gmra.mxu0 %v894
    %v968 = vpop.f32.mrf.mxu0
    %v969 = vadd.f32 0.0, %v968
    %v970 = vpop.f32.mrf.mxu0
    %v971 = vadd.f32 0.0, %v970
    %972 = vmatmul.bf16.gmra.mxu0 %v897
    %v973 = vpop.f32.mrf.mxu0
    %v974 = vadd.f32 0.0, %v973
    %v975 = vpop.f32.mrf.mxu0
    %v976 = vadd.f32 0.0, %v975
    %977 = vmatmul.bf16.gmra.mxu0 %v900
    %v978 = vpop.f32.mrf.mxu0
    %v979 = vadd.f32 0.0, %v978
    %v980 = vpop.f32.mrf.mxu0
    %v981 = vadd.f32 0.0, %v980
    %982 = vmatmul.bf16.gmra.mxu0 %v903
    %v983 = vpop.f32.mrf.mxu0
    %v984 = vadd.f32 0.0, %v983
    %v985 = vpop.f32.mrf.mxu0
    %v986 = vadd.f32 0.0, %v985
    %987 = vmatmul.bf16.gmra.mxu0 %v906
    %v988 = vpop.f32.mrf.mxu0
    %v989 = vadd.f32 0.0, %v988
    %v990 = vpop.f32.mrf.mxu0
    %v991 = vadd.f32 0.0, %v990
    %992 = vmatmul.bf16.gmra.mxu0 %v909
    %v993 = vpop.f32.mrf.mxu0
    %v994 = vadd.f32 0.0, %v993
    %v995 = vpop.f32.mrf.mxu0
    %v996 = vadd.f32 0.0, %v995
    %997 = vmatmul.bf16.gmra.mxu0 %v912
    %v998 = vpop.f32.mrf.mxu0
    %v999 = vadd.f32 0.0, %v998
    %v1000 = vpop.f32.mrf.mxu0
    %v1001 = vadd.f32 0.0, %v1000
    %1002 = vmatmul.bf16.gmra.mxu0 %v915
    %v1003 = vpop.f32.mrf.mxu0
    %v1004 = vadd.f32 0.0, %v1003
    %v1005 = vpop.f32.mrf.mxu0
    %v1006 = vadd.f32 0.0, %v1005
    %1007 = vmatmul.bf16.gmra.mxu0 %v918
    %v1008 = vpop.f32.mrf.mxu0
    %v1009 = vadd.f32 0.0, %v1008
    %v1010 = vpop.f32.mrf.mxu0
    %v1011 = vadd.f32 0.0, %v1010
    %1012 = vdwg.mxu0
    %v1014 = vsel %vm871, %v839, 0
    %v1017 = vsel %vm871, %v840, 0
    %v1020 = vsel %vm871, %v841, 0
    %v1023 = vsel %vm871, %v842, 0
    %v1026 = vsel %vm871, %v843, 0
    %v1029 = vsel %vm871, %v844, 0
    %v1032 = vsel %vm871, %v845, 0
    %v1035 = vsel %vm871, %v846, 0
    %v1038 = vsel %vm871, %v847, 0
    %v1041 = vsel %vm871, %v848, 0
    %v1044 = vsel %vm871, %v849, 0
    %v1047 = vsel %vm871, %v850, 0
    %v1050 = vsel %vm871, %v851, 0
    %v1053 = vsel %vm871, %v852, 0
    %v1056 = vsel %vm871, %v853, 0
    %v1059 = vsel %vm871, %v854, 0
    %v1062 = vsel %vm920, %v834, 0
    %1064 = vmatpush.bf16.msra.mxu0 0
    %1065 = vmatpush.bf16.msra.mxu0 0
    %1066 = vmatpush.bf16.msra.mxu0 0
    %1067 = vmatpush.bf16.msra.mxu0 0
    %1068 = vmatpush.bf16.msra.mxu0 0
    %1069 = vmatpush.bf16.msra.mxu0 0
    %1070 = vmatpush.bf16.msra.mxu0 0
    %1071 = vmatpush.bf16.msra.mxu0 %v1062
    %1072 = vmatmul.bf16.gmra.mxu0 %v1014
    %v1073 = vpop.f32.mrf.mxu0
    %v1074 = vadd.f32 %v934, %v1073
    %v1075 = vpop.f32.mrf.mxu0
    %v1076 = vadd.f32 %v936, %v1075
    %1077 = vmatmul.bf16.gmra.mxu0 %v1017
    %v1078 = vpop.f32.mrf.mxu0
    %v1079 = vadd.f32 %v939, %v1078
    %v1080 = vpop.f32.mrf.mxu0
    %v1081 = vadd.f32 %v941, %v1080
    %1082 = vmatmul.bf16.gmra.mxu0 %v1020
    %v1083 = vpop.f32.mrf.mxu0
    %v1084 = vadd.f32 %v944, %v1083
    %v1085 = vpop.f32.mrf.mxu0
    %v1086 = vadd.f32 %v946, %v1085
    %1087 = vmatmul.bf16.gmra.mxu0 %v1023
    %v1088 = vpop.f32.mrf.mxu0
    %v1089 = vadd.f32 %v949, %v1088
    %v1090 = vpop.f32.mrf.mxu0
    %v1091 = vadd.f32 %v951, %v1090
    %1092 = vmatmul.bf16.gmra.mxu0 %v1026
    %v1093 = vpop.f32.mrf.mxu0
    %v1094 = vadd.f32 %v954, %v1093
    %v1095 = vpop.f32.mrf.mxu0
    %v1096 = vadd.f32 %v956, %v1095
    %1097 = vmatmul.bf16.gmra.mxu0 %v1029
    %v1098 = vpop.f32.mrf.mxu0
    %v1099 = vadd.f32 %v959, %v1098
    %v1100 = vpop.f32.mrf.mxu0
    %v1101 = vadd.f32 %v961, %v1100
    %1102 = vmatmul.bf16.gmra.mxu0 %v1032
    %v1103 = vpop.f32.mrf.mxu0
    %v1104 = vadd.f32 %v964, %v1103
    %v1105 = vpop.f32.mrf.mxu0
    %v1106 = vadd.f32 %v966, %v1105
    %1107 = vmatmul.bf16.gmra.mxu0 %v1035
    %v1108 = vpop.f32.mrf.mxu0
    %v1109 = vadd.f32 %v969, %v1108
    %v1110 = vpop.f32.mrf.mxu0
    %v1111 = vadd.f32 %v971, %v1110
    %1112 = vmatmul.bf16.gmra.mxu0 %v1038
    %v1113 = vpop.f32.mrf.mxu0
    %v1114 = vadd.f32 %v974, %v1113
    %v1115 = vpop.f32.mrf.mxu0
    %v1116 = vadd.f32 %v976, %v1115
    %1117 = vmatmul.bf16.gmra.mxu0 %v1041
    %v1118 = vpop.f32.mrf.mxu0
    %v1119 = vadd.f32 %v979, %v1118
    %v1120 = vpop.f32.mrf.mxu0
    %v1121 = vadd.f32 %v981, %v1120
    %1122 = vmatmul.bf16.gmra.mxu0 %v1044
    %v1123 = vpop.f32.mrf.mxu0
    %v1124 = vadd.f32 %v984, %v1123
    %v1125 = vpop.f32.mrf.mxu0
    %v1126 = vadd.f32 %v986, %v1125
    %1127 = vmatmul.bf16.gmra.mxu0 %v1047
    %v1128 = vpop.f32.mrf.mxu0
    %v1129 = vadd.f32 %v989, %v1128
    %v1130 = vpop.f32.mrf.mxu0
    %v1131 = vadd.f32 %v991, %v1130
    %1132 = vmatmul.bf16.gmra.mxu0 %v1050
    %v1133 = vpop.f32.mrf.mxu0
    %v1134 = vadd.f32 %v994, %v1133
    %v1135 = vpop.f32.mrf.mxu0
    %v1136 = vadd.f32 %v996, %v1135
    %1137 = vmatmul.bf16.gmra.mxu0 %v1053
    %v1138 = vpop.f32.mrf.mxu0
    %v1139 = vadd.f32 %v999, %v1138
    %v1140 = vpop.f32.mrf.mxu0
    %v1141 = vadd.f32 %v1001, %v1140
    %1142 = vmatmul.bf16.gmra.mxu0 %v1056
    %v1143 = vpop.f32.mrf.mxu0
    %v1144 = vadd.f32 %v1004, %v1143
    %v1145 = vpop.f32.mrf.mxu0
    %v1146 = vadd.f32 %v1006, %v1145
    %1147 = vmatmul.bf16.gmra.mxu0 %v1059
    %v1148 = vpop.f32.mrf.mxu0
    %v1149 = vadd.f32 %v1009, %v1148
    %v1150 = vpop.f32.mrf.mxu0
    %v1151 = vadd.f32 %v1011, %v1150
    %1152 = vdwg.mxu0
    %v1153 = vpack.c.bf16 %v803, %v802
    %v1154 = vpack.c.bf16 %v805, %v804
    %v1155 = vpack.c.bf16 %v807, %v806
    %v1156 = vpack.c.bf16 %v809, %v808
    %v1157 = vpack.c.bf16 %v811, %v810
    %v1158 = vpack.c.bf16 %v813, %v812
    %v1159 = vpack.c.bf16 %v815, %v814
    %v1160 = vpack.c.bf16 %v817, %v816
    %v1161 = vpack.c.bf16 %v819, %v818
    %v1162 = vpack.c.bf16 %v821, %v820
    %v1163 = vpack.c.bf16 %v823, %v822
    %v1164 = vpack.c.bf16 %v825, %v824
    %v1165 = vpack.c.bf16 %v827, %v826
    %v1166 = vpack.c.bf16 %v829, %v828
    %v1167 = vpack.c.bf16 %v831, %v830
    %v1168 = vpack.c.bf16 %v833, %v832
    %v1170 = vsel %vm871, %v1153, 0
    %v1173 = vsel %vm871, %v1154, 0
    %v1176 = vsel %vm871, %v1155, 0
    %v1179 = vsel %vm871, %v1156, 0
    %v1182 = vsel %vm871, %v1157, 0
    %v1185 = vsel %vm871, %v1158, 0
    %v1188 = vsel %vm871, %v1159, 0
    %v1191 = vsel %vm871, %v1160, 0
    %v1194 = vsel %vm871, %v1161, 0
    %v1197 = vsel %vm871, %v1162, 0
    %v1200 = vsel %vm871, %v1163, 0
    %v1203 = vsel %vm871, %v1164, 0
    %v1206 = vsel %vm871, %v1165, 0
    %v1209 = vsel %vm871, %v1166, 0
    %v1212 = vsel %vm871, %v1167, 0
    %v1215 = vsel %vm871, %v1168, 0
    %v1218 = vsel %vm920, %v838, 0
    %1220 = vmatpush.bf16.msra.mxu0 0
    %1221 = vmatpush.bf16.msra.mxu0 0
    %1222 = vmatpush.bf16.msra.mxu0 0
    %1223 = vmatpush.bf16.msra.mxu0 0
    %1224 = vmatpush.bf16.msra.mxu0 0
    %1225 = vmatpush.bf16.msra.mxu0 0
    %1226 = vmatpush.bf16.msra.mxu0 0
    %1227 = vmatpush.bf16.msra.mxu0 %v1218
    %1228 = vmatmul.bf16.gmra.mxu0 %v1170
    %v1229 = vpop.f32.mrf.mxu0
    %v1230 = vadd.f32 0.0, %v1229
    %v1231 = vpop.f32.mrf.mxu0
    %v1232 = vadd.f32 0.0, %v1231
    %1233 = vmatmul.bf16.gmra.mxu0 %v1173
    %v1234 = vpop.f32.mrf.mxu0
    %v1235 = vadd.f32 0.0, %v1234
    %v1236 = vpop.f32.mrf.mxu0
    %v1237 = vadd.f32 0.0, %v1236
    %1238 = vmatmul.bf16.gmra.mxu0 %v1176
    %v1239 = vpop.f32.mrf.mxu0
    %v1240 = vadd.f32 0.0, %v1239
    %v1241 = vpop.f32.mrf.mxu0
    %v1242 = vadd.f32 0.0, %v1241
    %1243 = vmatmul.bf16.gmra.mxu0 %v1179
    %v1244 = vpop.f32.mrf.mxu0
    %v1245 = vadd.f32 0.0, %v1244
    %v1246 = vpop.f32.mrf.mxu0
    %v1247 = vadd.f32 0.0, %v1246
    %1248 = vmatmul.bf16.gmra.mxu0 %v1182
    %v1249 = vpop.f32.mrf.mxu0
    %v1250 = vadd.f32 0.0, %v1249
    %v1251 = vpop.f32.mrf.mxu0
    %v1252 = vadd.f32 0.0, %v1251
    %1253 = vmatmul.bf16.gmra.mxu0 %v1185
    %v1254 = vpop.f32.mrf.mxu0
    %v1255 = vadd.f32 0.0, %v1254
    %v1256 = vpop.f32.mrf.mxu0
    %v1257 = vadd.f32 0.0, %v1256
    %1258 = vmatmul.bf16.gmra.mxu0 %v1188
    %v1259 = vpop.f32.mrf.mxu0
    %v1260 = vadd.f32 0.0, %v1259
    %v1261 = vpop.f32.mrf.mxu0
    %v1262 = vadd.f32 0.0, %v1261
    %1263 = vmatmul.bf16.gmra.mxu0 %v1191
    %v1264 = vpop.f32.mrf.mxu0
    %v1265 = vadd.f32 0.0, %v1264
    %v1266 = vpop.f32.mrf.mxu0
    %v1267 = vadd.f32 0.0, %v1266
    %1268 = vmatmul.bf16.gmra.mxu0 %v1194
    %v1269 = vpop.f32.mrf.mxu0
    %v1270 = vadd.f32 0.0, %v1269
    %v1271 = vpop.f32.mrf.mxu0
    %v1272 = vadd.f32 0.0, %v1271
    %1273 = vmatmul.bf16.gmra.mxu0 %v1197
    %v1274 = vpop.f32.mrf.mxu0
    %v1275 = vadd.f32 0.0, %v1274
    %v1276 = vpop.f32.mrf.mxu0
    %v1277 = vadd.f32 0.0, %v1276
    %1278 = vmatmul.bf16.gmra.mxu0 %v1200
    %v1279 = vpop.f32.mrf.mxu0
    %v1280 = vadd.f32 0.0, %v1279
    %v1281 = vpop.f32.mrf.mxu0
    %v1282 = vadd.f32 0.0, %v1281
    %1283 = vmatmul.bf16.gmra.mxu0 %v1203
    %v1284 = vpop.f32.mrf.mxu0
    %v1285 = vadd.f32 0.0, %v1284
    %v1286 = vpop.f32.mrf.mxu0
    %v1287 = vadd.f32 0.0, %v1286
    %1288 = vmatmul.bf16.gmra.mxu0 %v1206
    %v1289 = vpop.f32.mrf.mxu0
    %v1290 = vadd.f32 0.0, %v1289
    %v1291 = vpop.f32.mrf.mxu0
    %v1292 = vadd.f32 0.0, %v1291
    %1293 = vmatmul.bf16.gmra.mxu0 %v1209
    %v1294 = vpop.f32.mrf.mxu0
    %v1295 = vadd.f32 0.0, %v1294
    %v1296 = vpop.f32.mrf.mxu0
    %v1297 = vadd.f32 0.0, %v1296
    %1298 = vmatmul.bf16.gmra.mxu0 %v1212
    %v1299 = vpop.f32.mrf.mxu0
    %v1300 = vadd.f32 0.0, %v1299
    %v1301 = vpop.f32.mrf.mxu0
    %v1302 = vadd.f32 0.0, %v1301
    %1303 = vmatmul.bf16.gmra.mxu0 %v1215
    %v1304 = vpop.f32.mrf.mxu0
    %v1305 = vadd.f32 0.0, %v1304
    %v1306 = vpop.f32.mrf.mxu0
    %v1307 = vadd.f32 0.0, %v1306
    %1308 = vdwg.mxu0
    %v1309 = vadd.f32 %v1074, %v1230
    %v1310 = vadd.f32 %v1076, %v1232
    %v1311 = vadd.f32 %v1079, %v1235
    %v1312 = vadd.f32 %v1081, %v1237
    %v1313 = vadd.f32 %v1084, %v1240
    %v1314 = vadd.f32 %v1086, %v1242
    %v1315 = vadd.f32 %v1089, %v1245
    %v1316 = vadd.f32 %v1091, %v1247
    %v1317 = vadd.f32 %v1094, %v1250
    %v1318 = vadd.f32 %v1096, %v1252
    %v1319 = vadd.f32 %v1099, %v1255
    %v1320 = vadd.f32 %v1101, %v1257
    %v1321 = vadd.f32 %v1104, %v1260
    %v1322 = vadd.f32 %v1106, %v1262
    %v1323 = vadd.f32 %v1109, %v1265
    %v1324 = vadd.f32 %v1111, %v1267
    %v1325 = vadd.f32 %v1114, %v1270
    %v1326 = vadd.f32 %v1116, %v1272
    %v1327 = vadd.f32 %v1119, %v1275
    %v1328 = vadd.f32 %v1121, %v1277
    %v1329 = vadd.f32 %v1124, %v1280
    %v1330 = vadd.f32 %v1126, %v1282
    %v1331 = vadd.f32 %v1129, %v1285
    %v1332 = vadd.f32 %v1131, %v1287
    %v1333 = vadd.f32 %v1134, %v1290
    %v1334 = vadd.f32 %v1136, %v1292
    %v1335 = vadd.f32 %v1139, %v1295
    %v1336 = vadd.f32 %v1141, %v1297
    %v1337 = vadd.f32 %v1144, %v1300
    %v1338 = vadd.f32 %v1146, %v1302
    %v1339 = vadd.f32 %v1149, %v1305
    %v1340 = vadd.f32 %v1151, %v1307
    %v1341 = vld [vmem:[%s3] sm:$0x1]
    %v1343 = vperm.slane %v1341, 0
    %v1345 = vadd.f32 %v1309, %v1343
    %v1346 = vadd.f32 %v1310, %v1343
    %v1347 = vadd.f32 %v1311, %v1343
    %v1348 = vadd.f32 %v1312, %v1343
    %v1349 = vadd.f32 %v1313, %v1343
    %v1350 = vadd.f32 %v1314, %v1343
    %v1351 = vadd.f32 %v1315, %v1343
    %v1352 = vadd.f32 %v1316, %v1343
    %v1353 = vadd.f32 %v1317, %v1343
    %v1354 = vadd.f32 %v1318, %v1343
    %v1355 = vadd.f32 %v1319, %v1343
    %v1356 = vadd.f32 %v1320, %v1343
    %v1357 = vadd.f32 %v1321, %v1343
    %v1358 = vadd.f32 %v1322, %v1343
    %v1359 = vadd.f32 %v1323, %v1343
    %v1360 = vadd.f32 %v1324, %v1343
    %v1361 = vadd.f32 %v1325, %v1343
    %v1362 = vadd.f32 %v1326, %v1343
    %v1363 = vadd.f32 %v1327, %v1343
    %v1364 = vadd.f32 %v1328, %v1343
    %v1365 = vadd.f32 %v1329, %v1343
    %v1366 = vadd.f32 %v1330, %v1343
    %v1367 = vadd.f32 %v1331, %v1343
    %v1368 = vadd.f32 %v1332, %v1343
    %v1369 = vadd.f32 %v1333, %v1343
    %v1370 = vadd.f32 %v1334, %v1343
    %v1371 = vadd.f32 %v1335, %v1343
    %v1372 = vadd.f32 %v1336, %v1343
    %v1373 = vadd.f32 %v1337, %v1343
    %v1374 = vadd.f32 %v1338, %v1343
    %v1375 = vadd.f32 %v1339, %v1343
    %v1376 = vadd.f32 %v1340, %v1343
    %v1377 = vmax.f32 %v1345, 0.0
    %v1378 = vmax.f32 %v1346, 0.0
    %v1379 = vmax.f32 %v1347, 0.0
    %v1380 = vmax.f32 %v1348, 0.0
    %v1381 = vmax.f32 %v1349, 0.0
    %v1382 = vmax.f32 %v1350, 0.0
    %v1383 = vmax.f32 %v1351, 0.0
    %v1384 = vmax.f32 %v1352, 0.0
    %v1385 = vmax.f32 %v1353, 0.0
    %v1386 = vmax.f32 %v1354, 0.0
    %v1387 = vmax.f32 %v1355, 0.0
    %v1388 = vmax.f32 %v1356, 0.0
    %v1389 = vmax.f32 %v1357, 0.0
    %v1390 = vmax.f32 %v1358, 0.0
    %v1391 = vmax.f32 %v1359, 0.0
    %v1392 = vmax.f32 %v1360, 0.0
    %v1393 = vmax.f32 %v1361, 0.0
    %v1394 = vmax.f32 %v1362, 0.0
    %v1395 = vmax.f32 %v1363, 0.0
    %v1396 = vmax.f32 %v1364, 0.0
    %v1397 = vmax.f32 %v1365, 0.0
    %v1398 = vmax.f32 %v1366, 0.0
    %v1399 = vmax.f32 %v1367, 0.0
    %v1400 = vmax.f32 %v1368, 0.0
    %v1401 = vmax.f32 %v1369, 0.0
    %v1402 = vmax.f32 %v1370, 0.0
    %v1403 = vmax.f32 %v1371, 0.0
    %v1404 = vmax.f32 %v1372, 0.0
    %v1405 = vmax.f32 %v1373, 0.0
    %v1406 = vmax.f32 %v1374, 0.0
    %v1407 = vmax.f32 %v1375, 0.0
    %v1408 = vmax.f32 %v1376, 0.0
    %v1441 = vrot.slane %v1377, 1
    %v1442 = vrot.slane %v1378, 1
    %v1443 = vsel %vm609, %v1441, %v1442
    %v1444 = vrot.slane %v1379, 1
    %v1445 = vsel %vm609, %v1442, %v1444
    %v1446 = vrot.slane %v1380, 1
    %v1447 = vsel %vm609, %v1444, %v1446
    %v1448 = vrot.slane %v1381, 1
    %v1449 = vsel %vm609, %v1446, %v1448
    %v1450 = vrot.slane %v1382, 1
    %v1451 = vsel %vm609, %v1448, %v1450
    %v1452 = vrot.slane %v1383, 1
    %v1453 = vsel %vm609, %v1450, %v1452
    %v1454 = vrot.slane %v1384, 1
    %v1455 = vsel %vm609, %v1452, %v1454
    %v1456 = vrot.slane %v1385, 1
    %v1457 = vsel %vm609, %v1454, %v1456
    %v1458 = vrot.slane %v1386, 1
    %v1459 = vsel %vm609, %v1456, %v1458
    %v1460 = vrot.slane %v1387, 1
    %v1461 = vsel %vm609, %v1458, %v1460
    %v1462 = vrot.slane %v1388, 1
    %v1463 = vsel %vm609, %v1460, %v1462
    %v1464 = vrot.slane %v1389, 1
    %v1465 = vsel %vm609, %v1462, %v1464
    %v1466 = vrot.slane %v1390, 1
    %v1467 = vsel %vm609, %v1464, %v1466
    %v1468 = vrot.slane %v1391, 1
    %v1469 = vsel %vm609, %v1466, %v1468
    %v1470 = vrot.slane %v1392, 1
    %v1471 = vsel %vm609, %v1468, %v1470
    %v1472 = vrot.slane %v1393, 1
    %v1473 = vsel %vm609, %v1470, %v1472
    %v1474 = vrot.slane %v1394, 1
    %v1475 = vsel %vm609, %v1472, %v1474
    %v1476 = vrot.slane %v1395, 1
    %v1477 = vsel %vm609, %v1474, %v1476
    %v1478 = vrot.slane %v1396, 1
    %v1479 = vsel %vm609, %v1476, %v1478
    %v1480 = vrot.slane %v1397, 1
    %v1481 = vsel %vm609, %v1478, %v1480
    %v1482 = vrot.slane %v1398, 1
    %v1483 = vsel %vm609, %v1480, %v1482
    %v1484 = vrot.slane %v1399, 1
    %v1485 = vsel %vm609, %v1482, %v1484
    %v1486 = vrot.slane %v1400, 1
    %v1487 = vsel %vm609, %v1484, %v1486
    %v1488 = vrot.slane %v1401, 1
    %v1489 = vsel %vm609, %v1486, %v1488
    %v1490 = vrot.slane %v1402, 1
    %v1491 = vsel %vm609, %v1488, %v1490
    %v1492 = vrot.slane %v1403, 1
    %v1493 = vsel %vm609, %v1490, %v1492
    %v1494 = vrot.slane %v1404, 1
    %v1495 = vsel %vm609, %v1492, %v1494
    %v1496 = vrot.slane %v1405, 1
    %v1497 = vsel %vm609, %v1494, %v1496
    %v1498 = vrot.slane %v1406, 1
    %v1499 = vsel %vm609, %v1496, %v1498
    %v1500 = vrot.slane %v1407, 1
    %v1501 = vsel %vm609, %v1498, %v1500
    %v1502 = vrot.slane %v1408, 1
    %v1503 = vsel %vm609, %v1500, %v1502
    %v1536 = vsel %vm609, %v1502, 0.0
    %v1537 = vmax.f32 %v1377, %v1443
    %v1538 = vmax.f32 %v1378, %v1445
    %v1539 = vmax.f32 %v1379, %v1447
    %v1540 = vmax.f32 %v1380, %v1449
    %v1541 = vmax.f32 %v1381, %v1451
    %v1542 = vmax.f32 %v1382, %v1453
    %v1543 = vmax.f32 %v1383, %v1455
    %v1544 = vmax.f32 %v1384, %v1457
    %v1545 = vmax.f32 %v1385, %v1459
    %v1546 = vmax.f32 %v1386, %v1461
    %v1547 = vmax.f32 %v1387, %v1463
    %v1548 = vmax.f32 %v1388, %v1465
    %v1549 = vmax.f32 %v1389, %v1467
    %v1550 = vmax.f32 %v1390, %v1469
    %v1551 = vmax.f32 %v1391, %v1471
    %v1552 = vmax.f32 %v1392, %v1473
    %v1553 = vmax.f32 %v1393, %v1475
    %v1554 = vmax.f32 %v1394, %v1477
    %v1555 = vmax.f32 %v1395, %v1479
    %v1556 = vmax.f32 %v1396, %v1481
    %v1557 = vmax.f32 %v1397, %v1483
    %v1558 = vmax.f32 %v1398, %v1485
    %v1559 = vmax.f32 %v1399, %v1487
    %v1560 = vmax.f32 %v1400, %v1489
    %v1561 = vmax.f32 %v1401, %v1491
    %v1562 = vmax.f32 %v1402, %v1493
    %v1563 = vmax.f32 %v1403, %v1495
    %v1564 = vmax.f32 %v1404, %v1497
    %v1565 = vmax.f32 %v1405, %v1499
    %v1566 = vmax.f32 %v1406, %v1501
    %v1567 = vmax.f32 %v1407, %v1503
    %v1568 = vmax.f32 %v1408, %v1536
    %vm1601 = vcmask 1041408
    %v1602 = vrot.slane %v1537, 6
    %v1603 = vrot.slane %v1538, 6
    %v1604 = vsel %vm1601, %v1602, %v1603
    %v1605 = vrot.slane %v1539, 6
    %v1606 = vsel %vm1601, %v1603, %v1605
    %v1607 = vrot.slane %v1540, 6
    %v1608 = vsel %vm1601, %v1605, %v1607
    %v1609 = vrot.slane %v1541, 6
    %v1610 = vsel %vm1601, %v1607, %v1609
    %v1611 = vrot.slane %v1542, 6
    %v1612 = vsel %vm1601, %v1609, %v1611
    %v1613 = vrot.slane %v1543, 6
    %v1614 = vsel %vm1601, %v1611, %v1613
    %v1615 = vrot.slane %v1544, 6
    %v1616 = vsel %vm1601, %v1613, %v1615
    %v1617 = vrot.slane %v1545, 6
    %v1618 = vsel %vm1601, %v1615, %v1617
    %v1619 = vrot.slane %v1546, 6
    %v1620 = vsel %vm1601, %v1617, %v1619
    %v1621 = vrot.slane %v1547, 6
    %v1622 = vsel %vm1601, %v1619, %v1621
    %v1623 = vrot.slane %v1548, 6
    %v1624 = vsel %vm1601, %v1621, %v1623
    %v1625 = vrot.slane %v1549, 6
    %v1626 = vsel %vm1601, %v1623, %v1625
    %v1627 = vrot.slane %v1550, 6
    %v1628 = vsel %vm1601, %v1625, %v1627
    %v1629 = vrot.slane %v1551, 6
    %v1630 = vsel %vm1601, %v1627, %v1629
    %v1631 = vrot.slane %v1552, 6
    %v1632 = vsel %vm1601, %v1629, %v1631
    %v1633 = vrot.slane %v1553, 6
    %v1634 = vsel %vm1601, %v1631, %v1633
    %v1635 = vrot.slane %v1554, 6
    %v1636 = vsel %vm1601, %v1633, %v1635
    %v1637 = vrot.slane %v1555, 6
    %v1638 = vsel %vm1601, %v1635, %v1637
    %v1639 = vrot.slane %v1556, 6
    %v1640 = vsel %vm1601, %v1637, %v1639
    %v1641 = vrot.slane %v1557, 6
    %v1642 = vsel %vm1601, %v1639, %v1641
    %v1643 = vrot.slane %v1558, 6
    %v1644 = vsel %vm1601, %v1641, %v1643
    %v1645 = vrot.slane %v1559, 6
    %v1646 = vsel %vm1601, %v1643, %v1645
    %v1647 = vrot.slane %v1560, 6
    %v1648 = vsel %vm1601, %v1645, %v1647
    %v1649 = vrot.slane %v1561, 6
    %v1650 = vsel %vm1601, %v1647, %v1649
    %v1651 = vrot.slane %v1562, 6
    %v1652 = vsel %vm1601, %v1649, %v1651
    %v1653 = vrot.slane %v1563, 6
    %v1654 = vsel %vm1601, %v1651, %v1653
    %v1655 = vrot.slane %v1564, 6
    %v1656 = vsel %vm1601, %v1653, %v1655
    %v1657 = vrot.slane %v1565, 6
    %v1658 = vsel %vm1601, %v1655, %v1657
    %v1659 = vrot.slane %v1566, 6
    %v1660 = vsel %vm1601, %v1657, %v1659
    %v1661 = vrot.slane %v1567, 6
    %v1662 = vsel %vm1601, %v1659, %v1661
    %v1663 = vrot.slane %v1568, 6
    %v1664 = vsel %vm1601, %v1661, %v1663
    %v1697 = vsel %vm1601, 0.0, %v1602
    %vm1698 = vcmask 1045504
    %v1699 = vrot.slane %v1537, 2
    %v1700 = vrot.slane %v1538, 2
    %v1701 = vsel %vm1698, %v1699, %v1700
    %v1702 = vrot.slane %v1539, 2
    %v1703 = vsel %vm1698, %v1700, %v1702
    %v1704 = vrot.slane %v1540, 2
    %v1705 = vsel %vm1698, %v1702, %v1704
    %v1706 = vrot.slane %v1541, 2
    %v1707 = vsel %vm1698, %v1704, %v1706
    %v1708 = vrot.slane %v1542, 2
    %v1709 = vsel %vm1698, %v1706, %v1708
    %v1710 = vrot.slane %v1543, 2
    %v1711 = vsel %vm1698, %v1708, %v1710
    %v1712 = vrot.slane %v1544, 2
    %v1713 = vsel %vm1698, %v1710, %v1712
    %v1714 = vrot.slane %v1545, 2
    %v1715 = vsel %vm1698, %v1712, %v1714
    %v1716 = vrot.slane %v1546, 2
    %v1717 = vsel %vm1698, %v1714, %v1716
    %v1718 = vrot.slane %v1547, 2
    %v1719 = vsel %vm1698, %v1716, %v1718
    %v1720 = vrot.slane %v1548, 2
    %v1721 = vsel %vm1698, %v1718, %v1720
    %v1722 = vrot.slane %v1549, 2
    %v1723 = vsel %vm1698, %v1720, %v1722
    %v1724 = vrot.slane %v1550, 2
    %v1725 = vsel %vm1698, %v1722, %v1724
    %v1726 = vrot.slane %v1551, 2
    %v1727 = vsel %vm1698, %v1724, %v1726
    %v1728 = vrot.slane %v1552, 2
    %v1729 = vsel %vm1698, %v1726, %v1728
    %v1730 = vrot.slane %v1553, 2
    %v1731 = vsel %vm1698, %v1728, %v1730
    %v1732 = vrot.slane %v1554, 2
    %v1733 = vsel %vm1698, %v1730, %v1732
    %v1734 = vrot.slane %v1555, 2
    %v1735 = vsel %vm1698, %v1732, %v1734
    %v1736 = vrot.slane %v1556, 2
    %v1737 = vsel %vm1698, %v1734, %v1736
    %v1738 = vrot.slane %v1557, 2
    %v1739 = vsel %vm1698, %v1736, %v1738
    %v1740 = vrot.slane %v1558, 2
    %v1741 = vsel %vm1698, %v1738, %v1740
    %v1742 = vrot.slane %v1559, 2
    %v1743 = vsel %vm1698, %v1740, %v1742
    %v1744 = vrot.slane %v1560, 2
    %v1745 = vsel %vm1698, %v1742, %v1744
    %v1746 = vrot.slane %v1561, 2
    %v1747 = vsel %vm1698, %v1744, %v1746
    %v1748 = vrot.slane %v1562, 2
    %v1749 = vsel %vm1698, %v1746, %v1748
    %v1750 = vrot.slane %v1563, 2
    %v1751 = vsel %vm1698, %v1748, %v1750
    %v1752 = vrot.slane %v1564, 2
    %v1753 = vsel %vm1698, %v1750, %v1752
    %v1754 = vrot.slane %v1565, 2
    %v1755 = vsel %vm1698, %v1752, %v1754
    %v1756 = vrot.slane %v1566, 2
    %v1757 = vsel %vm1698, %v1754, %v1756
    %v1758 = vrot.slane %v1567, 2
    %v1759 = vsel %vm1698, %v1756, %v1758
    %v1760 = vrot.slane %v1568, 2
    %v1761 = vsel %vm1698, %v1758, %v1760
    %v1794 = vsel %vm1698, %v1760, 0.0
    %v1795 = vsel %vm706, 0.0, %v1697
    %v1796 = vsel %vm707, 0.0, %v1604
    %v1797 = vsel %vm708, 0.0, %v1606
    %v1798 = vsel %vm709, 0.0, %v1608
    %v1799 = vsel %vm710, 0.0, %v1610
    %v1800 = vsel %vm711, 0.0, %v1612
    %v1801 = vsel %vm712, 0.0, %v1614
    %v1802 = vsel %vm713, 0.0, %v1616
    %v1803 = vsel %vm714, 0.0, %v1618
    %v1804 = vsel %vm715, 0.0, %v1620
    %v1805 = vsel %vm716, 0.0, %v1622
    %v1806 = vsel %vm717, 0.0, %v1624
    %v1807 = vsel %vm718, 0.0, %v1626
    %v1808 = vsel %vm719, 0.0, %v1628
    %v1809 = vsel %vm720, 0.0, %v1630
    %v1810 = vsel %vm721, 0.0, %v1632
    %v1811 = vsel %vm722, 0.0, %v1634
    %v1812 = vsel %vm723, 0.0, %v1636
    %v1813 = vsel %vm724, 0.0, %v1638
    %v1814 = vsel %vm725, 0.0, %v1640
    %v1815 = vsel %vm726, 0.0, %v1642
    %v1816 = vsel %vm727, 0.0, %v1644
    %v1817 = vsel %vm728, 0.0, %v1646
    %v1818 = vsel %vm729, 0.0, %v1648
    %v1819 = vsel %vm730, 0.0, %v1650
    %v1820 = vsel %vm731, 0.0, %v1652
    %v1821 = vsel %vm732, 0.0, %v1654
    %v1822 = vsel %vm733, 0.0, %v1656
    %v1823 = vsel %vm734, 0.0, %v1658
    %v1824 = vsel %vm735, 0.0, %v1660
    %v1825 = vsel %vm736, 0.0, %v1662
    %v1826 = vsel %vm737, 0.0, %v1664
    %vm1827 = vcmp.eq.s32.totalorder %v416, 126
    %vm1828 = vcmp.eq.s32.totalorder %v417, 126
    %vm1829 = vcmp.eq.s32.totalorder %v418, 126
    %vm1830 = vcmp.eq.s32.totalorder %v419, 126
    %vm1831 = vcmp.eq.s32.totalorder %v420, 126
    %vm1832 = vcmp.eq.s32.totalorder %v421, 126
    %vm1833 = vcmp.eq.s32.totalorder %v422, 126
    %vm1834 = vcmp.eq.s32.totalorder %v423, 126
    %vm1835 = vcmp.eq.s32.totalorder %v424, 126
    %vm1836 = vcmp.eq.s32.totalorder %v425, 126
    %vm1837 = vcmp.eq.s32.totalorder %v426, 126
    %vm1838 = vcmp.eq.s32.totalorder %v427, 126
    %vm1839 = vcmp.eq.s32.totalorder %v428, 126
    %vm1840 = vcmp.eq.s32.totalorder %v429, 126
    %vm1841 = vcmp.eq.s32.totalorder %v430, 126
    %vm1842 = vcmp.eq.s32.totalorder %v431, 126
    %vm1843 = vcmp.eq.s32.totalorder %v432, 126
    %vm1844 = vcmp.eq.s32.totalorder %v433, 126
    %vm1845 = vcmp.eq.s32.totalorder %v434, 126
    %vm1846 = vcmp.eq.s32.totalorder %v435, 126
    %vm1847 = vcmp.eq.s32.totalorder %v436, 126
    %vm1848 = vcmp.eq.s32.totalorder %v437, 126
    %vm1849 = vcmp.eq.s32.totalorder %v438, 126
    %vm1850 = vcmp.eq.s32.totalorder %v439, 126
    %vm1851 = vcmp.eq.s32.totalorder %v440, 126
    %vm1852 = vcmp.eq.s32.totalorder %v441, 126
    %vm1853 = vcmp.eq.s32.totalorder %v442, 126
    %vm1854 = vcmp.eq.s32.totalorder %v443, 126
    %vm1855 = vcmp.eq.s32.totalorder %v444, 126
    %vm1856 = vcmp.eq.s32.totalorder %v445, 126
    %vm1857 = vcmp.eq.s32.totalorder %v446, 126
    %vm1858 = vcmp.eq.s32.totalorder %v447, 126
    %v1859 = vsel %vm1827, 0.0, %v1701
    %v1860 = vsel %vm1828, 0.0, %v1703
    %v1861 = vsel %vm1829, 0.0, %v1705
    %v1862 = vsel %vm1830, 0.0, %v1707
    %v1863 = vsel %vm1831, 0.0, %v1709
    %v1864 = vsel %vm1832, 0.0, %v1711
    %v1865 = vsel %vm1833, 0.0, %v1713
    %v1866 = vsel %vm1834, 0.0, %v1715
    %v1867 = vsel %vm1835, 0.0, %v1717
    %v1868 = vsel %vm1836, 0.0, %v1719
    %v1869 = vsel %vm1837, 0.0, %v1721
    %v1870 = vsel %vm1838, 0.0, %v1723
    %v1871 = vsel %vm1839, 0.0, %v1725
    %v1872 = vsel %vm1840, 0.0, %v1727
    %v1873 = vsel %vm1841, 0.0, %v1729
    %v1874 = vsel %vm1842, 0.0, %v1731
    %v1875 = vsel %vm1843, 0.0, %v1733
    %v1876 = vsel %vm1844, 0.0, %v1735
    %v1877 = vsel %vm1845, 0.0, %v1737
    %v1878 = vsel %vm1846, 0.0, %v1739
    %v1879 = vsel %vm1847, 0.0, %v1741
    %v1880 = vsel %vm1848, 0.0, %v1743
    %v1881 = vsel %vm1849, 0.0, %v1745
    %v1882 = vsel %vm1850, 0.0, %v1747
    %v1883 = vsel %vm1851, 0.0, %v1749
    %v1884 = vsel %vm1852, 0.0, %v1751
    %v1885 = vsel %vm1853, 0.0, %v1753
    %v1886 = vsel %vm1854, 0.0, %v1755
    %v1887 = vsel %vm1855, 0.0, %v1757
    %v1888 = vsel %vm1856, 0.0, %v1759
    %v1889 = vsel %vm1857, 0.0, %v1761
    %v1890 = vsel %vm1858, 0.0, %v1794
    %v1891 = vld [vmem:[%s2] sm:$0xf]
    %v1892 = vld [vmem:[%s2 + $0x4] sm:$0xf]
    %v1893 = vld [vmem:[%s2 + $0x8] sm:$0xf]
    %v1894 = vld [vmem:[%s2 + $0xc] sm:$0xf]
    %v1895 = vld [vmem:[%s2 + $0x10] sm:$0xf]
    %v1896 = vld [vmem:[%s2 + $0x14] sm:$0xf]
    %v1897 = vld [vmem:[%s2 + $0x18] sm:$0xf]
    %v1898 = vld [vmem:[%s2 + $0x1c] sm:$0xf]
    %s1899 = scalar_lea.vmem %s2, 32
    %v1900 = vld [vmem:[%s1899] sm:$0xf]
    %v1901 = vld [vmem:[%s1899 + $0x4] sm:$0xf]
    %v1902 = vld [vmem:[%s1899 + $0x8] sm:$0xf]
    %v1903 = vld [vmem:[%s1899 + $0xc] sm:$0xf]
    %v1904 = vld [vmem:[%s1899 + $0x10] sm:$0xf]
    %v1905 = vld [vmem:[%s1899 + $0x14] sm:$0xf]
    %v1906 = vld [vmem:[%s1899 + $0x18] sm:$0xf]
    %v1907 = vld [vmem:[%s1899 + $0x1c] sm:$0xf]
    %s1908 = scalar_lea.vmem %s2, 64
    %v1909 = vld [vmem:[%s1908] sm:$0xf]
    %v1910 = vld [vmem:[%s1908 + $0x4] sm:$0xf]
    %v1911 = vld [vmem:[%s1908 + $0x8] sm:$0xf]
    %v1912 = vld [vmem:[%s1908 + $0xc] sm:$0xf]
    %v1913 = vld [vmem:[%s1908 + $0x10] sm:$0xf]
    %v1914 = vld [vmem:[%s1908 + $0x14] sm:$0xf]
    %v1915 = vld [vmem:[%s1908 + $0x18] sm:$0xf]
    %v1916 = vld [vmem:[%s1908 + $0x1c] sm:$0xf]
    %v1917 = vpack.c.bf16 %v1796, %v1795
    %v1918 = vpack.c.bf16 %v1798, %v1797
    %v1919 = vpack.c.bf16 %v1800, %v1799
    %v1920 = vpack.c.bf16 %v1802, %v1801
    %v1921 = vpack.c.bf16 %v1804, %v1803
    %v1922 = vpack.c.bf16 %v1806, %v1805
    %v1923 = vpack.c.bf16 %v1808, %v1807
    %v1924 = vpack.c.bf16 %v1810, %v1809
    %v1925 = vpack.c.bf16 %v1812, %v1811
    %v1926 = vpack.c.bf16 %v1814, %v1813
    %v1927 = vpack.c.bf16 %v1816, %v1815
    %v1928 = vpack.c.bf16 %v1818, %v1817
    %v1929 = vpack.c.bf16 %v1820, %v1819
    %v1930 = vpack.c.bf16 %v1822, %v1821
    %v1931 = vpack.c.bf16 %v1824, %v1823
    %v1932 = vpack.c.bf16 %v1826, %v1825
    %v1933 = vpack.c.bf16 %v1538, %v1537
    %v1934 = vpack.c.bf16 %v1540, %v1539
    %v1935 = vpack.c.bf16 %v1542, %v1541
    %v1936 = vpack.c.bf16 %v1544, %v1543
    %v1937 = vpack.c.bf16 %v1546, %v1545
    %v1938 = vpack.c.bf16 %v1548, %v1547
    %v1939 = vpack.c.bf16 %v1550, %v1549
    %v1940 = vpack.c.bf16 %v1552, %v1551
    %v1941 = vpack.c.bf16 %v1554, %v1553
    %v1942 = vpack.c.bf16 %v1556, %v1555
    %v1943 = vpack.c.bf16 %v1558, %v1557
    %v1944 = vpack.c.bf16 %v1560, %v1559
    %v1945 = vpack.c.bf16 %v1562, %v1561
    %v1946 = vpack.c.bf16 %v1564, %v1563
    %v1947 = vpack.c.bf16 %v1566, %v1565
    %v1948 = vpack.c.bf16 %v1568, %v1567
    %v1957 = vunpack.c.l.b16 %v1900
    %v1958 = vunpack.c.l.b16 %v1901
    %v1959 = vunpack.c.l.b16 %v1902
    %v1960 = vunpack.c.l.b16 %v1903
    %v1961 = vunpack.c.l.b16 %v1904
    %v1962 = vunpack.c.l.b16 %v1905
    %v1963 = vunpack.c.l.b16 %v1906
    %v1964 = vunpack.c.l.b16 %v1907
    %v1965 = vpack.c.b16 %v1958, %v1957
    %v1966 = vpack.c.b16 %v1960, %v1959
    %v1967 = vpack.c.b16 %v1962, %v1961
    %v1968 = vpack.c.b16 %v1964, %v1963
    %vm1973 = vcmask 523264
    %v1975 = vsel %vm1973, %v1933, 0
    %v1978 = vsel %vm1973, %v1934, 0
    %v1981 = vsel %vm1973, %v1935, 0
    %v1984 = vsel %vm1973, %v1936, 0
    %v1987 = vsel %vm1973, %v1937, 0
    %v1990 = vsel %vm1973, %v1938, 0
    %v1993 = vsel %vm1973, %v1939, 0
    %v1996 = vsel %vm1973, %v1940, 0
    %v1999 = vsel %vm1973, %v1941, 0
    %v2002 = vsel %vm1973, %v1942, 0
    %v2005 = vsel %vm1973, %v1943, 0
    %v2008 = vsel %vm1973, %v1944, 0
    %v2011 = vsel %vm1973, %v1945, 0
    %v2014 = vsel %vm1973, %v1946, 0
    %v2017 = vsel %vm1973, %v1947, 0
    %v2020 = vsel %vm1973, %v1948, 0
    %2022 = vmatpush.bf16.msra.mxu0 0
    %2023 = vmatpush.bf16.msra.mxu0 0
    %2024 = vmatpush.bf16.msra.mxu0 0
    %2025 = vmatpush.bf16.msra.mxu0 0
    %2026 = vmatpush.bf16.msra.mxu0 %v1968
    %2027 = vmatpush.bf16.msra.mxu0 %v1967
    %2028 = vmatpush.bf16.msra.mxu0 %v1966
    %2029 = vmatpush.bf16.msra.mxu0 %v1965
    %2030 = vmatmul.bf16.gmra.mxu0 %v1975
    %v2031 = vpop.f32.mrf.mxu0
    %v2032 = vadd.f32 0.0, %v2031
    %v2033 = vpop.f32.mrf.mxu0
    %v2034 = vadd.f32 0.0, %v2033
    %2035 = vmatmul.bf16.gmra.mxu0 %v1978
    %v2036 = vpop.f32.mrf.mxu0
    %v2037 = vadd.f32 0.0, %v2036
    %v2038 = vpop.f32.mrf.mxu0
    %v2039 = vadd.f32 0.0, %v2038
    %2040 = vmatmul.bf16.gmra.mxu0 %v1981
    %v2041 = vpop.f32.mrf.mxu0
    %v2042 = vadd.f32 0.0, %v2041
    %v2043 = vpop.f32.mrf.mxu0
    %v2044 = vadd.f32 0.0, %v2043
    %2045 = vmatmul.bf16.gmra.mxu0 %v1984
    %v2046 = vpop.f32.mrf.mxu0
    %v2047 = vadd.f32 0.0, %v2046
    %v2048 = vpop.f32.mrf.mxu0
    %v2049 = vadd.f32 0.0, %v2048
    %2050 = vmatmul.bf16.gmra.mxu0 %v1987
    %v2051 = vpop.f32.mrf.mxu0
    %v2052 = vadd.f32 0.0, %v2051
    %v2053 = vpop.f32.mrf.mxu0
    %v2054 = vadd.f32 0.0, %v2053
    %2055 = vmatmul.bf16.gmra.mxu0 %v1990
    %v2056 = vpop.f32.mrf.mxu0
    %v2057 = vadd.f32 0.0, %v2056
    %v2058 = vpop.f32.mrf.mxu0
    %v2059 = vadd.f32 0.0, %v2058
    %2060 = vmatmul.bf16.gmra.mxu0 %v1993
    %v2061 = vpop.f32.mrf.mxu0
    %v2062 = vadd.f32 0.0, %v2061
    %v2063 = vpop.f32.mrf.mxu0
    %v2064 = vadd.f32 0.0, %v2063
    %2065 = vmatmul.bf16.gmra.mxu0 %v1996
    %v2066 = vpop.f32.mrf.mxu0
    %v2067 = vadd.f32 0.0, %v2066
    %v2068 = vpop.f32.mrf.mxu0
    %v2069 = vadd.f32 0.0, %v2068
    %2070 = vmatmul.bf16.gmra.mxu0 %v1999
    %v2071 = vpop.f32.mrf.mxu0
    %v2072 = vadd.f32 0.0, %v2071
    %v2073 = vpop.f32.mrf.mxu0
    %v2074 = vadd.f32 0.0, %v2073
    %2075 = vmatmul.bf16.gmra.mxu0 %v2002
    %v2076 = vpop.f32.mrf.mxu0
    %v2077 = vadd.f32 0.0, %v2076
    %v2078 = vpop.f32.mrf.mxu0
    %v2079 = vadd.f32 0.0, %v2078
    %2080 = vmatmul.bf16.gmra.mxu0 %v2005
    %v2081 = vpop.f32.mrf.mxu0
    %v2082 = vadd.f32 0.0, %v2081
    %v2083 = vpop.f32.mrf.mxu0
    %v2084 = vadd.f32 0.0, %v2083
    %2085 = vmatmul.bf16.gmra.mxu0 %v2008
    %v2086 = vpop.f32.mrf.mxu0
    %v2087 = vadd.f32 0.0, %v2086
    %v2088 = vpop.f32.mrf.mxu0
    %v2089 = vadd.f32 0.0, %v2088
    %2090 = vmatmul.bf16.gmra.mxu0 %v2011
    %v2091 = vpop.f32.mrf.mxu0
    %v2092 = vadd.f32 0.0, %v2091
    %v2093 = vpop.f32.mrf.mxu0
    %v2094 = vadd.f32 0.0, %v2093
    %2095 = vmatmul.bf16.gmra.mxu0 %v2014
    %v2096 = vpop.f32.mrf.mxu0
    %v2097 = vadd.f32 0.0, %v2096
    %v2098 = vpop.f32.mrf.mxu0
    %v2099 = vadd.f32 0.0, %v2098
    %2100 = vmatmul.bf16.gmra.mxu0 %v2017
    %v2101 = vpop.f32.mrf.mxu0
    %v2102 = vadd.f32 0.0, %v2101
    %v2103 = vpop.f32.mrf.mxu0
    %v2104 = vadd.f32 0.0, %v2103
    %2105 = vmatmul.bf16.gmra.mxu0 %v2020
    %v2106 = vpop.f32.mrf.mxu0
    %v2107 = vadd.f32 0.0, %v2106
    %v2108 = vpop.f32.mrf.mxu0
    %v2109 = vadd.f32 0.0, %v2108
    %2110 = vdwg.mxu0
    %v2119 = vunpack.c.l.b16 %v1891
    %v2120 = vunpack.c.l.b16 %v1892
    %v2121 = vunpack.c.l.b16 %v1893
    %v2122 = vunpack.c.l.b16 %v1894
    %v2123 = vunpack.c.l.b16 %v1895
    %v2124 = vunpack.c.l.b16 %v1896
    %v2125 = vunpack.c.l.b16 %v1897
    %v2126 = vunpack.c.l.b16 %v1898
    %v2127 = vpack.c.b16 %v2120, %v2119
    %v2128 = vpack.c.b16 %v2122, %v2121
    %v2129 = vpack.c.b16 %v2124, %v2123
    %v2130 = vpack.c.b16 %v2126, %v2125
    %v2136 = vsel %vm1973, %v1917, 0
    %v2139 = vsel %vm1973, %v1918, 0
    %v2142 = vsel %vm1973, %v1919, 0
    %v2145 = vsel %vm1973, %v1920, 0
    %v2148 = vsel %vm1973, %v1921, 0
    %v2151 = vsel %vm1973, %v1922, 0
    %v2154 = vsel %vm1973, %v1923, 0
    %v2157 = vsel %vm1973, %v1924, 0
    %v2160 = vsel %vm1973, %v1925, 0
    %v2163 = vsel %vm1973, %v1926, 0
    %v2166 = vsel %vm1973, %v1927, 0
    %v2169 = vsel %vm1973, %v1928, 0
    %v2172 = vsel %vm1973, %v1929, 0
    %v2175 = vsel %vm1973, %v1930, 0
    %v2178 = vsel %vm1973, %v1931, 0
    %v2181 = vsel %vm1973, %v1932, 0
    %2183 = vmatpush.bf16.msra.mxu0 0
    %2184 = vmatpush.bf16.msra.mxu0 0
    %2185 = vmatpush.bf16.msra.mxu0 0
    %2186 = vmatpush.bf16.msra.mxu0 0
    %2187 = vmatpush.bf16.msra.mxu0 %v2130
    %2188 = vmatpush.bf16.msra.mxu0 %v2129
    %2189 = vmatpush.bf16.msra.mxu0 %v2128
    %2190 = vmatpush.bf16.msra.mxu0 %v2127
    %2191 = vmatmul.bf16.gmra.mxu0 %v2136
    %v2192 = vpop.f32.mrf.mxu0
    %v2193 = vadd.f32 %v2032, %v2192
    %v2194 = vpop.f32.mrf.mxu0
    %v2195 = vadd.f32 %v2034, %v2194
    %2196 = vmatmul.bf16.gmra.mxu0 %v2139
    %v2197 = vpop.f32.mrf.mxu0
    %v2198 = vadd.f32 %v2037, %v2197
    %v2199 = vpop.f32.mrf.mxu0
    %v2200 = vadd.f32 %v2039, %v2199
    %2201 = vmatmul.bf16.gmra.mxu0 %v2142
    %v2202 = vpop.f32.mrf.mxu0
    %v2203 = vadd.f32 %v2042, %v2202
    %v2204 = vpop.f32.mrf.mxu0
    %v2205 = vadd.f32 %v2044, %v2204
    %2206 = vmatmul.bf16.gmra.mxu0 %v2145
    %v2207 = vpop.f32.mrf.mxu0
    %v2208 = vadd.f32 %v2047, %v2207
    %v2209 = vpop.f32.mrf.mxu0
    %v2210 = vadd.f32 %v2049, %v2209
    %2211 = vmatmul.bf16.gmra.mxu0 %v2148
    %v2212 = vpop.f32.mrf.mxu0
    %v2213 = vadd.f32 %v2052, %v2212
    %v2214 = vpop.f32.mrf.mxu0
    %v2215 = vadd.f32 %v2054, %v2214
    %2216 = vmatmul.bf16.gmra.mxu0 %v2151
    %v2217 = vpop.f32.mrf.mxu0
    %v2218 = vadd.f32 %v2057, %v2217
    %v2219 = vpop.f32.mrf.mxu0
    %v2220 = vadd.f32 %v2059, %v2219
    %2221 = vmatmul.bf16.gmra.mxu0 %v2154
    %v2222 = vpop.f32.mrf.mxu0
    %v2223 = vadd.f32 %v2062, %v2222
    %v2224 = vpop.f32.mrf.mxu0
    %v2225 = vadd.f32 %v2064, %v2224
    %2226 = vmatmul.bf16.gmra.mxu0 %v2157
    %v2227 = vpop.f32.mrf.mxu0
    %v2228 = vadd.f32 %v2067, %v2227
    %v2229 = vpop.f32.mrf.mxu0
    %v2230 = vadd.f32 %v2069, %v2229
    %2231 = vmatmul.bf16.gmra.mxu0 %v2160
    %v2232 = vpop.f32.mrf.mxu0
    %v2233 = vadd.f32 %v2072, %v2232
    %v2234 = vpop.f32.mrf.mxu0
    %v2235 = vadd.f32 %v2074, %v2234
    %2236 = vmatmul.bf16.gmra.mxu0 %v2163
    %v2237 = vpop.f32.mrf.mxu0
    %v2238 = vadd.f32 %v2077, %v2237
    %v2239 = vpop.f32.mrf.mxu0
    %v2240 = vadd.f32 %v2079, %v2239
    %2241 = vmatmul.bf16.gmra.mxu0 %v2166
    %v2242 = vpop.f32.mrf.mxu0
    %v2243 = vadd.f32 %v2082, %v2242
    %v2244 = vpop.f32.mrf.mxu0
    %v2245 = vadd.f32 %v2084, %v2244
    %2246 = vmatmul.bf16.gmra.mxu0 %v2169
    %v2247 = vpop.f32.mrf.mxu0
    %v2248 = vadd.f32 %v2087, %v2247
    %v2249 = vpop.f32.mrf.mxu0
    %v2250 = vadd.f32 %v2089, %v2249
    %2251 = vmatmul.bf16.gmra.mxu0 %v2172
    %v2252 = vpop.f32.mrf.mxu0
    %v2253 = vadd.f32 %v2092, %v2252
    %v2254 = vpop.f32.mrf.mxu0
    %v2255 = vadd.f32 %v2094, %v2254
    %2256 = vmatmul.bf16.gmra.mxu0 %v2175
    %v2257 = vpop.f32.mrf.mxu0
    %v2258 = vadd.f32 %v2097, %v2257
    %v2259 = vpop.f32.mrf.mxu0
    %v2260 = vadd.f32 %v2099, %v2259
    %2261 = vmatmul.bf16.gmra.mxu0 %v2178
    %v2262 = vpop.f32.mrf.mxu0
    %v2263 = vadd.f32 %v2102, %v2262
    %v2264 = vpop.f32.mrf.mxu0
    %v2265 = vadd.f32 %v2104, %v2264
    %2266 = vmatmul.bf16.gmra.mxu0 %v2181
    %v2267 = vpop.f32.mrf.mxu0
    %v2268 = vadd.f32 %v2107, %v2267
    %v2269 = vpop.f32.mrf.mxu0
    %v2270 = vadd.f32 %v2109, %v2269
    %2271 = vdwg.mxu0
    %v2272 = vpack.c.bf16 %v1860, %v1859
    %v2273 = vpack.c.bf16 %v1862, %v1861
    %v2274 = vpack.c.bf16 %v1864, %v1863
    %v2275 = vpack.c.bf16 %v1866, %v1865
    %v2276 = vpack.c.bf16 %v1868, %v1867
    %v2277 = vpack.c.bf16 %v1870, %v1869
    %v2278 = vpack.c.bf16 %v1872, %v1871
    %v2279 = vpack.c.bf16 %v1874, %v1873
    %v2280 = vpack.c.bf16 %v1876, %v1875
    %v2281 = vpack.c.bf16 %v1878, %v1877
    %v2282 = vpack.c.bf16 %v1880, %v1879
    %v2283 = vpack.c.bf16 %v1882, %v1881
    %v2284 = vpack.c.bf16 %v1884, %v1883
    %v2285 = vpack.c.bf16 %v1886, %v1885
    %v2286 = vpack.c.bf16 %v1888, %v1887
    %v2287 = vpack.c.bf16 %v1890, %v1889
    %v2296 = vunpack.c.l.b16 %v1909
    %v2297 = vunpack.c.l.b16 %v1910
    %v2298 = vunpack.c.l.b16 %v1911
    %v2299 = vunpack.c.l.b16 %v1912
    %v2300 = vunpack.c.l.b16 %v1913
    %v2301 = vunpack.c.l.b16 %v1914
    %v2302 = vunpack.c.l.b16 %v1915
    %v2303 = vunpack.c.l.b16 %v1916
    %v2304 = vpack.c.b16 %v2297, %v2296
    %v2305 = vpack.c.b16 %v2299, %v2298
    %v2306 = vpack.c.b16 %v2301, %v2300
    %v2307 = vpack.c.b16 %v2303, %v2302
    %v2313 = vsel %vm1973, %v2272, 0
    %v2316 = vsel %vm1973, %v2273, 0
    %v2319 = vsel %vm1973, %v2274, 0
    %v2322 = vsel %vm1973, %v2275, 0
    %v2325 = vsel %vm1973, %v2276, 0
    %v2328 = vsel %vm1973, %v2277, 0
    %v2331 = vsel %vm1973, %v2278, 0
    %v2334 = vsel %vm1973, %v2279, 0
    %v2337 = vsel %vm1973, %v2280, 0
    %v2340 = vsel %vm1973, %v2281, 0
    %v2343 = vsel %vm1973, %v2282, 0
    %v2346 = vsel %vm1973, %v2283, 0
    %v2349 = vsel %vm1973, %v2284, 0
    %v2352 = vsel %vm1973, %v2285, 0
    %v2355 = vsel %vm1973, %v2286, 0
    %v2358 = vsel %vm1973, %v2287, 0
    %2360 = vmatpush.bf16.msra.mxu0 0
    %2361 = vmatpush.bf16.msra.mxu0 0
    %2362 = vmatpush.bf16.msra.mxu0 0
    %2363 = vmatpush.bf16.msra.mxu0 0
    %2364 = vmatpush.bf16.msra.mxu0 %v2307
    %2365 = vmatpush.bf16.msra.mxu0 %v2306
    %2366 = vmatpush.bf16.msra.mxu0 %v2305
    %2367 = vmatpush.bf16.msra.mxu0 %v2304
    %2368 = vmatmul.bf16.gmra.mxu0 %v2313
    %v2369 = vpop.f32.mrf.mxu0
    %v2370 = vadd.f32 0.0, %v2369
    %v2371 = vpop.f32.mrf.mxu0
    %v2372 = vadd.f32 0.0, %v2371
    %2373 = vmatmul.bf16.gmra.mxu0 %v2316
    %v2374 = vpop.f32.mrf.mxu0
    %v2375 = vadd.f32 0.0, %v2374
    %v2376 = vpop.f32.mrf.mxu0
    %v2377 = vadd.f32 0.0, %v2376
    %2378 = vmatmul.bf16.gmra.mxu0 %v2319
    %v2379 = vpop.f32.mrf.mxu0
    %v2380 = vadd.f32 0.0, %v2379
    %v2381 = vpop.f32.mrf.mxu0
    %v2382 = vadd.f32 0.0, %v2381
    %2383 = vmatmul.bf16.gmra.mxu0 %v2322
    %v2384 = vpop.f32.mrf.mxu0
    %v2385 = vadd.f32 0.0, %v2384
    %v2386 = vpop.f32.mrf.mxu0
    %v2387 = vadd.f32 0.0, %v2386
    %2388 = vmatmul.bf16.gmra.mxu0 %v2325
    %v2389 = vpop.f32.mrf.mxu0
    %v2390 = vadd.f32 0.0, %v2389
    %v2391 = vpop.f32.mrf.mxu0
    %v2392 = vadd.f32 0.0, %v2391
    %2393 = vmatmul.bf16.gmra.mxu0 %v2328
    %v2394 = vpop.f32.mrf.mxu0
    %v2395 = vadd.f32 0.0, %v2394
    %v2396 = vpop.f32.mrf.mxu0
    %v2397 = vadd.f32 0.0, %v2396
    %2398 = vmatmul.bf16.gmra.mxu0 %v2331
    %v2399 = vpop.f32.mrf.mxu0
    %v2400 = vadd.f32 0.0, %v2399
    %v2401 = vpop.f32.mrf.mxu0
    %v2402 = vadd.f32 0.0, %v2401
    %2403 = vmatmul.bf16.gmra.mxu0 %v2334
    %v2404 = vpop.f32.mrf.mxu0
    %v2405 = vadd.f32 0.0, %v2404
    %v2406 = vpop.f32.mrf.mxu0
    %v2407 = vadd.f32 0.0, %v2406
    %2408 = vmatmul.bf16.gmra.mxu0 %v2337
    %v2409 = vpop.f32.mrf.mxu0
    %v2410 = vadd.f32 0.0, %v2409
    %v2411 = vpop.f32.mrf.mxu0
    %v2412 = vadd.f32 0.0, %v2411
    %2413 = vmatmul.bf16.gmra.mxu0 %v2340
    %v2414 = vpop.f32.mrf.mxu0
    %v2415 = vadd.f32 0.0, %v2414
    %v2416 = vpop.f32.mrf.mxu0
    %v2417 = vadd.f32 0.0, %v2416
    %2418 = vmatmul.bf16.gmra.mxu0 %v2343
    %v2419 = vpop.f32.mrf.mxu0
    %v2420 = vadd.f32 0.0, %v2419
    %v2421 = vpop.f32.mrf.mxu0
    %v2422 = vadd.f32 0.0, %v2421
    %2423 = vmatmul.bf16.gmra.mxu0 %v2346
    %v2424 = vpop.f32.mrf.mxu0
    %v2425 = vadd.f32 0.0, %v2424
    %v2426 = vpop.f32.mrf.mxu0
    %v2427 = vadd.f32 0.0, %v2426
    %2428 = vmatmul.bf16.gmra.mxu0 %v2349
    %v2429 = vpop.f32.mrf.mxu0
    %v2430 = vadd.f32 0.0, %v2429
    %v2431 = vpop.f32.mrf.mxu0
    %v2432 = vadd.f32 0.0, %v2431
    %2433 = vmatmul.bf16.gmra.mxu0 %v2352
    %v2434 = vpop.f32.mrf.mxu0
    %v2435 = vadd.f32 0.0, %v2434
    %v2436 = vpop.f32.mrf.mxu0
    %v2437 = vadd.f32 0.0, %v2436
    %2438 = vmatmul.bf16.gmra.mxu0 %v2355
    %v2439 = vpop.f32.mrf.mxu0
    %v2440 = vadd.f32 0.0, %v2439
    %v2441 = vpop.f32.mrf.mxu0
    %v2442 = vadd.f32 0.0, %v2441
    %2443 = vmatmul.bf16.gmra.mxu0 %v2358
    %v2444 = vpop.f32.mrf.mxu0
    %v2445 = vadd.f32 0.0, %v2444
    %v2446 = vpop.f32.mrf.mxu0
    %v2447 = vadd.f32 0.0, %v2446
    %2448 = vdwg.mxu0
    %v2449 = vadd.f32 %v2193, %v2370
    %v2450 = vadd.f32 %v2195, %v2372
    %v2451 = vadd.f32 %v2198, %v2375
    %v2452 = vadd.f32 %v2200, %v2377
    %v2453 = vadd.f32 %v2203, %v2380
    %v2454 = vadd.f32 %v2205, %v2382
    %v2455 = vadd.f32 %v2208, %v2385
    %v2456 = vadd.f32 %v2210, %v2387
    %v2457 = vadd.f32 %v2213, %v2390
    %v2458 = vadd.f32 %v2215, %v2392
    %v2459 = vadd.f32 %v2218, %v2395
    %v2460 = vadd.f32 %v2220, %v2397
    %v2461 = vadd.f32 %v2223, %v2400
    %v2462 = vadd.f32 %v2225, %v2402
    %v2463 = vadd.f32 %v2228, %v2405
    %v2464 = vadd.f32 %v2230, %v2407
    %v2465 = vadd.f32 %v2233, %v2410
    %v2466 = vadd.f32 %v2235, %v2412
    %v2467 = vadd.f32 %v2238, %v2415
    %v2468 = vadd.f32 %v2240, %v2417
    %v2469 = vadd.f32 %v2243, %v2420
    %v2470 = vadd.f32 %v2245, %v2422
    %v2471 = vadd.f32 %v2248, %v2425
    %v2472 = vadd.f32 %v2250, %v2427
    %v2473 = vadd.f32 %v2253, %v2430
    %v2474 = vadd.f32 %v2255, %v2432
    %v2475 = vadd.f32 %v2258, %v2435
    %v2476 = vadd.f32 %v2260, %v2437
    %v2477 = vadd.f32 %v2263, %v2440
    %v2478 = vadd.f32 %v2265, %v2442
    %v2479 = vadd.f32 %v2268, %v2445
    %v2480 = vadd.f32 %v2270, %v2447
    %s2481 = scalar_lea.vmem %s3, 1
    %v2482 = vld [vmem:[%s2481] sm:$0x1]
    %v2484 = vperm.slane %v2482, 0
    %v2486 = vadd.f32 %v2449, %v2484
    %v2487 = vadd.f32 %v2450, %v2484
    %v2488 = vadd.f32 %v2451, %v2484
    %v2489 = vadd.f32 %v2452, %v2484
    %v2490 = vadd.f32 %v2453, %v2484
    %v2491 = vadd.f32 %v2454, %v2484
    %v2492 = vadd.f32 %v2455, %v2484
    %v2493 = vadd.f32 %v2456, %v2484
    %v2494 = vadd.f32 %v2457, %v2484
    %v2495 = vadd.f32 %v2458, %v2484
    %v2496 = vadd.f32 %v2459, %v2484
    %v2497 = vadd.f32 %v2460, %v2484
    %v2498 = vadd.f32 %v2461, %v2484
    %v2499 = vadd.f32 %v2462, %v2484
    %v2500 = vadd.f32 %v2463, %v2484
    %v2501 = vadd.f32 %v2464, %v2484
    %v2502 = vadd.f32 %v2465, %v2484
    %v2503 = vadd.f32 %v2466, %v2484
    %v2504 = vadd.f32 %v2467, %v2484
    %v2505 = vadd.f32 %v2468, %v2484
    %v2506 = vadd.f32 %v2469, %v2484
    %v2507 = vadd.f32 %v2470, %v2484
    %v2508 = vadd.f32 %v2471, %v2484
    %v2509 = vadd.f32 %v2472, %v2484
    %v2510 = vadd.f32 %v2473, %v2484
    %v2511 = vadd.f32 %v2474, %v2484
    %v2512 = vadd.f32 %v2475, %v2484
    %v2513 = vadd.f32 %v2476, %v2484
    %v2514 = vadd.f32 %v2477, %v2484
    %v2515 = vadd.f32 %v2478, %v2484
    %v2516 = vadd.f32 %v2479, %v2484
    %v2517 = vadd.f32 %v2480, %v2484
    %v2518 = vmax.f32 %v2486, 0.0
    %v2519 = vmax.f32 %v2487, 0.0
    %v2520 = vmax.f32 %v2488, 0.0
    %v2521 = vmax.f32 %v2489, 0.0
    %v2522 = vmax.f32 %v2490, 0.0
    %v2523 = vmax.f32 %v2491, 0.0
    %v2524 = vmax.f32 %v2492, 0.0
    %v2525 = vmax.f32 %v2493, 0.0
    %v2526 = vmax.f32 %v2494, 0.0
    %v2527 = vmax.f32 %v2495, 0.0
    %v2528 = vmax.f32 %v2496, 0.0
    %v2529 = vmax.f32 %v2497, 0.0
    %v2530 = vmax.f32 %v2498, 0.0
    %v2531 = vmax.f32 %v2499, 0.0
    %v2532 = vmax.f32 %v2500, 0.0
    %v2533 = vmax.f32 %v2501, 0.0
    %v2534 = vmax.f32 %v2502, 0.0
    %v2535 = vmax.f32 %v2503, 0.0
    %v2536 = vmax.f32 %v2504, 0.0
    %v2537 = vmax.f32 %v2505, 0.0
    %v2538 = vmax.f32 %v2506, 0.0
    %v2539 = vmax.f32 %v2507, 0.0
    %v2540 = vmax.f32 %v2508, 0.0
    %v2541 = vmax.f32 %v2509, 0.0
    %v2542 = vmax.f32 %v2510, 0.0
    %v2543 = vmax.f32 %v2511, 0.0
    %v2544 = vmax.f32 %v2512, 0.0
    %v2545 = vmax.f32 %v2513, 0.0
    %v2546 = vmax.f32 %v2514, 0.0
    %v2547 = vmax.f32 %v2515, 0.0
    %v2548 = vmax.f32 %v2516, 0.0
    %v2549 = vmax.f32 %v2517, 0.0
    %v2582 = vrot.slane %v2518, 2
    %v2583 = vrot.slane %v2519, 2
    %v2584 = vsel %vm1698, %v2582, %v2583
    %v2585 = vrot.slane %v2520, 2
    %v2586 = vsel %vm1698, %v2583, %v2585
    %v2587 = vrot.slane %v2521, 2
    %v2588 = vsel %vm1698, %v2585, %v2587
    %v2589 = vrot.slane %v2522, 2
    %v2590 = vsel %vm1698, %v2587, %v2589
    %v2591 = vrot.slane %v2523, 2
    %v2592 = vsel %vm1698, %v2589, %v2591
    %v2593 = vrot.slane %v2524, 2
    %v2594 = vsel %vm1698, %v2591, %v2593
    %v2595 = vrot.slane %v2525, 2
    %v2596 = vsel %vm1698, %v2593, %v2595
    %v2597 = vrot.slane %v2526, 2
    %v2598 = vsel %vm1698, %v2595, %v2597
    %v2599 = vrot.slane %v2527, 2
    %v2600 = vsel %vm1698, %v2597, %v2599
    %v2601 = vrot.slane %v2528, 2
    %v2602 = vsel %vm1698, %v2599, %v2601
    %v2603 = vrot.slane %v2529, 2
    %v2604 = vsel %vm1698, %v2601, %v2603
    %v2605 = vrot.slane %v2530, 2
    %v2606 = vsel %vm1698, %v2603, %v2605
    %v2607 = vrot.slane %v2531, 2
    %v2608 = vsel %vm1698, %v2605, %v2607
    %v2609 = vrot.slane %v2532, 2
    %v2610 = vsel %vm1698, %v2607, %v2609
    %v2611 = vrot.slane %v2533, 2
    %v2612 = vsel %vm1698, %v2609, %v2611
    %v2613 = vrot.slane %v2534, 2
    %v2614 = vsel %vm1698, %v2611, %v2613
    %v2615 = vrot.slane %v2535, 2
    %v2616 = vsel %vm1698, %v2613, %v2615
    %v2617 = vrot.slane %v2536, 2
    %v2618 = vsel %vm1698, %v2615, %v2617
    %v2619 = vrot.slane %v2537, 2
    %v2620 = vsel %vm1698, %v2617, %v2619
    %v2621 = vrot.slane %v2538, 2
    %v2622 = vsel %vm1698, %v2619, %v2621
    %v2623 = vrot.slane %v2539, 2
    %v2624 = vsel %vm1698, %v2621, %v2623
    %v2625 = vrot.slane %v2540, 2
    %v2626 = vsel %vm1698, %v2623, %v2625
    %v2627 = vrot.slane %v2541, 2
    %v2628 = vsel %vm1698, %v2625, %v2627
    %v2629 = vrot.slane %v2542, 2
    %v2630 = vsel %vm1698, %v2627, %v2629
    %v2631 = vrot.slane %v2543, 2
    %v2632 = vsel %vm1698, %v2629, %v2631
    %v2633 = vrot.slane %v2544, 2
    %v2634 = vsel %vm1698, %v2631, %v2633
    %v2635 = vrot.slane %v2545, 2
    %v2636 = vsel %vm1698, %v2633, %v2635
    %v2637 = vrot.slane %v2546, 2
    %v2638 = vsel %vm1698, %v2635, %v2637
    %v2639 = vrot.slane %v2547, 2
    %v2640 = vsel %vm1698, %v2637, %v2639
    %v2641 = vrot.slane %v2548, 2
    %v2642 = vsel %vm1698, %v2639, %v2641
    %v2643 = vrot.slane %v2549, 2
    %v2644 = vsel %vm1698, %v2641, %v2643
    %v2677 = vsel %vm1698, %v2643, 0.0
    %v2678 = vmax.f32 %v2518, %v2584
    %v2679 = vmax.f32 %v2519, %v2586
    %v2680 = vmax.f32 %v2520, %v2588
    %v2681 = vmax.f32 %v2521, %v2590
    %v2682 = vmax.f32 %v2522, %v2592
    %v2683 = vmax.f32 %v2523, %v2594
    %v2684 = vmax.f32 %v2524, %v2596
    %v2685 = vmax.f32 %v2525, %v2598
    %v2686 = vmax.f32 %v2526, %v2600
    %v2687 = vmax.f32 %v2527, %v2602
    %v2688 = vmax.f32 %v2528, %v2604
    %v2689 = vmax.f32 %v2529, %v2606
    %v2690 = vmax.f32 %v2530, %v2608
    %v2691 = vmax.f32 %v2531, %v2610
    %v2692 = vmax.f32 %v2532, %v2612
    %v2693 = vmax.f32 %v2533, %v2614
    %v2694 = vmax.f32 %v2534, %v2616
    %v2695 = vmax.f32 %v2535, %v2618
    %v2696 = vmax.f32 %v2536, %v2620
    %v2697 = vmax.f32 %v2537, %v2622
    %v2698 = vmax.f32 %v2538, %v2624
    %v2699 = vmax.f32 %v2539, %v2626
    %v2700 = vmax.f32 %v2540, %v2628
    %v2701 = vmax.f32 %v2541, %v2630
    %v2702 = vmax.f32 %v2542, %v2632
    %v2703 = vmax.f32 %v2543, %v2634
    %v2704 = vmax.f32 %v2544, %v2636
    %v2705 = vmax.f32 %v2545, %v2638
    %v2706 = vmax.f32 %v2546, %v2640
    %v2707 = vmax.f32 %v2547, %v2642
    %v2708 = vmax.f32 %v2548, %v2644
    %v2709 = vmax.f32 %v2549, %v2677
    %v2742 = vrot.slane %v2678, 4
    %v2743 = vrot.slane %v2679, 4
    %v2744 = vsel %vm920, %v2742, %v2743
    %v2745 = vrot.slane %v2680, 4
    %v2746 = vsel %vm920, %v2743, %v2745
    %v2747 = vrot.slane %v2681, 4
    %v2748 = vsel %vm920, %v2745, %v2747
    %v2749 = vrot.slane %v2682, 4
    %v2750 = vsel %vm920, %v2747, %v2749
    %v2751 = vrot.slane %v2683, 4
    %v2752 = vsel %vm920, %v2749, %v2751
    %v2753 = vrot.slane %v2684, 4
    %v2754 = vsel %vm920, %v2751, %v2753
    %v2755 = vrot.slane %v2685, 4
    %v2756 = vsel %vm920, %v2753, %v2755
    %v2757 = vrot.slane %v2686, 4
    %v2758 = vsel %vm920, %v2755, %v2757
    %v2759 = vrot.slane %v2687, 4
    %v2760 = vsel %vm920, %v2757, %v2759
    %v2761 = vrot.slane %v2688, 4
    %v2762 = vsel %vm920, %v2759, %v2761
    %v2763 = vrot.slane %v2689, 4
    %v2764 = vsel %vm920, %v2761, %v2763
    %v2765 = vrot.slane %v2690, 4
    %v2766 = vsel %vm920, %v2763, %v2765
    %v2767 = vrot.slane %v2691, 4
    %v2768 = vsel %vm920, %v2765, %v2767
    %v2769 = vrot.slane %v2692, 4
    %v2770 = vsel %vm920, %v2767, %v2769
    %v2771 = vrot.slane %v2693, 4
    %v2772 = vsel %vm920, %v2769, %v2771
    %v2773 = vrot.slane %v2694, 4
    %v2774 = vsel %vm920, %v2771, %v2773
    %v2775 = vrot.slane %v2695, 4
    %v2776 = vsel %vm920, %v2773, %v2775
    %v2777 = vrot.slane %v2696, 4
    %v2778 = vsel %vm920, %v2775, %v2777
    %v2779 = vrot.slane %v2697, 4
    %v2780 = vsel %vm920, %v2777, %v2779
    %v2781 = vrot.slane %v2698, 4
    %v2782 = vsel %vm920, %v2779, %v2781
    %v2783 = vrot.slane %v2699, 4
    %v2784 = vsel %vm920, %v2781, %v2783
    %v2785 = vrot.slane %v2700, 4
    %v2786 = vsel %vm920, %v2783, %v2785
    %v2787 = vrot.slane %v2701, 4
    %v2788 = vsel %vm920, %v2785, %v2787
    %v2789 = vrot.slane %v2702, 4
    %v2790 = vsel %vm920, %v2787, %v2789
    %v2791 = vrot.slane %v2703, 4
    %v2792 = vsel %vm920, %v2789, %v2791
    %v2793 = vrot.slane %v2704, 4
    %v2794 = vsel %vm920, %v2791, %v2793
    %v2795 = vrot.slane %v2705, 4
    %v2796 = vsel %vm920, %v2793, %v2795
    %v2797 = vrot.slane %v2706, 4
    %v2798 = vsel %vm920, %v2795, %v2797
    %v2799 = vrot.slane %v2707, 4
    %v2800 = vsel %vm920, %v2797, %v2799
    %v2801 = vrot.slane %v2708, 4
    %v2802 = vsel %vm920, %v2799, %v2801
    %v2803 = vrot.slane %v2709, 4
    %v2804 = vsel %vm920, %v2801, %v2803
    %v2837 = vsel %vm920, 0.0, %v2742
    %v2839 = vsel %vm920, %v2803, 0.0
    %v2840 = vsel %vm706, 0.0, %v2837
    %v2841 = vsel %vm707, 0.0, %v2744
    %v2842 = vsel %vm708, 0.0, %v2746
    %v2843 = vsel %vm709, 0.0, %v2748
    %v2844 = vsel %vm710, 0.0, %v2750
    %v2845 = vsel %vm711, 0.0, %v2752
    %v2846 = vsel %vm712, 0.0, %v2754
    %v2847 = vsel %vm713, 0.0, %v2756
    %v2848 = vsel %vm714, 0.0, %v2758
    %v2849 = vsel %vm715, 0.0, %v2760
    %v2850 = vsel %vm716, 0.0, %v2762
    %v2851 = vsel %vm717, 0.0, %v2764
    %v2852 = vsel %vm718, 0.0, %v2766
    %v2853 = vsel %vm719, 0.0, %v2768
    %v2854 = vsel %vm720, 0.0, %v2770
    %v2855 = vsel %vm721, 0.0, %v2772
    %v2856 = vsel %vm722, 0.0, %v2774
    %v2857 = vsel %vm723, 0.0, %v2776
    %v2858 = vsel %vm724, 0.0, %v2778
    %v2859 = vsel %vm725, 0.0, %v2780
    %v2860 = vsel %vm726, 0.0, %v2782
    %v2861 = vsel %vm727, 0.0, %v2784
    %v2862 = vsel %vm728, 0.0, %v2786
    %v2863 = vsel %vm729, 0.0, %v2788
    %v2864 = vsel %vm730, 0.0, %v2790
    %v2865 = vsel %vm731, 0.0, %v2792
    %v2866 = vsel %vm732, 0.0, %v2794
    %v2867 = vsel %vm733, 0.0, %v2796
    %v2868 = vsel %vm734, 0.0, %v2798
    %v2869 = vsel %vm735, 0.0, %v2800
    %v2870 = vsel %vm736, 0.0, %v2802
    %v2871 = vsel %vm737, 0.0, %v2804
    %vm2872 = vcmp.eq.s32.totalorder %v416, 124
    %vm2873 = vcmp.eq.s32.totalorder %v417, 124
    %vm2874 = vcmp.eq.s32.totalorder %v418, 124
    %vm2875 = vcmp.eq.s32.totalorder %v419, 124
    %vm2876 = vcmp.eq.s32.totalorder %v420, 124
    %vm2877 = vcmp.eq.s32.totalorder %v421, 124
    %vm2878 = vcmp.eq.s32.totalorder %v422, 124
    %vm2879 = vcmp.eq.s32.totalorder %v423, 124
    %vm2880 = vcmp.eq.s32.totalorder %v424, 124
    %vm2881 = vcmp.eq.s32.totalorder %v425, 124
    %vm2882 = vcmp.eq.s32.totalorder %v426, 124
    %vm2883 = vcmp.eq.s32.totalorder %v427, 124
    %vm2884 = vcmp.eq.s32.totalorder %v428, 124
    %vm2885 = vcmp.eq.s32.totalorder %v429, 124
    %vm2886 = vcmp.eq.s32.totalorder %v430, 124
    %vm2887 = vcmp.eq.s32.totalorder %v431, 124
    %vm2888 = vcmp.eq.s32.totalorder %v432, 124
    %vm2889 = vcmp.eq.s32.totalorder %v433, 124
    %vm2890 = vcmp.eq.s32.totalorder %v434, 124
    %vm2891 = vcmp.eq.s32.totalorder %v435, 124
    %vm2892 = vcmp.eq.s32.totalorder %v436, 124
    %vm2893 = vcmp.eq.s32.totalorder %v437, 124
    %vm2894 = vcmp.eq.s32.totalorder %v438, 124
    %vm2895 = vcmp.eq.s32.totalorder %v439, 124
    %vm2896 = vcmp.eq.s32.totalorder %v440, 124
    %vm2897 = vcmp.eq.s32.totalorder %v441, 124
    %vm2898 = vcmp.eq.s32.totalorder %v442, 124
    %vm2899 = vcmp.eq.s32.totalorder %v443, 124
    %vm2900 = vcmp.eq.s32.totalorder %v444, 124
    %vm2901 = vcmp.eq.s32.totalorder %v445, 124
    %vm2902 = vcmp.eq.s32.totalorder %v446, 124
    %vm2903 = vcmp.eq.s32.totalorder %v447, 124
    %v2904 = vsel %vm2872, 0.0, %v2744
    %v2905 = vsel %vm2873, 0.0, %v2746
    %v2906 = vsel %vm2874, 0.0, %v2748
    %v2907 = vsel %vm2875, 0.0, %v2750
    %v2908 = vsel %vm2876, 0.0, %v2752
    %v2909 = vsel %vm2877, 0.0, %v2754
    %v2910 = vsel %vm2878, 0.0, %v2756
    %v2911 = vsel %vm2879, 0.0, %v2758
    %v2912 = vsel %vm2880, 0.0, %v2760
    %v2913 = vsel %vm2881, 0.0, %v2762
    %v2914 = vsel %vm2882, 0.0, %v2764
    %v2915 = vsel %vm2883, 0.0, %v2766
    %v2916 = vsel %vm2884, 0.0, %v2768
    %v2917 = vsel %vm2885, 0.0, %v2770
    %v2918 = vsel %vm2886, 0.0, %v2772
    %v2919 = vsel %vm2887, 0.0, %v2774
    %v2920 = vsel %vm2888, 0.0, %v2776
    %v2921 = vsel %vm2889, 0.0, %v2778
    %v2922 = vsel %vm2890, 0.0, %v2780
    %v2923 = vsel %vm2891, 0.0, %v2782
    %v2924 = vsel %vm2892, 0.0, %v2784
    %v2925 = vsel %vm2893, 0.0, %v2786
    %v2926 = vsel %vm2894, 0.0, %v2788
    %v2927 = vsel %vm2895, 0.0, %v2790
    %v2928 = vsel %vm2896, 0.0, %v2792
    %v2929 = vsel %vm2897, 0.0, %v2794
    %v2930 = vsel %vm2898, 0.0, %v2796
    %v2931 = vsel %vm2899, 0.0, %v2798
    %v2932 = vsel %vm2900, 0.0, %v2800
    %v2933 = vsel %vm2901, 0.0, %v2802
    %v2934 = vsel %vm2902, 0.0, %v2804
    %v2935 = vsel %vm2903, 0.0, %v2839
    %s2936 = scalar_lea.vmem %s2, 96
    %v2937 = vld [vmem:[%s2936] sm:$0xf]
    %v2938 = vld [vmem:[%s2936 + $0x4] sm:$0xf]
    %v2939 = vld [vmem:[%s2936 + $0x8] sm:$0xf]
    %v2940 = vld [vmem:[%s2936 + $0xc] sm:$0xf]
    %v2941 = vld [vmem:[%s2936 + $0x10] sm:$0xf]
    %v2942 = vld [vmem:[%s2936 + $0x14] sm:$0xf]
    %v2943 = vld [vmem:[%s2936 + $0x18] sm:$0xf]
    %v2944 = vld [vmem:[%s2936 + $0x1c] sm:$0xf]
    %s2945 = scalar_lea.vmem %s2, 128
    %v2946 = vld [vmem:[%s2945] sm:$0xf]
    %v2947 = vld [vmem:[%s2945 + $0x4] sm:$0xf]
    %v2948 = vld [vmem:[%s2945 + $0x8] sm:$0xf]
    %v2949 = vld [vmem:[%s2945 + $0xc] sm:$0xf]
    %v2950 = vld [vmem:[%s2945 + $0x10] sm:$0xf]
    %v2951 = vld [vmem:[%s2945 + $0x14] sm:$0xf]
    %v2952 = vld [vmem:[%s2945 + $0x18] sm:$0xf]
    %v2953 = vld [vmem:[%s2945 + $0x1c] sm:$0xf]
    %s2954 = scalar_lea.vmem %s2, 160
    %v2955 = vld [vmem:[%s2954] sm:$0xf]
    %v2956 = vld [vmem:[%s2954 + $0x4] sm:$0xf]
    %v2957 = vld [vmem:[%s2954 + $0x8] sm:$0xf]
    %v2958 = vld [vmem:[%s2954 + $0xc] sm:$0xf]
    %v2959 = vld [vmem:[%s2954 + $0x10] sm:$0xf]
    %v2960 = vld [vmem:[%s2954 + $0x14] sm:$0xf]
    %v2961 = vld [vmem:[%s2954 + $0x18] sm:$0xf]
    %v2962 = vld [vmem:[%s2954 + $0x1c] sm:$0xf]
    %v2963 = vpack.c.bf16 %v2841, %v2840
    %v2964 = vpack.c.bf16 %v2843, %v2842
    %v2965 = vpack.c.bf16 %v2845, %v2844
    %v2966 = vpack.c.bf16 %v2847, %v2846
    %v2967 = vpack.c.bf16 %v2849, %v2848
    %v2968 = vpack.c.bf16 %v2851, %v2850
    %v2969 = vpack.c.bf16 %v2853, %v2852
    %v2970 = vpack.c.bf16 %v2855, %v2854
    %v2971 = vpack.c.bf16 %v2857, %v2856
    %v2972 = vpack.c.bf16 %v2859, %v2858
    %v2973 = vpack.c.bf16 %v2861, %v2860
    %v2974 = vpack.c.bf16 %v2863, %v2862
    %v2975 = vpack.c.bf16 %v2865, %v2864
    %v2976 = vpack.c.bf16 %v2867, %v2866
    %v2977 = vpack.c.bf16 %v2869, %v2868
    %v2978 = vpack.c.bf16 %v2871, %v2870
    %v2979 = vpack.c.bf16 %v2679, %v2678
    %v2980 = vpack.c.bf16 %v2681, %v2680
    %v2981 = vpack.c.bf16 %v2683, %v2682
    %v2982 = vpack.c.bf16 %v2685, %v2684
    %v2983 = vpack.c.bf16 %v2687, %v2686
    %v2984 = vpack.c.bf16 %v2689, %v2688
    %v2985 = vpack.c.bf16 %v2691, %v2690
    %v2986 = vpack.c.bf16 %v2693, %v2692
    %v2987 = vpack.c.bf16 %v2695, %v2694
    %v2988 = vpack.c.bf16 %v2697, %v2696
    %v2989 = vpack.c.bf16 %v2699, %v2698
    %v2990 = vpack.c.bf16 %v2701, %v2700
    %v2991 = vpack.c.bf16 %v2703, %v2702
    %v2992 = vpack.c.bf16 %v2705, %v2704
    %v2993 = vpack.c.bf16 %v2707, %v2706
    %v2994 = vpack.c.bf16 %v2709, %v2708
    %v3003 = vunpack.c.l.b16 %v2946
    %v3004 = vunpack.c.l.b16 %v2947
    %v3005 = vunpack.c.l.b16 %v2948
    %v3006 = vunpack.c.l.b16 %v2949
    %v3007 = vunpack.c.l.b16 %v2950
    %v3008 = vunpack.c.l.b16 %v2951
    %v3009 = vunpack.c.l.b16 %v2952
    %v3010 = vunpack.c.l.b16 %v2953
    %v3011 = vpack.c.b16 %v3004, %v3003
    %v3012 = vpack.c.b16 %v3006, %v3005
    %v3013 = vpack.c.b16 %v3008, %v3007
    %v3014 = vpack.c.b16 %v3010, %v3009
    %v3020 = vsel %vm1973, %v2979, 0
    %v3023 = vsel %vm1973, %v2980, 0
    %v3026 = vsel %vm1973, %v2981, 0
    %v3029 = vsel %vm1973, %v2982, 0
    %v3032 = vsel %vm1973, %v2983, 0
    %v3035 = vsel %vm1973, %v2984, 0
    %v3038 = vsel %vm1973, %v2985, 0
    %v3041 = vsel %vm1973, %v2986, 0
    %v3044 = vsel %vm1973, %v2987, 0
    %v3047 = vsel %vm1973, %v2988, 0
    %v3050 = vsel %vm1973, %v2989, 0
    %v3053 = vsel %vm1973, %v2990, 0
    %v3056 = vsel %vm1973, %v2991, 0
    %v3059 = vsel %vm1973, %v2992, 0
    %v3062 = vsel %vm1973, %v2993, 0
    %v3065 = vsel %vm1973, %v2994, 0
    %3067 = vmatpush.bf16.msra.mxu0 0
    %3068 = vmatpush.bf16.msra.mxu0 0
    %3069 = vmatpush.bf16.msra.mxu0 0
    %3070 = vmatpush.bf16.msra.mxu0 0
    %3071 = vmatpush.bf16.msra.mxu0 %v3014
    %3072 = vmatpush.bf16.msra.mxu0 %v3013
    %3073 = vmatpush.bf16.msra.mxu0 %v3012
    %3074 = vmatpush.bf16.msra.mxu0 %v3011
    %3075 = vmatmul.bf16.gmra.mxu0 %v3020
    %v3076 = vpop.f32.mrf.mxu0
    %v3077 = vadd.f32 0.0, %v3076
    %v3078 = vpop.f32.mrf.mxu0
    %v3079 = vadd.f32 0.0, %v3078
    %3080 = vmatmul.bf16.gmra.mxu0 %v3023
    %v3081 = vpop.f32.mrf.mxu0
    %v3082 = vadd.f32 0.0, %v3081
    %v3083 = vpop.f32.mrf.mxu0
    %v3084 = vadd.f32 0.0, %v3083
    %3085 = vmatmul.bf16.gmra.mxu0 %v3026
    %v3086 = vpop.f32.mrf.mxu0
    %v3087 = vadd.f32 0.0, %v3086
    %v3088 = vpop.f32.mrf.mxu0
    %v3089 = vadd.f32 0.0, %v3088
    %3090 = vmatmul.bf16.gmra.mxu0 %v3029
    %v3091 = vpop.f32.mrf.mxu0
    %v3092 = vadd.f32 0.0, %v3091
    %v3093 = vpop.f32.mrf.mxu0
    %v3094 = vadd.f32 0.0, %v3093
    %3095 = vmatmul.bf16.gmra.mxu0 %v3032
    %v3096 = vpop.f32.mrf.mxu0
    %v3097 = vadd.f32 0.0, %v3096
    %v3098 = vpop.f32.mrf.mxu0
    %v3099 = vadd.f32 0.0, %v3098
    %3100 = vmatmul.bf16.gmra.mxu0 %v3035
    %v3101 = vpop.f32.mrf.mxu0
    %v3102 = vadd.f32 0.0, %v3101
    %v3103 = vpop.f32.mrf.mxu0
    %v3104 = vadd.f32 0.0, %v3103
    %3105 = vmatmul.bf16.gmra.mxu0 %v3038
    %v3106 = vpop.f32.mrf.mxu0
    %v3107 = vadd.f32 0.0, %v3106
    %v3108 = vpop.f32.mrf.mxu0
    %v3109 = vadd.f32 0.0, %v3108
    %3110 = vmatmul.bf16.gmra.mxu0 %v3041
    %v3111 = vpop.f32.mrf.mxu0
    %v3112 = vadd.f32 0.0, %v3111
    %v3113 = vpop.f32.mrf.mxu0
    %v3114 = vadd.f32 0.0, %v3113
    %3115 = vmatmul.bf16.gmra.mxu0 %v3044
    %v3116 = vpop.f32.mrf.mxu0
    %v3117 = vadd.f32 0.0, %v3116
    %v3118 = vpop.f32.mrf.mxu0
    %v3119 = vadd.f32 0.0, %v3118
    %3120 = vmatmul.bf16.gmra.mxu0 %v3047
    %v3121 = vpop.f32.mrf.mxu0
    %v3122 = vadd.f32 0.0, %v3121
    %v3123 = vpop.f32.mrf.mxu0
    %v3124 = vadd.f32 0.0, %v3123
    %3125 = vmatmul.bf16.gmra.mxu0 %v3050
    %v3126 = vpop.f32.mrf.mxu0
    %v3127 = vadd.f32 0.0, %v3126
    %v3128 = vpop.f32.mrf.mxu0
    %v3129 = vadd.f32 0.0, %v3128
    %3130 = vmatmul.bf16.gmra.mxu0 %v3053
    %v3131 = vpop.f32.mrf.mxu0
    %v3132 = vadd.f32 0.0, %v3131
    %v3133 = vpop.f32.mrf.mxu0
    %v3134 = vadd.f32 0.0, %v3133
    %3135 = vmatmul.bf16.gmra.mxu0 %v3056
    %v3136 = vpop.f32.mrf.mxu0
    %v3137 = vadd.f32 0.0, %v3136
    %v3138 = vpop.f32.mrf.mxu0
    %v3139 = vadd.f32 0.0, %v3138
    %3140 = vmatmul.bf16.gmra.mxu0 %v3059
    %v3141 = vpop.f32.mrf.mxu0
    %v3142 = vadd.f32 0.0, %v3141
    %v3143 = vpop.f32.mrf.mxu0
    %v3144 = vadd.f32 0.0, %v3143
    %3145 = vmatmul.bf16.gmra.mxu0 %v3062
    %v3146 = vpop.f32.mrf.mxu0
    %v3147 = vadd.f32 0.0, %v3146
    %v3148 = vpop.f32.mrf.mxu0
    %v3149 = vadd.f32 0.0, %v3148
    %3150 = vmatmul.bf16.gmra.mxu0 %v3065
    %v3151 = vpop.f32.mrf.mxu0
    %v3152 = vadd.f32 0.0, %v3151
    %v3153 = vpop.f32.mrf.mxu0
    %v3154 = vadd.f32 0.0, %v3153
    %3155 = vdwg.mxu0
    %v3164 = vunpack.c.l.b16 %v2937
    %v3165 = vunpack.c.l.b16 %v2938
    %v3166 = vunpack.c.l.b16 %v2939
    %v3167 = vunpack.c.l.b16 %v2940
    %v3168 = vunpack.c.l.b16 %v2941
    %v3169 = vunpack.c.l.b16 %v2942
    %v3170 = vunpack.c.l.b16 %v2943
    %v3171 = vunpack.c.l.b16 %v2944
    %v3172 = vpack.c.b16 %v3165, %v3164
    %v3173 = vpack.c.b16 %v3167, %v3166
    %v3174 = vpack.c.b16 %v3169, %v3168
    %v3175 = vpack.c.b16 %v3171, %v3170
    %v3181 = vsel %vm1973, %v2963, 0
    %v3184 = vsel %vm1973, %v2964, 0
    %v3187 = vsel %vm1973, %v2965, 0
    %v3190 = vsel %vm1973, %v2966, 0
    %v3193 = vsel %vm1973, %v2967, 0
    %v3196 = vsel %vm1973, %v2968, 0
    %v3199 = vsel %vm1973, %v2969, 0
    %v3202 = vsel %vm1973, %v2970, 0
    %v3205 = vsel %vm1973, %v2971, 0
    %v3208 = vsel %vm1973, %v2972, 0
    %v3211 = vsel %vm1973, %v2973, 0
    %v3214 = vsel %vm1973, %v2974, 0
    %v3217 = vsel %vm1973, %v2975, 0
    %v3220 = vsel %vm1973, %v2976, 0
    %v3223 = vsel %vm1973, %v2977, 0
    %v3226 = vsel %vm1973, %v2978, 0
    %3228 = vmatpush.bf16.msra.mxu0 0
    %3229 = vmatpush.bf16.msra.mxu0 0
    %3230 = vmatpush.bf16.msra.mxu0 0
    %3231 = vmatpush.bf16.msra.mxu0 0
    %3232 = vmatpush.bf16.msra.mxu0 %v3175
    %3233 = vmatpush.bf16.msra.mxu0 %v3174
    %3234 = vmatpush.bf16.msra.mxu0 %v3173
    %3235 = vmatpush.bf16.msra.mxu0 %v3172
    %3236 = vmatmul.bf16.gmra.mxu0 %v3181
    %v3237 = vpop.f32.mrf.mxu0
    %v3238 = vadd.f32 %v3077, %v3237
    %v3239 = vpop.f32.mrf.mxu0
    %v3240 = vadd.f32 %v3079, %v3239
    %3241 = vmatmul.bf16.gmra.mxu0 %v3184
    %v3242 = vpop.f32.mrf.mxu0
    %v3243 = vadd.f32 %v3082, %v3242
    %v3244 = vpop.f32.mrf.mxu0
    %v3245 = vadd.f32 %v3084, %v3244
    %3246 = vmatmul.bf16.gmra.mxu0 %v3187
    %v3247 = vpop.f32.mrf.mxu0
    %v3248 = vadd.f32 %v3087, %v3247
    %v3249 = vpop.f32.mrf.mxu0
    %v3250 = vadd.f32 %v3089, %v3249
    %3251 = vmatmul.bf16.gmra.mxu0 %v3190
    %v3252 = vpop.f32.mrf.mxu0
    %v3253 = vadd.f32 %v3092, %v3252
    %v3254 = vpop.f32.mrf.mxu0
    %v3255 = vadd.f32 %v3094, %v3254
    %3256 = vmatmul.bf16.gmra.mxu0 %v3193
    %v3257 = vpop.f32.mrf.mxu0
    %v3258 = vadd.f32 %v3097, %v3257
    %v3259 = vpop.f32.mrf.mxu0
    %v3260 = vadd.f32 %v3099, %v3259
    %3261 = vmatmul.bf16.gmra.mxu0 %v3196
    %v3262 = vpop.f32.mrf.mxu0
    %v3263 = vadd.f32 %v3102, %v3262
    %v3264 = vpop.f32.mrf.mxu0
    %v3265 = vadd.f32 %v3104, %v3264
    %3266 = vmatmul.bf16.gmra.mxu0 %v3199
    %v3267 = vpop.f32.mrf.mxu0
    %v3268 = vadd.f32 %v3107, %v3267
    %v3269 = vpop.f32.mrf.mxu0
    %v3270 = vadd.f32 %v3109, %v3269
    %3271 = vmatmul.bf16.gmra.mxu0 %v3202
    %v3272 = vpop.f32.mrf.mxu0
    %v3273 = vadd.f32 %v3112, %v3272
    %v3274 = vpop.f32.mrf.mxu0
    %v3275 = vadd.f32 %v3114, %v3274
    %3276 = vmatmul.bf16.gmra.mxu0 %v3205
    %v3277 = vpop.f32.mrf.mxu0
    %v3278 = vadd.f32 %v3117, %v3277
    %v3279 = vpop.f32.mrf.mxu0
    %v3280 = vadd.f32 %v3119, %v3279
    %3281 = vmatmul.bf16.gmra.mxu0 %v3208
    %v3282 = vpop.f32.mrf.mxu0
    %v3283 = vadd.f32 %v3122, %v3282
    %v3284 = vpop.f32.mrf.mxu0
    %v3285 = vadd.f32 %v3124, %v3284
    %3286 = vmatmul.bf16.gmra.mxu0 %v3211
    %v3287 = vpop.f32.mrf.mxu0
    %v3288 = vadd.f32 %v3127, %v3287
    %v3289 = vpop.f32.mrf.mxu0
    %v3290 = vadd.f32 %v3129, %v3289
    %3291 = vmatmul.bf16.gmra.mxu0 %v3214
    %v3292 = vpop.f32.mrf.mxu0
    %v3293 = vadd.f32 %v3132, %v3292
    %v3294 = vpop.f32.mrf.mxu0
    %v3295 = vadd.f32 %v3134, %v3294
    %3296 = vmatmul.bf16.gmra.mxu0 %v3217
    %v3297 = vpop.f32.mrf.mxu0
    %v3298 = vadd.f32 %v3137, %v3297
    %v3299 = vpop.f32.mrf.mxu0
    %v3300 = vadd.f32 %v3139, %v3299
    %3301 = vmatmul.bf16.gmra.mxu0 %v3220
    %v3302 = vpop.f32.mrf.mxu0
    %v3303 = vadd.f32 %v3142, %v3302
    %v3304 = vpop.f32.mrf.mxu0
    %v3305 = vadd.f32 %v3144, %v3304
    %3306 = vmatmul.bf16.gmra.mxu0 %v3223
    %v3307 = vpop.f32.mrf.mxu0
    %v3308 = vadd.f32 %v3147, %v3307
    %v3309 = vpop.f32.mrf.mxu0
    %v3310 = vadd.f32 %v3149, %v3309
    %3311 = vmatmul.bf16.gmra.mxu0 %v3226
    %v3312 = vpop.f32.mrf.mxu0
    %v3313 = vadd.f32 %v3152, %v3312
    %v3314 = vpop.f32.mrf.mxu0
    %v3315 = vadd.f32 %v3154, %v3314
    %3316 = vdwg.mxu0
    %v3317 = vpack.c.bf16 %v2905, %v2904
    %v3318 = vpack.c.bf16 %v2907, %v2906
    %v3319 = vpack.c.bf16 %v2909, %v2908
    %v3320 = vpack.c.bf16 %v2911, %v2910
    %v3321 = vpack.c.bf16 %v2913, %v2912
    %v3322 = vpack.c.bf16 %v2915, %v2914
    %v3323 = vpack.c.bf16 %v2917, %v2916
    %v3324 = vpack.c.bf16 %v2919, %v2918
    %v3325 = vpack.c.bf16 %v2921, %v2920
    %v3326 = vpack.c.bf16 %v2923, %v2922
    %v3327 = vpack.c.bf16 %v2925, %v2924
    %v3328 = vpack.c.bf16 %v2927, %v2926
    %v3329 = vpack.c.bf16 %v2929, %v2928
    %v3330 = vpack.c.bf16 %v2931, %v2930
    %v3331 = vpack.c.bf16 %v2933, %v2932
    %v3332 = vpack.c.bf16 %v2935, %v2934
    %v3341 = vunpack.c.l.b16 %v2955
    %v3342 = vunpack.c.l.b16 %v2956
    %v3343 = vunpack.c.l.b16 %v2957
    %v3344 = vunpack.c.l.b16 %v2958
    %v3345 = vunpack.c.l.b16 %v2959
    %v3346 = vunpack.c.l.b16 %v2960
    %v3347 = vunpack.c.l.b16 %v2961
    %v3348 = vunpack.c.l.b16 %v2962
    %v3349 = vpack.c.b16 %v3342, %v3341
    %v3350 = vpack.c.b16 %v3344, %v3343
    %v3351 = vpack.c.b16 %v3346, %v3345
    %v3352 = vpack.c.b16 %v3348, %v3347
    %v3358 = vsel %vm1973, %v3317, 0
    %v3361 = vsel %vm1973, %v3318, 0
    %v3364 = vsel %vm1973, %v3319, 0
    %v3367 = vsel %vm1973, %v3320, 0
    %v3370 = vsel %vm1973, %v3321, 0
    %v3373 = vsel %vm1973, %v3322, 0
    %v3376 = vsel %vm1973, %v3323, 0
    %v3379 = vsel %vm1973, %v3324, 0
    %v3382 = vsel %vm1973, %v3325, 0
    %v3385 = vsel %vm1973, %v3326, 0
    %v3388 = vsel %vm1973, %v3327, 0
    %v3391 = vsel %vm1973, %v3328, 0
    %v3394 = vsel %vm1973, %v3329, 0
    %v3397 = vsel %vm1973, %v3330, 0
    %v3400 = vsel %vm1973, %v3331, 0
    %v3403 = vsel %vm1973, %v3332, 0
    %3405 = vmatpush.bf16.msra.mxu0 0
    %3406 = vmatpush.bf16.msra.mxu0 0
    %3407 = vmatpush.bf16.msra.mxu0 0
    %3408 = vmatpush.bf16.msra.mxu0 0
    %3409 = vmatpush.bf16.msra.mxu0 %v3352
    %3410 = vmatpush.bf16.msra.mxu0 %v3351
    %3411 = vmatpush.bf16.msra.mxu0 %v3350
    %3412 = vmatpush.bf16.msra.mxu0 %v3349
    %3413 = vmatmul.bf16.gmra.mxu0 %v3358
    %v3414 = vpop.f32.mrf.mxu0
    %v3415 = vadd.f32 0.0, %v3414
    %v3416 = vpop.f32.mrf.mxu0
    %v3417 = vadd.f32 0.0, %v3416
    %3418 = vmatmul.bf16.gmra.mxu0 %v3361
    %v3419 = vpop.f32.mrf.mxu0
    %v3420 = vadd.f32 0.0, %v3419
    %v3421 = vpop.f32.mrf.mxu0
    %v3422 = vadd.f32 0.0, %v3421
    %3423 = vmatmul.bf16.gmra.mxu0 %v3364
    %v3424 = vpop.f32.mrf.mxu0
    %v3425 = vadd.f32 0.0, %v3424
    %v3426 = vpop.f32.mrf.mxu0
    %v3427 = vadd.f32 0.0, %v3426
    %3428 = vmatmul.bf16.gmra.mxu0 %v3367
    %v3429 = vpop.f32.mrf.mxu0
    %v3430 = vadd.f32 0.0, %v3429
    %v3431 = vpop.f32.mrf.mxu0
    %v3432 = vadd.f32 0.0, %v3431
    %3433 = vmatmul.bf16.gmra.mxu0 %v3370
    %v3434 = vpop.f32.mrf.mxu0
    %v3435 = vadd.f32 0.0, %v3434
    %v3436 = vpop.f32.mrf.mxu0
    %v3437 = vadd.f32 0.0, %v3436
    %3438 = vmatmul.bf16.gmra.mxu0 %v3373
    %v3439 = vpop.f32.mrf.mxu0
    %v3440 = vadd.f32 0.0, %v3439
    %v3441 = vpop.f32.mrf.mxu0
    %v3442 = vadd.f32 0.0, %v3441
    %3443 = vmatmul.bf16.gmra.mxu0 %v3376
    %v3444 = vpop.f32.mrf.mxu0
    %v3445 = vadd.f32 0.0, %v3444
    %v3446 = vpop.f32.mrf.mxu0
    %v3447 = vadd.f32 0.0, %v3446
    %3448 = vmatmul.bf16.gmra.mxu0 %v3379
    %v3449 = vpop.f32.mrf.mxu0
    %v3450 = vadd.f32 0.0, %v3449
    %v3451 = vpop.f32.mrf.mxu0
    %v3452 = vadd.f32 0.0, %v3451
    %3453 = vmatmul.bf16.gmra.mxu0 %v3382
    %v3454 = vpop.f32.mrf.mxu0
    %v3455 = vadd.f32 0.0, %v3454
    %v3456 = vpop.f32.mrf.mxu0
    %v3457 = vadd.f32 0.0, %v3456
    %3458 = vmatmul.bf16.gmra.mxu0 %v3385
    %v3459 = vpop.f32.mrf.mxu0
    %v3460 = vadd.f32 0.0, %v3459
    %v3461 = vpop.f32.mrf.mxu0
    %v3462 = vadd.f32 0.0, %v3461
    %3463 = vmatmul.bf16.gmra.mxu0 %v3388
    %v3464 = vpop.f32.mrf.mxu0
    %v3465 = vadd.f32 0.0, %v3464
    %v3466 = vpop.f32.mrf.mxu0
    %v3467 = vadd.f32 0.0, %v3466
    %3468 = vmatmul.bf16.gmra.mxu0 %v3391
    %v3469 = vpop.f32.mrf.mxu0
    %v3470 = vadd.f32 0.0, %v3469
    %v3471 = vpop.f32.mrf.mxu0
    %v3472 = vadd.f32 0.0, %v3471
    %3473 = vmatmul.bf16.gmra.mxu0 %v3394
    %v3474 = vpop.f32.mrf.mxu0
    %v3475 = vadd.f32 0.0, %v3474
    %v3476 = vpop.f32.mrf.mxu0
    %v3477 = vadd.f32 0.0, %v3476
    %3478 = vmatmul.bf16.gmra.mxu0 %v3397
    %v3479 = vpop.f32.mrf.mxu0
    %v3480 = vadd.f32 0.0, %v3479
    %v3481 = vpop.f32.mrf.mxu0
    %v3482 = vadd.f32 0.0, %v3481
    %3483 = vmatmul.bf16.gmra.mxu0 %v3400
    %v3484 = vpop.f32.mrf.mxu0
    %v3485 = vadd.f32 0.0, %v3484
    %v3486 = vpop.f32.mrf.mxu0
    %v3487 = vadd.f32 0.0, %v3486
    %3488 = vmatmul.bf16.gmra.mxu0 %v3403
    %v3489 = vpop.f32.mrf.mxu0
    %v3490 = vadd.f32 0.0, %v3489
    %v3491 = vpop.f32.mrf.mxu0
    %v3492 = vadd.f32 0.0, %v3491
    %3493 = vdwg.mxu0
    %v3494 = vadd.f32 %v3238, %v3415
    %v3495 = vadd.f32 %v3240, %v3417
    %v3496 = vadd.f32 %v3243, %v3420
    %v3497 = vadd.f32 %v3245, %v3422
    %v3498 = vadd.f32 %v3248, %v3425
    %v3499 = vadd.f32 %v3250, %v3427
    %v3500 = vadd.f32 %v3253, %v3430
    %v3501 = vadd.f32 %v3255, %v3432
    %v3502 = vadd.f32 %v3258, %v3435
    %v3503 = vadd.f32 %v3260, %v3437
    %v3504 = vadd.f32 %v3263, %v3440
    %v3505 = vadd.f32 %v3265, %v3442
    %v3506 = vadd.f32 %v3268, %v3445
    %v3507 = vadd.f32 %v3270, %v3447
    %v3508 = vadd.f32 %v3273, %v3450
    %v3509 = vadd.f32 %v3275, %v3452
    %v3510 = vadd.f32 %v3278, %v3455
    %v3511 = vadd.f32 %v3280, %v3457
    %v3512 = vadd.f32 %v3283, %v3460
    %v3513 = vadd.f32 %v3285, %v3462
    %v3514 = vadd.f32 %v3288, %v3465
    %v3515 = vadd.f32 %v3290, %v3467
    %v3516 = vadd.f32 %v3293, %v3470
    %v3517 = vadd.f32 %v3295, %v3472
    %v3518 = vadd.f32 %v3298, %v3475
    %v3519 = vadd.f32 %v3300, %v3477
    %v3520 = vadd.f32 %v3303, %v3480
    %v3521 = vadd.f32 %v3305, %v3482
    %v3522 = vadd.f32 %v3308, %v3485
    %v3523 = vadd.f32 %v3310, %v3487
    %v3524 = vadd.f32 %v3313, %v3490
    %v3525 = vadd.f32 %v3315, %v3492
    %s3526 = scalar_lea.vmem %s3, 2
    %v3527 = vld [vmem:[%s3526] sm:$0x1]
    %v3529 = vperm.slane %v3527, 0
    %v3531 = vadd.f32 %v3494, %v3529
    %v3532 = vadd.f32 %v3495, %v3529
    %v3533 = vadd.f32 %v3496, %v3529
    %v3534 = vadd.f32 %v3497, %v3529
    %v3535 = vadd.f32 %v3498, %v3529
    %v3536 = vadd.f32 %v3499, %v3529
    %v3537 = vadd.f32 %v3500, %v3529
    %v3538 = vadd.f32 %v3501, %v3529
    %v3539 = vadd.f32 %v3502, %v3529
    %v3540 = vadd.f32 %v3503, %v3529
    %v3541 = vadd.f32 %v3504, %v3529
    %v3542 = vadd.f32 %v3505, %v3529
    %v3543 = vadd.f32 %v3506, %v3529
    %v3544 = vadd.f32 %v3507, %v3529
    %v3545 = vadd.f32 %v3508, %v3529
    %v3546 = vadd.f32 %v3509, %v3529
    %v3547 = vadd.f32 %v3510, %v3529
    %v3548 = vadd.f32 %v3511, %v3529
    %v3549 = vadd.f32 %v3512, %v3529
    %v3550 = vadd.f32 %v3513, %v3529
    %v3551 = vadd.f32 %v3514, %v3529
    %v3552 = vadd.f32 %v3515, %v3529
    %v3553 = vadd.f32 %v3516, %v3529
    %v3554 = vadd.f32 %v3517, %v3529
    %v3555 = vadd.f32 %v3518, %v3529
    %v3556 = vadd.f32 %v3519, %v3529
    %v3557 = vadd.f32 %v3520, %v3529
    %v3558 = vadd.f32 %v3521, %v3529
    %v3559 = vadd.f32 %v3522, %v3529
    %v3560 = vadd.f32 %v3523, %v3529
    %v3561 = vadd.f32 %v3524, %v3529
    %v3562 = vadd.f32 %v3525, %v3529
    %v3563 = vmax.f32 %v3531, 0.0
    %v3564 = vmax.f32 %v3532, 0.0
    %v3565 = vmax.f32 %v3533, 0.0
    %v3566 = vmax.f32 %v3534, 0.0
    %v3567 = vmax.f32 %v3535, 0.0
    %v3568 = vmax.f32 %v3536, 0.0
    %v3569 = vmax.f32 %v3537, 0.0
    %v3570 = vmax.f32 %v3538, 0.0
    %v3571 = vmax.f32 %v3539, 0.0
    %v3572 = vmax.f32 %v3540, 0.0
    %v3573 = vmax.f32 %v3541, 0.0
    %v3574 = vmax.f32 %v3542, 0.0
    %v3575 = vmax.f32 %v3543, 0.0
    %v3576 = vmax.f32 %v3544, 0.0
    %v3577 = vmax.f32 %v3545, 0.0
    %v3578 = vmax.f32 %v3546, 0.0
    %v3579 = vmax.f32 %v3547, 0.0
    %v3580 = vmax.f32 %v3548, 0.0
    %v3581 = vmax.f32 %v3549, 0.0
    %v3582 = vmax.f32 %v3550, 0.0
    %v3583 = vmax.f32 %v3551, 0.0
    %v3584 = vmax.f32 %v3552, 0.0
    %v3585 = vmax.f32 %v3553, 0.0
    %v3586 = vmax.f32 %v3554, 0.0
    %v3587 = vmax.f32 %v3555, 0.0
    %v3588 = vmax.f32 %v3556, 0.0
    %v3589 = vmax.f32 %v3557, 0.0
    %v3590 = vmax.f32 %v3558, 0.0
    %v3591 = vmax.f32 %v3559, 0.0
    %v3592 = vmax.f32 %v3560, 0.0
    %v3593 = vmax.f32 %v3561, 0.0
    %v3594 = vmax.f32 %v3562, 0.0
    %v3627 = vrot.slane %v3563, 4
    %v3628 = vrot.slane %v3564, 4
    %v3629 = vsel %vm920, %v3627, %v3628
    %v3630 = vrot.slane %v3565, 4
    %v3631 = vsel %vm920, %v3628, %v3630
    %v3632 = vrot.slane %v3566, 4
    %v3633 = vsel %vm920, %v3630, %v3632
    %v3634 = vrot.slane %v3567, 4
    %v3635 = vsel %vm920, %v3632, %v3634
    %v3636 = vrot.slane %v3568, 4
    %v3637 = vsel %vm920, %v3634, %v3636
    %v3638 = vrot.slane %v3569, 4
    %v3639 = vsel %vm920, %v3636, %v3638
    %v3640 = vrot.slane %v3570, 4
    %v3641 = vsel %vm920, %v3638, %v3640
    %v3642 = vrot.slane %v3571, 4
    %v3643 = vsel %vm920, %v3640, %v3642
    %v3644 = vrot.slane %v3572, 4
    %v3645 = vsel %vm920, %v3642, %v3644
    %v3646 = vrot.slane %v3573, 4
    %v3647 = vsel %vm920, %v3644, %v3646
    %v3648 = vrot.slane %v3574, 4
    %v3649 = vsel %vm920, %v3646, %v3648
    %v3650 = vrot.slane %v3575, 4
    %v3651 = vsel %vm920, %v3648, %v3650
    %v3652 = vrot.slane %v3576, 4
    %v3653 = vsel %vm920, %v3650, %v3652
    %v3654 = vrot.slane %v3577, 4
    %v3655 = vsel %vm920, %v3652, %v3654
    %v3656 = vrot.slane %v3578, 4
    %v3657 = vsel %vm920, %v3654, %v3656
    %v3658 = vrot.slane %v3579, 4
    %v3659 = vsel %vm920, %v3656, %v3658
    %v3660 = vrot.slane %v3580, 4
    %v3661 = vsel %vm920, %v3658, %v3660
    %v3662 = vrot.slane %v3581, 4
    %v3663 = vsel %vm920, %v3660, %v3662
    %v3664 = vrot.slane %v3582, 4
    %v3665 = vsel %vm920, %v3662, %v3664
    %v3666 = vrot.slane %v3583, 4
    %v3667 = vsel %vm920, %v3664, %v3666
    %v3668 = vrot.slane %v3584, 4
    %v3669 = vsel %vm920, %v3666, %v3668
    %v3670 = vrot.slane %v3585, 4
    %v3671 = vsel %vm920, %v3668, %v3670
    %v3672 = vrot.slane %v3586, 4
    %v3673 = vsel %vm920, %v3670, %v3672
    %v3674 = vrot.slane %v3587, 4
    %v3675 = vsel %vm920, %v3672, %v3674
    %v3676 = vrot.slane %v3588, 4
    %v3677 = vsel %vm920, %v3674, %v3676
    %v3678 = vrot.slane %v3589, 4
    %v3679 = vsel %vm920, %v3676, %v3678
    %v3680 = vrot.slane %v3590, 4
    %v3681 = vsel %vm920, %v3678, %v3680
    %v3682 = vrot.slane %v3591, 4
    %v3683 = vsel %vm920, %v3680, %v3682
    %v3684 = vrot.slane %v3592, 4
    %v3685 = vsel %vm920, %v3682, %v3684
    %v3686 = vrot.slane %v3593, 4
    %v3687 = vsel %vm920, %v3684, %v3686
    %v3688 = vrot.slane %v3594, 4
    %v3689 = vsel %vm920, %v3686, %v3688
    %v3722 = vsel %vm920, %v3688, 0.0
    %v3723 = vmax.f32 %v3563, %v3629
    %v3724 = vmax.f32 %v3564, %v3631
    %v3725 = vmax.f32 %v3565, %v3633
    %v3726 = vmax.f32 %v3566, %v3635
    %v3727 = vmax.f32 %v3567, %v3637
    %v3728 = vmax.f32 %v3568, %v3639
    %v3729 = vmax.f32 %v3569, %v3641
    %v3730 = vmax.f32 %v3570, %v3643
    %v3731 = vmax.f32 %v3571, %v3645
    %v3732 = vmax.f32 %v3572, %v3647
    %v3733 = vmax.f32 %v3573, %v3649
    %v3734 = vmax.f32 %v3574, %v3651
    %v3735 = vmax.f32 %v3575, %v3653
    %v3736 = vmax.f32 %v3576, %v3655
    %v3737 = vmax.f32 %v3577, %v3657
    %v3738 = vmax.f32 %v3578, %v3659
    %v3739 = vmax.f32 %v3579, %v3661
    %v3740 = vmax.f32 %v3580, %v3663
    %v3741 = vmax.f32 %v3581, %v3665
    %v3742 = vmax.f32 %v3582, %v3667
    %v3743 = vmax.f32 %v3583, %v3669
    %v3744 = vmax.f32 %v3584, %v3671
    %v3745 = vmax.f32 %v3585, %v3673
    %v3746 = vmax.f32 %v3586, %v3675
    %v3747 = vmax.f32 %v3587, %v3677
    %v3748 = vmax.f32 %v3588, %v3679
    %v3749 = vmax.f32 %v3589, %v3681
    %v3750 = vmax.f32 %v3590, %v3683
    %v3751 = vmax.f32 %v3591, %v3685
    %v3752 = vmax.f32 %v3592, %v3687
    %v3753 = vmax.f32 %v3593, %v3689
    %v3754 = vmax.f32 %v3594, %v3722
    %v3755 = vsel %vm707, 0.0, %v3723
    %v3756 = vsel %vm708, 0.0, %v3724
    %v3757 = vsel %vm709, 0.0, %v3725
    %v3758 = vsel %vm710, 0.0, %v3726
    %v3759 = vsel %vm711, 0.0, %v3727
    %v3760 = vsel %vm712, 0.0, %v3728
    %v3761 = vsel %vm713, 0.0, %v3729
    %v3762 = vsel %vm714, 0.0, %v3730
    %v3763 = vsel %vm715, 0.0, %v3731
    %v3764 = vsel %vm716, 0.0, %v3732
    %v3765 = vsel %vm717, 0.0, %v3733
    %v3766 = vsel %vm718, 0.0, %v3734
    %v3767 = vsel %vm719, 0.0, %v3735
    %v3768 = vsel %vm720, 0.0, %v3736
    %v3769 = vsel %vm721, 0.0, %v3737
    %v3770 = vsel %vm722, 0.0, %v3738
    %v3771 = vsel %vm723, 0.0, %v3739
    %v3772 = vsel %vm724, 0.0, %v3740
    %v3773 = vsel %vm725, 0.0, %v3741
    %v3774 = vsel %vm726, 0.0, %v3742
    %v3775 = vsel %vm727, 0.0, %v3743
    %v3776 = vsel %vm728, 0.0, %v3744
    %v3777 = vsel %vm729, 0.0, %v3745
    %v3778 = vsel %vm730, 0.0, %v3746
    %v3779 = vsel %vm731, 0.0, %v3747
    %v3780 = vsel %vm732, 0.0, %v3748
    %v3781 = vsel %vm733, 0.0, %v3749
    %v3782 = vsel %vm734, 0.0, %v3750
    %v3783 = vsel %vm735, 0.0, %v3751
    %v3784 = vsel %vm736, 0.0, %v3752
    %v3785 = vsel %vm737, 0.0, %v3753
    %vm3786 = vcmp.eq.s32.totalorder %v416, 120
    %vm3787 = vcmp.eq.s32.totalorder %v417, 120
    %vm3788 = vcmp.eq.s32.totalorder %v418, 120
    %vm3789 = vcmp.eq.s32.totalorder %v419, 120
    %vm3790 = vcmp.eq.s32.totalorder %v420, 120
    %vm3791 = vcmp.eq.s32.totalorder %v421, 120
    %vm3792 = vcmp.eq.s32.totalorder %v422, 120
    %vm3793 = vcmp.eq.s32.totalorder %v423, 120
    %vm3794 = vcmp.eq.s32.totalorder %v424, 120
    %vm3795 = vcmp.eq.s32.totalorder %v425, 120
    %vm3796 = vcmp.eq.s32.totalorder %v426, 120
    %vm3797 = vcmp.eq.s32.totalorder %v427, 120
    %vm3798 = vcmp.eq.s32.totalorder %v428, 120
    %vm3799 = vcmp.eq.s32.totalorder %v429, 120
    %vm3800 = vcmp.eq.s32.totalorder %v430, 120
    %vm3801 = vcmp.eq.s32.totalorder %v431, 120
    %vm3802 = vcmp.eq.s32.totalorder %v432, 120
    %vm3803 = vcmp.eq.s32.totalorder %v433, 120
    %vm3804 = vcmp.eq.s32.totalorder %v434, 120
    %vm3805 = vcmp.eq.s32.totalorder %v435, 120
    %vm3806 = vcmp.eq.s32.totalorder %v436, 120
    %vm3807 = vcmp.eq.s32.totalorder %v437, 120
    %vm3808 = vcmp.eq.s32.totalorder %v438, 120
    %vm3809 = vcmp.eq.s32.totalorder %v439, 120
    %vm3810 = vcmp.eq.s32.totalorder %v440, 120
    %vm3811 = vcmp.eq.s32.totalorder %v441, 120
    %vm3812 = vcmp.eq.s32.totalorder %v442, 120
    %vm3813 = vcmp.eq.s32.totalorder %v443, 120
    %vm3814 = vcmp.eq.s32.totalorder %v444, 120
    %vm3815 = vcmp.eq.s32.totalorder %v445, 120
    %vm3816 = vcmp.eq.s32.totalorder %v446, 120
    %v3817 = vsel %vm3786, 0.0, %v3724
    %v3818 = vsel %vm3787, 0.0, %v3725
    %v3819 = vsel %vm3788, 0.0, %v3726
    %v3820 = vsel %vm3789, 0.0, %v3727
    %v3821 = vsel %vm3790, 0.0, %v3728
    %v3822 = vsel %vm3791, 0.0, %v3729
    %v3823 = vsel %vm3792, 0.0, %v3730
    %v3824 = vsel %vm3793, 0.0, %v3731
    %v3825 = vsel %vm3794, 0.0, %v3732
    %v3826 = vsel %vm3795, 0.0, %v3733
    %v3827 = vsel %vm3796, 0.0, %v3734
    %v3828 = vsel %vm3797, 0.0, %v3735
    %v3829 = vsel %vm3798, 0.0, %v3736
    %v3830 = vsel %vm3799, 0.0, %v3737
    %v3831 = vsel %vm3800, 0.0, %v3738
    %v3832 = vsel %vm3801, 0.0, %v3739
    %v3833 = vsel %vm3802, 0.0, %v3740
    %v3834 = vsel %vm3803, 0.0, %v3741
    %v3835 = vsel %vm3804, 0.0, %v3742
    %v3836 = vsel %vm3805, 0.0, %v3743
    %v3837 = vsel %vm3806, 0.0, %v3744
    %v3838 = vsel %vm3807, 0.0, %v3745
    %v3839 = vsel %vm3808, 0.0, %v3746
    %v3840 = vsel %vm3809, 0.0, %v3747
    %v3841 = vsel %vm3810, 0.0, %v3748
    %v3842 = vsel %vm3811, 0.0, %v3749
    %v3843 = vsel %vm3812, 0.0, %v3750
    %v3844 = vsel %vm3813, 0.0, %v3751
    %v3845 = vsel %vm3814, 0.0, %v3752
    %v3846 = vsel %vm3815, 0.0, %v3753
    %v3847 = vsel %vm3816, 0.0, %v3754
    %s3848 = scalar_lea.vmem %s2, 192
    %v3849 = vld [vmem:[%s3848] sm:$0xf]
    %v3850 = vld [vmem:[%s3848 + $0x4] sm:$0xf]
    %v3851 = vld [vmem:[%s3848 + $0x8] sm:$0xf]
    %v3852 = vld [vmem:[%s3848 + $0xc] sm:$0xf]
    %v3853 = vld [vmem:[%s3848 + $0x10] sm:$0xf]
    %v3854 = vld [vmem:[%s3848 + $0x14] sm:$0xf]
    %v3855 = vld [vmem:[%s3848 + $0x18] sm:$0xf]
    %v3856 = vld [vmem:[%s3848 + $0x1c] sm:$0xf]
    %s3857 = scalar_lea.vmem %s2, 224
    %v3858 = vld [vmem:[%s3857] sm:$0xf]
    %v3859 = vld [vmem:[%s3857 + $0x4] sm:$0xf]
    %v3860 = vld [vmem:[%s3857 + $0x8] sm:$0xf]
    %v3861 = vld [vmem:[%s3857 + $0xc] sm:$0xf]
    %v3862 = vld [vmem:[%s3857 + $0x10] sm:$0xf]
    %v3863 = vld [vmem:[%s3857 + $0x14] sm:$0xf]
    %v3864 = vld [vmem:[%s3857 + $0x18] sm:$0xf]
    %v3865 = vld [vmem:[%s3857 + $0x1c] sm:$0xf]
    %s3866 = scalar_lea.vmem %s2, 256
    %v3867 = vld [vmem:[%s3866] sm:$0xf]
    %v3868 = vld [vmem:[%s3866 + $0x4] sm:$0xf]
    %v3869 = vld [vmem:[%s3866 + $0x8] sm:$0xf]
    %v3870 = vld [vmem:[%s3866 + $0xc] sm:$0xf]
    %v3871 = vld [vmem:[%s3866 + $0x10] sm:$0xf]
    %v3872 = vld [vmem:[%s3866 + $0x14] sm:$0xf]
    %v3873 = vld [vmem:[%s3866 + $0x18] sm:$0xf]
    %v3874 = vld [vmem:[%s3866 + $0x1c] sm:$0xf]
    %v3875 = vpack.c.bf16 %v3755, 0.0
    %v3876 = vpack.c.bf16 %v3757, %v3756
    %v3877 = vpack.c.bf16 %v3759, %v3758
    %v3878 = vpack.c.bf16 %v3761, %v3760
    %v3879 = vpack.c.bf16 %v3763, %v3762
    %v3880 = vpack.c.bf16 %v3765, %v3764
    %v3881 = vpack.c.bf16 %v3767, %v3766
    %v3882 = vpack.c.bf16 %v3769, %v3768
    %v3883 = vpack.c.bf16 %v3771, %v3770
    %v3884 = vpack.c.bf16 %v3773, %v3772
    %v3885 = vpack.c.bf16 %v3775, %v3774
    %v3886 = vpack.c.bf16 %v3777, %v3776
    %v3887 = vpack.c.bf16 %v3779, %v3778
    %v3888 = vpack.c.bf16 %v3781, %v3780
    %v3889 = vpack.c.bf16 %v3783, %v3782
    %v3890 = vpack.c.bf16 %v3785, %v3784
    %v3891 = vpack.c.bf16 %v3724, %v3723
    %v3892 = vpack.c.bf16 %v3726, %v3725
    %v3893 = vpack.c.bf16 %v3728, %v3727
    %v3894 = vpack.c.bf16 %v3730, %v3729
    %v3895 = vpack.c.bf16 %v3732, %v3731
    %v3896 = vpack.c.bf16 %v3734, %v3733
    %v3897 = vpack.c.bf16 %v3736, %v3735
    %v3898 = vpack.c.bf16 %v3738, %v3737
    %v3899 = vpack.c.bf16 %v3740, %v3739
    %v3900 = vpack.c.bf16 %v3742, %v3741
    %v3901 = vpack.c.bf16 %v3744, %v3743
    %v3902 = vpack.c.bf16 %v3746, %v3745
    %v3903 = vpack.c.bf16 %v3748, %v3747
    %v3904 = vpack.c.bf16 %v3750, %v3749
    %v3905 = vpack.c.bf16 %v3752, %v3751
    %v3906 = vpack.c.bf16 %v3754, %v3753
    %v3915 = vunpack.c.l.b16 %v3858
    %v3916 = vunpack.c.l.b16 %v3859
    %v3917 = vunpack.c.l.b16 %v3860
    %v3918 = vunpack.c.l.b16 %v3861
    %v3919 = vunpack.c.l.b16 %v3862
    %v3920 = vunpack.c.l.b16 %v3863
    %v3921 = vunpack.c.l.b16 %v3864
    %v3922 = vunpack.c.l.b16 %v3865
    %v3923 = vpack.c.b16 %v3916, %v3915
    %v3924 = vpack.c.b16 %v3918, %v3917
    %v3925 = vpack.c.b16 %v3920, %v3919
    %v3926 = vpack.c.b16 %v3922, %v3921
    %v3932 = vsel %vm1973, %v3891, 0
    %v3935 = vsel %vm1973, %v3892, 0
    %v3938 = vsel %vm1973, %v3893, 0
    %v3941 = vsel %vm1973, %v3894, 0
    %v3944 = vsel %vm1973, %v3895, 0
    %v3947 = vsel %vm1973, %v3896, 0
    %v3950 = vsel %vm1973, %v3897, 0
    %v3953 = vsel %vm1973, %v3898, 0
    %v3956 = vsel %vm1973, %v3899, 0
    %v3959 = vsel %vm1973, %v3900, 0
    %v3962 = vsel %vm1973, %v3901, 0
    %v3965 = vsel %vm1973, %v3902, 0
    %v3968 = vsel %vm1973, %v3903, 0
    %v3971 = vsel %vm1973, %v3904, 0
    %v3974 = vsel %vm1973, %v3905, 0
    %v3977 = vsel %vm1973, %v3906, 0
    %3979 = vmatpush.bf16.msra.mxu0 0
    %3980 = vmatpush.bf16.msra.mxu0 0
    %3981 = vmatpush.bf16.msra.mxu0 0
    %3982 = vmatpush.bf16.msra.mxu0 0
    %3983 = vmatpush.bf16.msra.mxu0 %v3926
    %3984 = vmatpush.bf16.msra.mxu0 %v3925
    %3985 = vmatpush.bf16.msra.mxu0 %v3924
    %3986 = vmatpush.bf16.msra.mxu0 %v3923
    %3987 = vmatmul.bf16.gmra.mxu0 %v3932
    %v3988 = vpop.f32.mrf.mxu0
    %v3989 = vadd.f32 0.0, %v3988
    %v3990 = vpop.f32.mrf.mxu0
    %v3991 = vadd.f32 0.0, %v3990
    %3992 = vmatmul.bf16.gmra.mxu0 %v3935
    %v3993 = vpop.f32.mrf.mxu0
    %v3994 = vadd.f32 0.0, %v3993
    %v3995 = vpop.f32.mrf.mxu0
    %v3996 = vadd.f32 0.0, %v3995
    %3997 = vmatmul.bf16.gmra.mxu0 %v3938
    %v3998 = vpop.f32.mrf.mxu0
    %v3999 = vadd.f32 0.0, %v3998
    %v4000 = vpop.f32.mrf.mxu0
    %v4001 = vadd.f32 0.0, %v4000
    %4002 = vmatmul.bf16.gmra.mxu0 %v3941
    %v4003 = vpop.f32.mrf.mxu0
    %v4004 = vadd.f32 0.0, %v4003
    %v4005 = vpop.f32.mrf.mxu0
    %v4006 = vadd.f32 0.0, %v4005
    %4007 = vmatmul.bf16.gmra.mxu0 %v3944
    %v4008 = vpop.f32.mrf.mxu0
    %v4009 = vadd.f32 0.0, %v4008
    %v4010 = vpop.f32.mrf.mxu0
    %v4011 = vadd.f32 0.0, %v4010
    %4012 = vmatmul.bf16.gmra.mxu0 %v3947
    %v4013 = vpop.f32.mrf.mxu0
    %v4014 = vadd.f32 0.0, %v4013
    %v4015 = vpop.f32.mrf.mxu0
    %v4016 = vadd.f32 0.0, %v4015
    %4017 = vmatmul.bf16.gmra.mxu0 %v3950
    %v4018 = vpop.f32.mrf.mxu0
    %v4019 = vadd.f32 0.0, %v4018
    %v4020 = vpop.f32.mrf.mxu0
    %v4021 = vadd.f32 0.0, %v4020
    %4022 = vmatmul.bf16.gmra.mxu0 %v3953
    %v4023 = vpop.f32.mrf.mxu0
    %v4024 = vadd.f32 0.0, %v4023
    %v4025 = vpop.f32.mrf.mxu0
    %v4026 = vadd.f32 0.0, %v4025
    %4027 = vmatmul.bf16.gmra.mxu0 %v3956
    %v4028 = vpop.f32.mrf.mxu0
    %v4029 = vadd.f32 0.0, %v4028
    %v4030 = vpop.f32.mrf.mxu0
    %v4031 = vadd.f32 0.0, %v4030
    %4032 = vmatmul.bf16.gmra.mxu0 %v3959
    %v4033 = vpop.f32.mrf.mxu0
    %v4034 = vadd.f32 0.0, %v4033
    %v4035 = vpop.f32.mrf.mxu0
    %v4036 = vadd.f32 0.0, %v4035
    %4037 = vmatmul.bf16.gmra.mxu0 %v3962
    %v4038 = vpop.f32.mrf.mxu0
    %v4039 = vadd.f32 0.0, %v4038
    %v4040 = vpop.f32.mrf.mxu0
    %v4041 = vadd.f32 0.0, %v4040
    %4042 = vmatmul.bf16.gmra.mxu0 %v3965
    %v4043 = vpop.f32.mrf.mxu0
    %v4044 = vadd.f32 0.0, %v4043
    %v4045 = vpop.f32.mrf.mxu0
    %v4046 = vadd.f32 0.0, %v4045
    %4047 = vmatmul.bf16.gmra.mxu0 %v3968
    %v4048 = vpop.f32.mrf.mxu0
    %v4049 = vadd.f32 0.0, %v4048
    %v4050 = vpop.f32.mrf.mxu0
    %v4051 = vadd.f32 0.0, %v4050
    %4052 = vmatmul.bf16.gmra.mxu0 %v3971
    %v4053 = vpop.f32.mrf.mxu0
    %v4054 = vadd.f32 0.0, %v4053
    %v4055 = vpop.f32.mrf.mxu0
    %v4056 = vadd.f32 0.0, %v4055
    %4057 = vmatmul.bf16.gmra.mxu0 %v3974
    %v4058 = vpop.f32.mrf.mxu0
    %v4059 = vadd.f32 0.0, %v4058
    %v4060 = vpop.f32.mrf.mxu0
    %v4061 = vadd.f32 0.0, %v4060
    %4062 = vmatmul.bf16.gmra.mxu0 %v3977
    %v4063 = vpop.f32.mrf.mxu0
    %v4064 = vadd.f32 0.0, %v4063
    %v4065 = vpop.f32.mrf.mxu0
    %v4066 = vadd.f32 0.0, %v4065
    %4067 = vdwg.mxu0
    %v4076 = vunpack.c.l.b16 %v3849
    %v4077 = vunpack.c.l.b16 %v3850
    %v4078 = vunpack.c.l.b16 %v3851
    %v4079 = vunpack.c.l.b16 %v3852
    %v4080 = vunpack.c.l.b16 %v3853
    %v4081 = vunpack.c.l.b16 %v3854
    %v4082 = vunpack.c.l.b16 %v3855
    %v4083 = vunpack.c.l.b16 %v3856
    %v4084 = vpack.c.b16 %v4077, %v4076
    %v4085 = vpack.c.b16 %v4079, %v4078
    %v4086 = vpack.c.b16 %v4081, %v4080
    %v4087 = vpack.c.b16 %v4083, %v4082
    %v4093 = vsel %vm1973, %v3875, 0
    %v4096 = vsel %vm1973, %v3876, 0
    %v4099 = vsel %vm1973, %v3877, 0
    %v4102 = vsel %vm1973, %v3878, 0
    %v4105 = vsel %vm1973, %v3879, 0
    %v4108 = vsel %vm1973, %v3880, 0
    %v4111 = vsel %vm1973, %v3881, 0
    %v4114 = vsel %vm1973, %v3882, 0
    %v4117 = vsel %vm1973, %v3883, 0
    %v4120 = vsel %vm1973, %v3884, 0
    %v4123 = vsel %vm1973, %v3885, 0
    %v4126 = vsel %vm1973, %v3886, 0
    %v4129 = vsel %vm1973, %v3887, 0
    %v4132 = vsel %vm1973, %v3888, 0
    %v4135 = vsel %vm1973, %v3889, 0
    %v4138 = vsel %vm1973, %v3890, 0
    %4140 = vmatpush.bf16.msra.mxu0 0
    %4141 = vmatpush.bf16.msra.mxu0 0
    %4142 = vmatpush.bf16.msra.mxu0 0
    %4143 = vmatpush.bf16.msra.mxu0 0
    %4144 = vmatpush.bf16.msra.mxu0 %v4087
    %4145 = vmatpush.bf16.msra.mxu0 %v4086
    %4146 = vmatpush.bf16.msra.mxu0 %v4085
    %4147 = vmatpush.bf16.msra.mxu0 %v4084
    %4148 = vmatmul.bf16.gmra.mxu0 %v4093
    %v4149 = vpop.f32.mrf.mxu0
    %v4150 = vadd.f32 %v3989, %v4149
    %v4151 = vpop.f32.mrf.mxu0
    %v4152 = vadd.f32 %v3991, %v4151
    %4153 = vmatmul.bf16.gmra.mxu0 %v4096
    %v4154 = vpop.f32.mrf.mxu0
    %v4155 = vadd.f32 %v3994, %v4154
    %v4156 = vpop.f32.mrf.mxu0
    %v4157 = vadd.f32 %v3996, %v4156
    %4158 = vmatmul.bf16.gmra.mxu0 %v4099
    %v4159 = vpop.f32.mrf.mxu0
    %v4160 = vadd.f32 %v3999, %v4159
    %v4161 = vpop.f32.mrf.mxu0
    %v4162 = vadd.f32 %v4001, %v4161
    %4163 = vmatmul.bf16.gmra.mxu0 %v4102
    %v4164 = vpop.f32.mrf.mxu0
    %v4165 = vadd.f32 %v4004, %v4164
    %v4166 = vpop.f32.mrf.mxu0
    %v4167 = vadd.f32 %v4006, %v4166
    %4168 = vmatmul.bf16.gmra.mxu0 %v4105
    %v4169 = vpop.f32.mrf.mxu0
    %v4170 = vadd.f32 %v4009, %v4169
    %v4171 = vpop.f32.mrf.mxu0
    %v4172 = vadd.f32 %v4011, %v4171
    %4173 = vmatmul.bf16.gmra.mxu0 %v4108
    %v4174 = vpop.f32.mrf.mxu0
    %v4175 = vadd.f32 %v4014, %v4174
    %v4176 = vpop.f32.mrf.mxu0
    %v4177 = vadd.f32 %v4016, %v4176
    %4178 = vmatmul.bf16.gmra.mxu0 %v4111
    %v4179 = vpop.f32.mrf.mxu0
    %v4180 = vadd.f32 %v4019, %v4179
    %v4181 = vpop.f32.mrf.mxu0
    %v4182 = vadd.f32 %v4021, %v4181
    %4183 = vmatmul.bf16.gmra.mxu0 %v4114
    %v4184 = vpop.f32.mrf.mxu0
    %v4185 = vadd.f32 %v4024, %v4184
    %v4186 = vpop.f32.mrf.mxu0
    %v4187 = vadd.f32 %v4026, %v4186
    %4188 = vmatmul.bf16.gmra.mxu0 %v4117
    %v4189 = vpop.f32.mrf.mxu0
    %v4190 = vadd.f32 %v4029, %v4189
    %v4191 = vpop.f32.mrf.mxu0
    %v4192 = vadd.f32 %v4031, %v4191
    %4193 = vmatmul.bf16.gmra.mxu0 %v4120
    %v4194 = vpop.f32.mrf.mxu0
    %v4195 = vadd.f32 %v4034, %v4194
    %v4196 = vpop.f32.mrf.mxu0
    %v4197 = vadd.f32 %v4036, %v4196
    %4198 = vmatmul.bf16.gmra.mxu0 %v4123
    %v4199 = vpop.f32.mrf.mxu0
    %v4200 = vadd.f32 %v4039, %v4199
    %v4201 = vpop.f32.mrf.mxu0
    %v4202 = vadd.f32 %v4041, %v4201
    %4203 = vmatmul.bf16.gmra.mxu0 %v4126
    %v4204 = vpop.f32.mrf.mxu0
    %v4205 = vadd.f32 %v4044, %v4204
    %v4206 = vpop.f32.mrf.mxu0
    %v4207 = vadd.f32 %v4046, %v4206
    %4208 = vmatmul.bf16.gmra.mxu0 %v4129
    %v4209 = vpop.f32.mrf.mxu0
    %v4210 = vadd.f32 %v4049, %v4209
    %v4211 = vpop.f32.mrf.mxu0
    %v4212 = vadd.f32 %v4051, %v4211
    %4213 = vmatmul.bf16.gmra.mxu0 %v4132
    %v4214 = vpop.f32.mrf.mxu0
    %v4215 = vadd.f32 %v4054, %v4214
    %v4216 = vpop.f32.mrf.mxu0
    %v4217 = vadd.f32 %v4056, %v4216
    %4218 = vmatmul.bf16.gmra.mxu0 %v4135
    %v4219 = vpop.f32.mrf.mxu0
    %v4220 = vadd.f32 %v4059, %v4219
    %v4221 = vpop.f32.mrf.mxu0
    %v4222 = vadd.f32 %v4061, %v4221
    %4223 = vmatmul.bf16.gmra.mxu0 %v4138
    %v4224 = vpop.f32.mrf.mxu0
    %v4225 = vadd.f32 %v4064, %v4224
    %v4226 = vpop.f32.mrf.mxu0
    %v4227 = vadd.f32 %v4066, %v4226
    %4228 = vdwg.mxu0
    %v4229 = vpack.c.bf16 %v3818, %v3817
    %v4230 = vpack.c.bf16 %v3820, %v3819
    %v4231 = vpack.c.bf16 %v3822, %v3821
    %v4232 = vpack.c.bf16 %v3824, %v3823
    %v4233 = vpack.c.bf16 %v3826, %v3825
    %v4234 = vpack.c.bf16 %v3828, %v3827
    %v4235 = vpack.c.bf16 %v3830, %v3829
    %v4236 = vpack.c.bf16 %v3832, %v3831
    %v4237 = vpack.c.bf16 %v3834, %v3833
    %v4238 = vpack.c.bf16 %v3836, %v3835
    %v4239 = vpack.c.bf16 %v3838, %v3837
    %v4240 = vpack.c.bf16 %v3840, %v3839
    %v4241 = vpack.c.bf16 %v3842, %v3841
    %v4242 = vpack.c.bf16 %v3844, %v3843
    %v4243 = vpack.c.bf16 %v3846, %v3845
    %v4244 = vpack.c.bf16 0.0, %v3847
    %v4253 = vunpack.c.l.b16 %v3867
    %v4254 = vunpack.c.l.b16 %v3868
    %v4255 = vunpack.c.l.b16 %v3869
    %v4256 = vunpack.c.l.b16 %v3870
    %v4257 = vunpack.c.l.b16 %v3871
    %v4258 = vunpack.c.l.b16 %v3872
    %v4259 = vunpack.c.l.b16 %v3873
    %v4260 = vunpack.c.l.b16 %v3874
    %v4261 = vpack.c.b16 %v4254, %v4253
    %v4262 = vpack.c.b16 %v4256, %v4255
    %v4263 = vpack.c.b16 %v4258, %v4257
    %v4264 = vpack.c.b16 %v4260, %v4259
    %v4270 = vsel %vm1973, %v4229, 0
    %v4273 = vsel %vm1973, %v4230, 0
    %v4276 = vsel %vm1973, %v4231, 0
    %v4279 = vsel %vm1973, %v4232, 0
    %v4282 = vsel %vm1973, %v4233, 0
    %v4285 = vsel %vm1973, %v4234, 0
    %v4288 = vsel %vm1973, %v4235, 0
    %v4291 = vsel %vm1973, %v4236, 0
    %v4294 = vsel %vm1973, %v4237, 0
    %v4297 = vsel %vm1973, %v4238, 0
    %v4300 = vsel %vm1973, %v4239, 0
    %v4303 = vsel %vm1973, %v4240, 0
    %v4306 = vsel %vm1973, %v4241, 0
    %v4309 = vsel %vm1973, %v4242, 0
    %v4312 = vsel %vm1973, %v4243, 0
    %v4315 = vsel %vm1973, %v4244, 0
    %4317 = vmatpush.bf16.msra.mxu0 0
    %4318 = vmatpush.bf16.msra.mxu0 0
    %4319 = vmatpush.bf16.msra.mxu0 0
    %4320 = vmatpush.bf16.msra.mxu0 0
    %4321 = vmatpush.bf16.msra.mxu0 %v4264
    %4322 = vmatpush.bf16.msra.mxu0 %v4263
    %4323 = vmatpush.bf16.msra.mxu0 %v4262
    %4324 = vmatpush.bf16.msra.mxu0 %v4261
    %4325 = vmatmul.bf16.gmra.mxu0 %v4270
    %v4326 = vpop.f32.mrf.mxu0
    %v4327 = vadd.f32 0.0, %v4326
    %v4328 = vpop.f32.mrf.mxu0
    %v4329 = vadd.f32 0.0, %v4328
    %4330 = vmatmul.bf16.gmra.mxu0 %v4273
    %v4331 = vpop.f32.mrf.mxu0
    %v4332 = vadd.f32 0.0, %v4331
    %v4333 = vpop.f32.mrf.mxu0
    %v4334 = vadd.f32 0.0, %v4333
    %4335 = vmatmul.bf16.gmra.mxu0 %v4276
    %v4336 = vpop.f32.mrf.mxu0
    %v4337 = vadd.f32 0.0, %v4336
    %v4338 = vpop.f32.mrf.mxu0
    %v4339 = vadd.f32 0.0, %v4338
    %4340 = vmatmul.bf16.gmra.mxu0 %v4279
    %v4341 = vpop.f32.mrf.mxu0
    %v4342 = vadd.f32 0.0, %v4341
    %v4343 = vpop.f32.mrf.mxu0
    %v4344 = vadd.f32 0.0, %v4343
    %4345 = vmatmul.bf16.gmra.mxu0 %v4282
    %v4346 = vpop.f32.mrf.mxu0
    %v4347 = vadd.f32 0.0, %v4346
    %v4348 = vpop.f32.mrf.mxu0
    %v4349 = vadd.f32 0.0, %v4348
    %4350 = vmatmul.bf16.gmra.mxu0 %v4285
    %v4351 = vpop.f32.mrf.mxu0
    %v4352 = vadd.f32 0.0, %v4351
    %v4353 = vpop.f32.mrf.mxu0
    %v4354 = vadd.f32 0.0, %v4353
    %4355 = vmatmul.bf16.gmra.mxu0 %v4288
    %v4356 = vpop.f32.mrf.mxu0
    %v4357 = vadd.f32 0.0, %v4356
    %v4358 = vpop.f32.mrf.mxu0
    %v4359 = vadd.f32 0.0, %v4358
    %4360 = vmatmul.bf16.gmra.mxu0 %v4291
    %v4361 = vpop.f32.mrf.mxu0
    %v4362 = vadd.f32 0.0, %v4361
    %v4363 = vpop.f32.mrf.mxu0
    %v4364 = vadd.f32 0.0, %v4363
    %4365 = vmatmul.bf16.gmra.mxu0 %v4294
    %v4366 = vpop.f32.mrf.mxu0
    %v4367 = vadd.f32 0.0, %v4366
    %v4368 = vpop.f32.mrf.mxu0
    %v4369 = vadd.f32 0.0, %v4368
    %4370 = vmatmul.bf16.gmra.mxu0 %v4297
    %v4371 = vpop.f32.mrf.mxu0
    %v4372 = vadd.f32 0.0, %v4371
    %v4373 = vpop.f32.mrf.mxu0
    %v4374 = vadd.f32 0.0, %v4373
    %4375 = vmatmul.bf16.gmra.mxu0 %v4300
    %v4376 = vpop.f32.mrf.mxu0
    %v4377 = vadd.f32 0.0, %v4376
    %v4378 = vpop.f32.mrf.mxu0
    %v4379 = vadd.f32 0.0, %v4378
    %4380 = vmatmul.bf16.gmra.mxu0 %v4303
    %v4381 = vpop.f32.mrf.mxu0
    %v4382 = vadd.f32 0.0, %v4381
    %v4383 = vpop.f32.mrf.mxu0
    %v4384 = vadd.f32 0.0, %v4383
    %4385 = vmatmul.bf16.gmra.mxu0 %v4306
    %v4386 = vpop.f32.mrf.mxu0
    %v4387 = vadd.f32 0.0, %v4386
    %v4388 = vpop.f32.mrf.mxu0
    %v4389 = vadd.f32 0.0, %v4388
    %4390 = vmatmul.bf16.gmra.mxu0 %v4309
    %v4391 = vpop.f32.mrf.mxu0
    %v4392 = vadd.f32 0.0, %v4391
    %v4393 = vpop.f32.mrf.mxu0
    %v4394 = vadd.f32 0.0, %v4393
    %4395 = vmatmul.bf16.gmra.mxu0 %v4312
    %v4396 = vpop.f32.mrf.mxu0
    %v4397 = vadd.f32 0.0, %v4396
    %v4398 = vpop.f32.mrf.mxu0
    %v4399 = vadd.f32 0.0, %v4398
    %4400 = vmatmul.bf16.gmra.mxu0 %v4315
    %v4401 = vpop.f32.mrf.mxu0
    %v4402 = vadd.f32 0.0, %v4401
    %v4403 = vpop.f32.mrf.mxu0
    %v4404 = vadd.f32 0.0, %v4403
    %4405 = vdwg.mxu0
    %v4406 = vadd.f32 %v4150, %v4327
    %v4407 = vadd.f32 %v4152, %v4329
    %v4408 = vadd.f32 %v4155, %v4332
    %v4409 = vadd.f32 %v4157, %v4334
    %v4410 = vadd.f32 %v4160, %v4337
    %v4411 = vadd.f32 %v4162, %v4339
    %v4412 = vadd.f32 %v4165, %v4342
    %v4413 = vadd.f32 %v4167, %v4344
    %v4414 = vadd.f32 %v4170, %v4347
    %v4415 = vadd.f32 %v4172, %v4349
    %v4416 = vadd.f32 %v4175, %v4352
    %v4417 = vadd.f32 %v4177, %v4354
    %v4418 = vadd.f32 %v4180, %v4357
    %v4419 = vadd.f32 %v4182, %v4359
    %v4420 = vadd.f32 %v4185, %v4362
    %v4421 = vadd.f32 %v4187, %v4364
    %v4422 = vadd.f32 %v4190, %v4367
    %v4423 = vadd.f32 %v4192, %v4369
    %v4424 = vadd.f32 %v4195, %v4372
    %v4425 = vadd.f32 %v4197, %v4374
    %v4426 = vadd.f32 %v4200, %v4377
    %v4427 = vadd.f32 %v4202, %v4379
    %v4428 = vadd.f32 %v4205, %v4382
    %v4429 = vadd.f32 %v4207, %v4384
    %v4430 = vadd.f32 %v4210, %v4387
    %v4431 = vadd.f32 %v4212, %v4389
    %v4432 = vadd.f32 %v4215, %v4392
    %v4433 = vadd.f32 %v4217, %v4394
    %v4434 = vadd.f32 %v4220, %v4397
    %v4435 = vadd.f32 %v4222, %v4399
    %v4436 = vadd.f32 %v4225, %v4402
    %v4437 = vadd.f32 %v4227, %v4404
    %s4438 = scalar_lea.vmem %s3, 3
    %v4439 = vld [vmem:[%s4438] sm:$0x1]
    %v4441 = vperm.slane %v4439, 0
    %v4443 = vadd.f32 %v4406, %v4441
    %v4444 = vadd.f32 %v4407, %v4441
    %v4445 = vadd.f32 %v4408, %v4441
    %v4446 = vadd.f32 %v4409, %v4441
    %v4447 = vadd.f32 %v4410, %v4441
    %v4448 = vadd.f32 %v4411, %v4441
    %v4449 = vadd.f32 %v4412, %v4441
    %v4450 = vadd.f32 %v4413, %v4441
    %v4451 = vadd.f32 %v4414, %v4441
    %v4452 = vadd.f32 %v4415, %v4441
    %v4453 = vadd.f32 %v4416, %v4441
    %v4454 = vadd.f32 %v4417, %v4441
    %v4455 = vadd.f32 %v4418, %v4441
    %v4456 = vadd.f32 %v4419, %v4441
    %v4457 = vadd.f32 %v4420, %v4441
    %v4458 = vadd.f32 %v4421, %v4441
    %v4459 = vadd.f32 %v4422, %v4441
    %v4460 = vadd.f32 %v4423, %v4441
    %v4461 = vadd.f32 %v4424, %v4441
    %v4462 = vadd.f32 %v4425, %v4441
    %v4463 = vadd.f32 %v4426, %v4441
    %v4464 = vadd.f32 %v4427, %v4441
    %v4465 = vadd.f32 %v4428, %v4441
    %v4466 = vadd.f32 %v4429, %v4441
    %v4467 = vadd.f32 %v4430, %v4441
    %v4468 = vadd.f32 %v4431, %v4441
    %v4469 = vadd.f32 %v4432, %v4441
    %v4470 = vadd.f32 %v4433, %v4441
    %v4471 = vadd.f32 %v4434, %v4441
    %v4472 = vadd.f32 %v4435, %v4441
    %v4473 = vadd.f32 %v4436, %v4441
    %v4474 = vadd.f32 %v4437, %v4441
    %v4475 = vmax.f32 %v4443, 0.0
    %v4476 = vmax.f32 %v4444, 0.0
    %v4477 = vmax.f32 %v4445, 0.0
    %v4478 = vmax.f32 %v4446, 0.0
    %v4479 = vmax.f32 %v4447, 0.0
    %v4480 = vmax.f32 %v4448, 0.0
    %v4481 = vmax.f32 %v4449, 0.0
    %v4482 = vmax.f32 %v4450, 0.0
    %v4483 = vmax.f32 %v4451, 0.0
    %v4484 = vmax.f32 %v4452, 0.0
    %v4485 = vmax.f32 %v4453, 0.0
    %v4486 = vmax.f32 %v4454, 0.0
    %v4487 = vmax.f32 %v4455, 0.0
    %v4488 = vmax.f32 %v4456, 0.0
    %v4489 = vmax.f32 %v4457, 0.0
    %v4490 = vmax.f32 %v4458, 0.0
    %v4491 = vmax.f32 %v4459, 0.0
    %v4492 = vmax.f32 %v4460, 0.0
    %v4493 = vmax.f32 %v4461, 0.0
    %v4494 = vmax.f32 %v4462, 0.0
    %v4495 = vmax.f32 %v4463, 0.0
    %v4496 = vmax.f32 %v4464, 0.0
    %v4497 = vmax.f32 %v4465, 0.0
    %v4498 = vmax.f32 %v4466, 0.0
    %v4499 = vmax.f32 %v4467, 0.0
    %v4500 = vmax.f32 %v4468, 0.0
    %v4501 = vmax.f32 %v4469, 0.0
    %v4502 = vmax.f32 %v4470, 0.0
    %v4503 = vmax.f32 %v4471, 0.0
    %v4504 = vmax.f32 %v4472, 0.0
    %v4505 = vmax.f32 %v4473, 0.0
    %v4506 = vmax.f32 %v4474, 0.0
    %v4507 = vmax.f32 %v4475, %v4476
    %v4508 = vmax.f32 %v4476, %v4477
    %v4509 = vmax.f32 %v4477, %v4478
    %v4510 = vmax.f32 %v4478, %v4479
    %v4511 = vmax.f32 %v4479, %v4480
    %v4512 = vmax.f32 %v4480, %v4481
    %v4513 = vmax.f32 %v4481, %v4482
    %v4514 = vmax.f32 %v4482, %v4483
    %v4515 = vmax.f32 %v4483, %v4484
    %v4516 = vmax.f32 %v4484, %v4485
    %v4517 = vmax.f32 %v4485, %v4486
    %v4518 = vmax.f32 %v4486, %v4487
    %v4519 = vmax.f32 %v4487, %v4488
    %v4520 = vmax.f32 %v4488, %v4489
    %v4521 = vmax.f32 %v4489, %v4490
    %v4522 = vmax.f32 %v4490, %v4491
    %v4523 = vmax.f32 %v4491, %v4492
    %v4524 = vmax.f32 %v4492, %v4493
    %v4525 = vmax.f32 %v4493, %v4494
    %v4526 = vmax.f32 %v4494, %v4495
    %v4527 = vmax.f32 %v4495, %v4496
    %v4528 = vmax.f32 %v4496, %v4497
    %v4529 = vmax.f32 %v4497, %v4498
    %v4530 = vmax.f32 %v4498, %v4499
    %v4531 = vmax.f32 %v4499, %v4500
    %v4532 = vmax.f32 %v4500, %v4501
    %v4533 = vmax.f32 %v4501, %v4502
    %v4534 = vmax.f32 %v4502, %v4503
    %v4535 = vmax.f32 %v4503, %v4504
    %v4536 = vmax.f32 %v4504, %v4505
    %v4537 = vmax.f32 %v4505, %v4506
    %v4538 = vmax.f32 %v4506, 0.0
    %v4539 = vsel %vm708, 0.0, %v4507
    %v4540 = vsel %vm709, 0.0, %v4508
    %v4541 = vsel %vm710, 0.0, %v4509
    %v4542 = vsel %vm711, 0.0, %v4510
    %v4543 = vsel %vm712, 0.0, %v4511
    %v4544 = vsel %vm713, 0.0, %v4512
    %v4545 = vsel %vm714, 0.0, %v4513
    %v4546 = vsel %vm715, 0.0, %v4514
    %v4547 = vsel %vm716, 0.0, %v4515
    %v4548 = vsel %vm717, 0.0, %v4516
    %v4549 = vsel %vm718, 0.0, %v4517
    %v4550 = vsel %vm719, 0.0, %v4518
    %v4551 = vsel %vm720, 0.0, %v4519
    %v4552 = vsel %vm721, 0.0, %v4520
    %v4553 = vsel %vm722, 0.0, %v4521
    %v4554 = vsel %vm723, 0.0, %v4522
    %v4555 = vsel %vm724, 0.0, %v4523
    %v4556 = vsel %vm725, 0.0, %v4524
    %v4557 = vsel %vm726, 0.0, %v4525
    %v4558 = vsel %vm727, 0.0, %v4526
    %v4559 = vsel %vm728, 0.0, %v4527
    %v4560 = vsel %vm729, 0.0, %v4528
    %v4561 = vsel %vm730, 0.0, %v4529
    %v4562 = vsel %vm731, 0.0, %v4530
    %v4563 = vsel %vm732, 0.0, %v4531
    %v4564 = vsel %vm733, 0.0, %v4532
    %v4565 = vsel %vm734, 0.0, %v4533
    %v4566 = vsel %vm735, 0.0, %v4534
    %v4567 = vsel %vm736, 0.0, %v4535
    %v4568 = vsel %vm737, 0.0, %v4536
    %vm4569 = vcmp.eq.s32.totalorder %v416, 112
    %vm4570 = vcmp.eq.s32.totalorder %v417, 112
    %vm4571 = vcmp.eq.s32.totalorder %v418, 112
    %vm4572 = vcmp.eq.s32.totalorder %v419, 112
    %vm4573 = vcmp.eq.s32.totalorder %v420, 112
    %vm4574 = vcmp.eq.s32.totalorder %v421, 112
    %vm4575 = vcmp.eq.s32.totalorder %v422, 112
    %vm4576 = vcmp.eq.s32.totalorder %v423, 112
    %vm4577 = vcmp.eq.s32.totalorder %v424, 112
    %vm4578 = vcmp.eq.s32.totalorder %v425, 112
    %vm4579 = vcmp.eq.s32.totalorder %v426, 112
    %vm4580 = vcmp.eq.s32.totalorder %v427, 112
    %vm4581 = vcmp.eq.s32.totalorder %v428, 112
    %vm4582 = vcmp.eq.s32.totalorder %v429, 112
    %vm4583 = vcmp.eq.s32.totalorder %v430, 112
    %vm4584 = vcmp.eq.s32.totalorder %v431, 112
    %vm4585 = vcmp.eq.s32.totalorder %v432, 112
    %vm4586 = vcmp.eq.s32.totalorder %v433, 112
    %vm4587 = vcmp.eq.s32.totalorder %v434, 112
    %vm4588 = vcmp.eq.s32.totalorder %v435, 112
    %vm4589 = vcmp.eq.s32.totalorder %v436, 112
    %vm4590 = vcmp.eq.s32.totalorder %v437, 112
    %vm4591 = vcmp.eq.s32.totalorder %v438, 112
    %vm4592 = vcmp.eq.s32.totalorder %v439, 112
    %vm4593 = vcmp.eq.s32.totalorder %v440, 112
    %vm4594 = vcmp.eq.s32.totalorder %v441, 112
    %vm4595 = vcmp.eq.s32.totalorder %v442, 112
    %vm4596 = vcmp.eq.s32.totalorder %v443, 112
    %vm4597 = vcmp.eq.s32.totalorder %v444, 112
    %vm4598 = vcmp.eq.s32.totalorder %v445, 112
    %v4599 = vsel %vm4569, 0.0, %v4509
    %v4600 = vsel %vm4570, 0.0, %v4510
    %v4601 = vsel %vm4571, 0.0, %v4511
    %v4602 = vsel %vm4572, 0.0, %v4512
    %v4603 = vsel %vm4573, 0.0, %v4513
    %v4604 = vsel %vm4574, 0.0, %v4514
    %v4605 = vsel %vm4575, 0.0, %v4515
    %v4606 = vsel %vm4576, 0.0, %v4516
    %v4607 = vsel %vm4577, 0.0, %v4517
    %v4608 = vsel %vm4578, 0.0, %v4518
    %v4609 = vsel %vm4579, 0.0, %v4519
    %v4610 = vsel %vm4580, 0.0, %v4520
    %v4611 = vsel %vm4581, 0.0, %v4521
    %v4612 = vsel %vm4582, 0.0, %v4522
    %v4613 = vsel %vm4583, 0.0, %v4523
    %v4614 = vsel %vm4584, 0.0, %v4524
    %v4615 = vsel %vm4585, 0.0, %v4525
    %v4616 = vsel %vm4586, 0.0, %v4526
    %v4617 = vsel %vm4587, 0.0, %v4527
    %v4618 = vsel %vm4588, 0.0, %v4528
    %v4619 = vsel %vm4589, 0.0, %v4529
    %v4620 = vsel %vm4590, 0.0, %v4530
    %v4621 = vsel %vm4591, 0.0, %v4531
    %v4622 = vsel %vm4592, 0.0, %v4532
    %v4623 = vsel %vm4593, 0.0, %v4533
    %v4624 = vsel %vm4594, 0.0, %v4534
    %v4625 = vsel %vm4595, 0.0, %v4535
    %v4626 = vsel %vm4596, 0.0, %v4536
    %v4627 = vsel %vm4597, 0.0, %v4537
    %v4628 = vsel %vm4598, 0.0, %v4538
    %s4629 = scalar_lea.vmem %s2, 288
    %v4630 = vld [vmem:[%s4629] sm:$0xf]
    %v4631 = vld [vmem:[%s4629 + $0x4] sm:$0xf]
    %v4632 = vld [vmem:[%s4629 + $0x8] sm:$0xf]
    %v4633 = vld [vmem:[%s4629 + $0xc] sm:$0xf]
    %v4634 = vld [vmem:[%s4629 + $0x10] sm:$0xf]
    %v4635 = vld [vmem:[%s4629 + $0x14] sm:$0xf]
    %v4636 = vld [vmem:[%s4629 + $0x18] sm:$0xf]
    %v4637 = vld [vmem:[%s4629 + $0x1c] sm:$0xf]
    %s4638 = scalar_lea.vmem %s2, 320
    %v4639 = vld [vmem:[%s4638] sm:$0xf]
    %v4640 = vld [vmem:[%s4638 + $0x4] sm:$0xf]
    %v4641 = vld [vmem:[%s4638 + $0x8] sm:$0xf]
    %v4642 = vld [vmem:[%s4638 + $0xc] sm:$0xf]
    %v4643 = vld [vmem:[%s4638 + $0x10] sm:$0xf]
    %v4644 = vld [vmem:[%s4638 + $0x14] sm:$0xf]
    %v4645 = vld [vmem:[%s4638 + $0x18] sm:$0xf]
    %v4646 = vld [vmem:[%s4638 + $0x1c] sm:$0xf]
    %s4647 = scalar_lea.vmem %s2, 352
    %v4648 = vld [vmem:[%s4647] sm:$0xf]
    %v4649 = vld [vmem:[%s4647 + $0x4] sm:$0xf]
    %v4650 = vld [vmem:[%s4647 + $0x8] sm:$0xf]
    %v4651 = vld [vmem:[%s4647 + $0xc] sm:$0xf]
    %v4652 = vld [vmem:[%s4647 + $0x10] sm:$0xf]
    %v4653 = vld [vmem:[%s4647 + $0x14] sm:$0xf]
    %v4654 = vld [vmem:[%s4647 + $0x18] sm:$0xf]
    %v4655 = vld [vmem:[%s4647 + $0x1c] sm:$0xf]
    %v4656 = vpack.c.bf16 0.0, 0.0
    %v4657 = vpack.c.bf16 %v4540, %v4539
    %v4658 = vpack.c.bf16 %v4542, %v4541
    %v4659 = vpack.c.bf16 %v4544, %v4543
    %v4660 = vpack.c.bf16 %v4546, %v4545
    %v4661 = vpack.c.bf16 %v4548, %v4547
    %v4662 = vpack.c.bf16 %v4550, %v4549
    %v4663 = vpack.c.bf16 %v4552, %v4551
    %v4664 = vpack.c.bf16 %v4554, %v4553
    %v4665 = vpack.c.bf16 %v4556, %v4555
    %v4666 = vpack.c.bf16 %v4558, %v4557
    %v4667 = vpack.c.bf16 %v4560, %v4559
    %v4668 = vpack.c.bf16 %v4562, %v4561
    %v4669 = vpack.c.bf16 %v4564, %v4563
    %v4670 = vpack.c.bf16 %v4566, %v4565
    %v4671 = vpack.c.bf16 %v4568, %v4567
    %v4672 = vpack.c.bf16 %v4508, %v4507
    %v4673 = vpack.c.bf16 %v4510, %v4509
    %v4674 = vpack.c.bf16 %v4512, %v4511
    %v4675 = vpack.c.bf16 %v4514, %v4513
    %v4676 = vpack.c.bf16 %v4516, %v4515
    %v4677 = vpack.c.bf16 %v4518, %v4517
    %v4678 = vpack.c.bf16 %v4520, %v4519
    %v4679 = vpack.c.bf16 %v4522, %v4521
    %v4680 = vpack.c.bf16 %v4524, %v4523
    %v4681 = vpack.c.bf16 %v4526, %v4525
    %v4682 = vpack.c.bf16 %v4528, %v4527
    %v4683 = vpack.c.bf16 %v4530, %v4529
    %v4684 = vpack.c.bf16 %v4532, %v4531
    %v4685 = vpack.c.bf16 %v4534, %v4533
    %v4686 = vpack.c.bf16 %v4536, %v4535
    %v4687 = vpack.c.bf16 %v4538, %v4537
    %v4696 = vunpack.c.l.b16 %v4639
    %v4697 = vunpack.c.l.b16 %v4640
    %v4698 = vunpack.c.l.b16 %v4641
    %v4699 = vunpack.c.l.b16 %v4642
    %v4700 = vunpack.c.l.b16 %v4643
    %v4701 = vunpack.c.l.b16 %v4644
    %v4702 = vunpack.c.l.b16 %v4645
    %v4703 = vunpack.c.l.b16 %v4646
    %v4704 = vpack.c.b16 %v4697, %v4696
    %v4705 = vpack.c.b16 %v4699, %v4698
    %v4706 = vpack.c.b16 %v4701, %v4700
    %v4707 = vpack.c.b16 %v4703, %v4702
    %v4713 = vsel %vm1973, %v4672, 0
    %v4716 = vsel %vm1973, %v4673, 0
    %v4719 = vsel %vm1973, %v4674, 0
    %v4722 = vsel %vm1973, %v4675, 0
    %v4725 = vsel %vm1973, %v4676, 0
    %v4728 = vsel %vm1973, %v4677, 0
    %v4731 = vsel %vm1973, %v4678, 0
    %v4734 = vsel %vm1973, %v4679, 0
    %v4737 = vsel %vm1973, %v4680, 0
    %v4740 = vsel %vm1973, %v4681, 0
    %v4743 = vsel %vm1973, %v4682, 0
    %v4746 = vsel %vm1973, %v4683, 0
    %v4749 = vsel %vm1973, %v4684, 0
    %v4752 = vsel %vm1973, %v4685, 0
    %v4755 = vsel %vm1973, %v4686, 0
    %v4758 = vsel %vm1973, %v4687, 0
    %4760 = vmatpush.bf16.msra.mxu0 0
    %4761 = vmatpush.bf16.msra.mxu0 0
    %4762 = vmatpush.bf16.msra.mxu0 0
    %4763 = vmatpush.bf16.msra.mxu0 0
    %4764 = vmatpush.bf16.msra.mxu0 %v4707
    %4765 = vmatpush.bf16.msra.mxu0 %v4706
    %4766 = vmatpush.bf16.msra.mxu0 %v4705
    %4767 = vmatpush.bf16.msra.mxu0 %v4704
    %4768 = vmatmul.bf16.gmra.mxu0 %v4713
    %v4769 = vpop.f32.mrf.mxu0
    %v4770 = vadd.f32 0.0, %v4769
    %v4771 = vpop.f32.mrf.mxu0
    %v4772 = vadd.f32 0.0, %v4771
    %4773 = vmatmul.bf16.gmra.mxu0 %v4716
    %v4774 = vpop.f32.mrf.mxu0
    %v4775 = vadd.f32 0.0, %v4774
    %v4776 = vpop.f32.mrf.mxu0
    %v4777 = vadd.f32 0.0, %v4776
    %4778 = vmatmul.bf16.gmra.mxu0 %v4719
    %v4779 = vpop.f32.mrf.mxu0
    %v4780 = vadd.f32 0.0, %v4779
    %v4781 = vpop.f32.mrf.mxu0
    %v4782 = vadd.f32 0.0, %v4781
    %4783 = vmatmul.bf16.gmra.mxu0 %v4722
    %v4784 = vpop.f32.mrf.mxu0
    %v4785 = vadd.f32 0.0, %v4784
    %v4786 = vpop.f32.mrf.mxu0
    %v4787 = vadd.f32 0.0, %v4786
    %4788 = vmatmul.bf16.gmra.mxu0 %v4725
    %v4789 = vpop.f32.mrf.mxu0
    %v4790 = vadd.f32 0.0, %v4789
    %v4791 = vpop.f32.mrf.mxu0
    %v4792 = vadd.f32 0.0, %v4791
    %4793 = vmatmul.bf16.gmra.mxu0 %v4728
    %v4794 = vpop.f32.mrf.mxu0
    %v4795 = vadd.f32 0.0, %v4794
    %v4796 = vpop.f32.mrf.mxu0
    %v4797 = vadd.f32 0.0, %v4796
    %4798 = vmatmul.bf16.gmra.mxu0 %v4731
    %v4799 = vpop.f32.mrf.mxu0
    %v4800 = vadd.f32 0.0, %v4799
    %v4801 = vpop.f32.mrf.mxu0
    %v4802 = vadd.f32 0.0, %v4801
    %4803 = vmatmul.bf16.gmra.mxu0 %v4734
    %v4804 = vpop.f32.mrf.mxu0
    %v4805 = vadd.f32 0.0, %v4804
    %v4806 = vpop.f32.mrf.mxu0
    %v4807 = vadd.f32 0.0, %v4806
    %4808 = vmatmul.bf16.gmra.mxu0 %v4737
    %v4809 = vpop.f32.mrf.mxu0
    %v4810 = vadd.f32 0.0, %v4809
    %v4811 = vpop.f32.mrf.mxu0
    %v4812 = vadd.f32 0.0, %v4811
    %4813 = vmatmul.bf16.gmra.mxu0 %v4740
    %v4814 = vpop.f32.mrf.mxu0
    %v4815 = vadd.f32 0.0, %v4814
    %v4816 = vpop.f32.mrf.mxu0
    %v4817 = vadd.f32 0.0, %v4816
    %4818 = vmatmul.bf16.gmra.mxu0 %v4743
    %v4819 = vpop.f32.mrf.mxu0
    %v4820 = vadd.f32 0.0, %v4819
    %v4821 = vpop.f32.mrf.mxu0
    %v4822 = vadd.f32 0.0, %v4821
    %4823 = vmatmul.bf16.gmra.mxu0 %v4746
    %v4824 = vpop.f32.mrf.mxu0
    %v4825 = vadd.f32 0.0, %v4824
    %v4826 = vpop.f32.mrf.mxu0
    %v4827 = vadd.f32 0.0, %v4826
    %4828 = vmatmul.bf16.gmra.mxu0 %v4749
    %v4829 = vpop.f32.mrf.mxu0
    %v4830 = vadd.f32 0.0, %v4829
    %v4831 = vpop.f32.mrf.mxu0
    %v4832 = vadd.f32 0.0, %v4831
    %4833 = vmatmul.bf16.gmra.mxu0 %v4752
    %v4834 = vpop.f32.mrf.mxu0
    %v4835 = vadd.f32 0.0, %v4834
    %v4836 = vpop.f32.mrf.mxu0
    %v4837 = vadd.f32 0.0, %v4836
    %4838 = vmatmul.bf16.gmra.mxu0 %v4755
    %v4839 = vpop.f32.mrf.mxu0
    %v4840 = vadd.f32 0.0, %v4839
    %v4841 = vpop.f32.mrf.mxu0
    %v4842 = vadd.f32 0.0, %v4841
    %4843 = vmatmul.bf16.gmra.mxu0 %v4758
    %v4844 = vpop.f32.mrf.mxu0
    %v4845 = vadd.f32 0.0, %v4844
    %v4846 = vpop.f32.mrf.mxu0
    %v4847 = vadd.f32 0.0, %v4846
    %4848 = vdwg.mxu0
    %v4857 = vunpack.c.l.b16 %v4630
    %v4858 = vunpack.c.l.b16 %v4631
    %v4859 = vunpack.c.l.b16 %v4632
    %v4860 = vunpack.c.l.b16 %v4633
    %v4861 = vunpack.c.l.b16 %v4634
    %v4862 = vunpack.c.l.b16 %v4635
    %v4863 = vunpack.c.l.b16 %v4636
    %v4864 = vunpack.c.l.b16 %v4637
    %v4865 = vpack.c.b16 %v4858, %v4857
    %v4866 = vpack.c.b16 %v4860, %v4859
    %v4867 = vpack.c.b16 %v4862, %v4861
    %v4868 = vpack.c.b16 %v4864, %v4863
    %v4874 = vsel %vm1973, %v4656, 0
    %v4877 = vsel %vm1973, %v4657, 0
    %v4880 = vsel %vm1973, %v4658, 0
    %v4883 = vsel %vm1973, %v4659, 0
    %v4886 = vsel %vm1973, %v4660, 0
    %v4889 = vsel %vm1973, %v4661, 0
    %v4892 = vsel %vm1973, %v4662, 0
    %v4895 = vsel %vm1973, %v4663, 0
    %v4898 = vsel %vm1973, %v4664, 0
    %v4901 = vsel %vm1973, %v4665, 0
    %v4904 = vsel %vm1973, %v4666, 0
    %v4907 = vsel %vm1973, %v4667, 0
    %v4910 = vsel %vm1973, %v4668, 0
    %v4913 = vsel %vm1973, %v4669, 0
    %v4916 = vsel %vm1973, %v4670, 0
    %v4919 = vsel %vm1973, %v4671, 0
    %4921 = vmatpush.bf16.msra.mxu0 0
    %4922 = vmatpush.bf16.msra.mxu0 0
    %4923 = vmatpush.bf16.msra.mxu0 0
    %4924 = vmatpush.bf16.msra.mxu0 0
    %4925 = vmatpush.bf16.msra.mxu0 %v4868
    %4926 = vmatpush.bf16.msra.mxu0 %v4867
    %4927 = vmatpush.bf16.msra.mxu0 %v4866
    %4928 = vmatpush.bf16.msra.mxu0 %v4865
    %4929 = vmatmul.bf16.gmra.mxu0 %v4874
    %v4930 = vpop.f32.mrf.mxu0
    %v4931 = vadd.f32 %v4770, %v4930
    %v4932 = vpop.f32.mrf.mxu0
    %v4933 = vadd.f32 %v4772, %v4932
    %4934 = vmatmul.bf16.gmra.mxu0 %v4877
    %v4935 = vpop.f32.mrf.mxu0
    %v4936 = vadd.f32 %v4775, %v4935
    %v4937 = vpop.f32.mrf.mxu0
    %v4938 = vadd.f32 %v4777, %v4937
    %4939 = vmatmul.bf16.gmra.mxu0 %v4880
    %v4940 = vpop.f32.mrf.mxu0
    %v4941 = vadd.f32 %v4780, %v4940
    %v4942 = vpop.f32.mrf.mxu0
    %v4943 = vadd.f32 %v4782, %v4942
    %4944 = vmatmul.bf16.gmra.mxu0 %v4883
    %v4945 = vpop.f32.mrf.mxu0
    %v4946 = vadd.f32 %v4785, %v4945
    %v4947 = vpop.f32.mrf.mxu0
    %v4948 = vadd.f32 %v4787, %v4947
    %4949 = vmatmul.bf16.gmra.mxu0 %v4886
    %v4950 = vpop.f32.mrf.mxu0
    %v4951 = vadd.f32 %v4790, %v4950
    %v4952 = vpop.f32.mrf.mxu0
    %v4953 = vadd.f32 %v4792, %v4952
    %4954 = vmatmul.bf16.gmra.mxu0 %v4889
    %v4955 = vpop.f32.mrf.mxu0
    %v4956 = vadd.f32 %v4795, %v4955
    %v4957 = vpop.f32.mrf.mxu0
    %v4958 = vadd.f32 %v4797, %v4957
    %4959 = vmatmul.bf16.gmra.mxu0 %v4892
    %v4960 = vpop.f32.mrf.mxu0
    %v4961 = vadd.f32 %v4800, %v4960
    %v4962 = vpop.f32.mrf.mxu0
    %v4963 = vadd.f32 %v4802, %v4962
    %4964 = vmatmul.bf16.gmra.mxu0 %v4895
    %v4965 = vpop.f32.mrf.mxu0
    %v4966 = vadd.f32 %v4805, %v4965
    %v4967 = vpop.f32.mrf.mxu0
    %v4968 = vadd.f32 %v4807, %v4967
    %4969 = vmatmul.bf16.gmra.mxu0 %v4898
    %v4970 = vpop.f32.mrf.mxu0
    %v4971 = vadd.f32 %v4810, %v4970
    %v4972 = vpop.f32.mrf.mxu0
    %v4973 = vadd.f32 %v4812, %v4972
    %4974 = vmatmul.bf16.gmra.mxu0 %v4901
    %v4975 = vpop.f32.mrf.mxu0
    %v4976 = vadd.f32 %v4815, %v4975
    %v4977 = vpop.f32.mrf.mxu0
    %v4978 = vadd.f32 %v4817, %v4977
    %4979 = vmatmul.bf16.gmra.mxu0 %v4904
    %v4980 = vpop.f32.mrf.mxu0
    %v4981 = vadd.f32 %v4820, %v4980
    %v4982 = vpop.f32.mrf.mxu0
    %v4983 = vadd.f32 %v4822, %v4982
    %4984 = vmatmul.bf16.gmra.mxu0 %v4907
    %v4985 = vpop.f32.mrf.mxu0
    %v4986 = vadd.f32 %v4825, %v4985
    %v4987 = vpop.f32.mrf.mxu0
    %v4988 = vadd.f32 %v4827, %v4987
    %4989 = vmatmul.bf16.gmra.mxu0 %v4910
    %v4990 = vpop.f32.mrf.mxu0
    %v4991 = vadd.f32 %v4830, %v4990
    %v4992 = vpop.f32.mrf.mxu0
    %v4993 = vadd.f32 %v4832, %v4992
    %4994 = vmatmul.bf16.gmra.mxu0 %v4913
    %v4995 = vpop.f32.mrf.mxu0
    %v4996 = vadd.f32 %v4835, %v4995
    %v4997 = vpop.f32.mrf.mxu0
    %v4998 = vadd.f32 %v4837, %v4997
    %4999 = vmatmul.bf16.gmra.mxu0 %v4916
    %v5000 = vpop.f32.mrf.mxu0
    %v5001 = vadd.f32 %v4840, %v5000
    %v5002 = vpop.f32.mrf.mxu0
    %v5003 = vadd.f32 %v4842, %v5002
    %5004 = vmatmul.bf16.gmra.mxu0 %v4919
    %v5005 = vpop.f32.mrf.mxu0
    %v5006 = vadd.f32 %v4845, %v5005
    %v5007 = vpop.f32.mrf.mxu0
    %v5008 = vadd.f32 %v4847, %v5007
    %5009 = vdwg.mxu0
    %v5010 = vpack.c.bf16 %v4600, %v4599
    %v5011 = vpack.c.bf16 %v4602, %v4601
    %v5012 = vpack.c.bf16 %v4604, %v4603
    %v5013 = vpack.c.bf16 %v4606, %v4605
    %v5014 = vpack.c.bf16 %v4608, %v4607
    %v5015 = vpack.c.bf16 %v4610, %v4609
    %v5016 = vpack.c.bf16 %v4612, %v4611
    %v5017 = vpack.c.bf16 %v4614, %v4613
    %v5018 = vpack.c.bf16 %v4616, %v4615
    %v5019 = vpack.c.bf16 %v4618, %v4617
    %v5020 = vpack.c.bf16 %v4620, %v4619
    %v5021 = vpack.c.bf16 %v4622, %v4621
    %v5022 = vpack.c.bf16 %v4624, %v4623
    %v5023 = vpack.c.bf16 %v4626, %v4625
    %v5024 = vpack.c.bf16 %v4628, %v4627
    %v5033 = vunpack.c.l.b16 %v4648
    %v5034 = vunpack.c.l.b16 %v4649
    %v5035 = vunpack.c.l.b16 %v4650
    %v5036 = vunpack.c.l.b16 %v4651
    %v5037 = vunpack.c.l.b16 %v4652
    %v5038 = vunpack.c.l.b16 %v4653
    %v5039 = vunpack.c.l.b16 %v4654
    %v5040 = vunpack.c.l.b16 %v4655
    %v5041 = vpack.c.b16 %v5034, %v5033
    %v5042 = vpack.c.b16 %v5036, %v5035
    %v5043 = vpack.c.b16 %v5038, %v5037
    %v5044 = vpack.c.b16 %v5040, %v5039
    %v5050 = vsel %vm1973, %v5010, 0
    %v5053 = vsel %vm1973, %v5011, 0
    %v5056 = vsel %vm1973, %v5012, 0
    %v5059 = vsel %vm1973, %v5013, 0
    %v5062 = vsel %vm1973, %v5014, 0
    %v5065 = vsel %vm1973, %v5015, 0
    %v5068 = vsel %vm1973, %v5016, 0
    %v5071 = vsel %vm1973, %v5017, 0
    %v5074 = vsel %vm1973, %v5018, 0
    %v5077 = vsel %vm1973, %v5019, 0
    %v5080 = vsel %vm1973, %v5020, 0
    %v5083 = vsel %vm1973, %v5021, 0
    %v5086 = vsel %vm1973, %v5022, 0
    %v5089 = vsel %vm1973, %v5023, 0
    %v5092 = vsel %vm1973, %v5024, 0
    %5094 = vmatpush.bf16.msra.mxu0 0
    %5095 = vmatpush.bf16.msra.mxu0 0
    %5096 = vmatpush.bf16.msra.mxu0 0
    %5097 = vmatpush.bf16.msra.mxu0 0
    %5098 = vmatpush.bf16.msra.mxu0 %v5044
    %5099 = vmatpush.bf16.msra.mxu0 %v5043
    %5100 = vmatpush.bf16.msra.mxu0 %v5042
    %5101 = vmatpush.bf16.msra.mxu0 %v5041
    %5102 = vmatmul.bf16.gmra.mxu0 %v5050
    %v5103 = vpop.f32.mrf.mxu0
    %v5104 = vadd.f32 0.0, %v5103
    %v5105 = vpop.f32.mrf.mxu0
    %v5106 = vadd.f32 0.0, %v5105
    %5107 = vmatmul.bf16.gmra.mxu0 %v5053
    %v5108 = vpop.f32.mrf.mxu0
    %v5109 = vadd.f32 0.0, %v5108
    %v5110 = vpop.f32.mrf.mxu0
    %v5111 = vadd.f32 0.0, %v5110
    %5112 = vmatmul.bf16.gmra.mxu0 %v5056
    %v5113 = vpop.f32.mrf.mxu0
    %v5114 = vadd.f32 0.0, %v5113
    %v5115 = vpop.f32.mrf.mxu0
    %v5116 = vadd.f32 0.0, %v5115
    %5117 = vmatmul.bf16.gmra.mxu0 %v5059
    %v5118 = vpop.f32.mrf.mxu0
    %v5119 = vadd.f32 0.0, %v5118
    %v5120 = vpop.f32.mrf.mxu0
    %v5121 = vadd.f32 0.0, %v5120
    %5122 = vmatmul.bf16.gmra.mxu0 %v5062
    %v5123 = vpop.f32.mrf.mxu0
    %v5124 = vadd.f32 0.0, %v5123
    %v5125 = vpop.f32.mrf.mxu0
    %v5126 = vadd.f32 0.0, %v5125
    %5127 = vmatmul.bf16.gmra.mxu0 %v5065
    %v5128 = vpop.f32.mrf.mxu0
    %v5129 = vadd.f32 0.0, %v5128
    %v5130 = vpop.f32.mrf.mxu0
    %v5131 = vadd.f32 0.0, %v5130
    %5132 = vmatmul.bf16.gmra.mxu0 %v5068
    %v5133 = vpop.f32.mrf.mxu0
    %v5134 = vadd.f32 0.0, %v5133
    %v5135 = vpop.f32.mrf.mxu0
    %v5136 = vadd.f32 0.0, %v5135
    %5137 = vmatmul.bf16.gmra.mxu0 %v5071
    %v5138 = vpop.f32.mrf.mxu0
    %v5139 = vadd.f32 0.0, %v5138
    %v5140 = vpop.f32.mrf.mxu0
    %v5141 = vadd.f32 0.0, %v5140
    %5142 = vmatmul.bf16.gmra.mxu0 %v5074
    %v5143 = vpop.f32.mrf.mxu0
    %v5144 = vadd.f32 0.0, %v5143
    %v5145 = vpop.f32.mrf.mxu0
    %v5146 = vadd.f32 0.0, %v5145
    %5147 = vmatmul.bf16.gmra.mxu0 %v5077
    %v5148 = vpop.f32.mrf.mxu0
    %v5149 = vadd.f32 0.0, %v5148
    %v5150 = vpop.f32.mrf.mxu0
    %v5151 = vadd.f32 0.0, %v5150
    %5152 = vmatmul.bf16.gmra.mxu0 %v5080
    %v5153 = vpop.f32.mrf.mxu0
    %v5154 = vadd.f32 0.0, %v5153
    %v5155 = vpop.f32.mrf.mxu0
    %v5156 = vadd.f32 0.0, %v5155
    %5157 = vmatmul.bf16.gmra.mxu0 %v5083
    %v5158 = vpop.f32.mrf.mxu0
    %v5159 = vadd.f32 0.0, %v5158
    %v5160 = vpop.f32.mrf.mxu0
    %v5161 = vadd.f32 0.0, %v5160
    %5162 = vmatmul.bf16.gmra.mxu0 %v5086
    %v5163 = vpop.f32.mrf.mxu0
    %v5164 = vadd.f32 0.0, %v5163
    %v5165 = vpop.f32.mrf.mxu0
    %v5166 = vadd.f32 0.0, %v5165
    %5167 = vmatmul.bf16.gmra.mxu0 %v5089
    %v5168 = vpop.f32.mrf.mxu0
    %v5169 = vadd.f32 0.0, %v5168
    %v5170 = vpop.f32.mrf.mxu0
    %v5171 = vadd.f32 0.0, %v5170
    %5172 = vmatmul.bf16.gmra.mxu0 %v5092
    %v5173 = vpop.f32.mrf.mxu0
    %v5174 = vadd.f32 0.0, %v5173
    %v5175 = vpop.f32.mrf.mxu0
    %v5176 = vadd.f32 0.0, %v5175
    %5177 = vmatmul.bf16.gmra.mxu0 %v4874
    %v5178 = vpop.f32.mrf.mxu0
    %v5179 = vadd.f32 0.0, %v5178
    %v5180 = vpop.f32.mrf.mxu0
    %v5181 = vadd.f32 0.0, %v5180
    %5182 = vdwg.mxu0
    %v5183 = vadd.f32 %v4931, %v5104
    %v5184 = vadd.f32 %v4933, %v5106
    %v5185 = vadd.f32 %v4936, %v5109
    %v5186 = vadd.f32 %v4938, %v5111
    %v5187 = vadd.f32 %v4941, %v5114
    %v5188 = vadd.f32 %v4943, %v5116
    %v5189 = vadd.f32 %v4946, %v5119
    %v5190 = vadd.f32 %v4948, %v5121
    %v5191 = vadd.f32 %v4951, %v5124
    %v5192 = vadd.f32 %v4953, %v5126
    %v5193 = vadd.f32 %v4956, %v5129
    %v5194 = vadd.f32 %v4958, %v5131
    %v5195 = vadd.f32 %v4961, %v5134
    %v5196 = vadd.f32 %v4963, %v5136
    %v5197 = vadd.f32 %v4966, %v5139
    %v5198 = vadd.f32 %v4968, %v5141
    %v5199 = vadd.f32 %v4971, %v5144
    %v5200 = vadd.f32 %v4973, %v5146
    %v5201 = vadd.f32 %v4976, %v5149
    %v5202 = vadd.f32 %v4978, %v5151
    %v5203 = vadd.f32 %v4981, %v5154
    %v5204 = vadd.f32 %v4983, %v5156
    %v5205 = vadd.f32 %v4986, %v5159
    %v5206 = vadd.f32 %v4988, %v5161
    %v5207 = vadd.f32 %v4991, %v5164
    %v5208 = vadd.f32 %v4993, %v5166
    %v5209 = vadd.f32 %v4996, %v5169
    %v5210 = vadd.f32 %v4998, %v5171
    %v5211 = vadd.f32 %v5001, %v5174
    %v5212 = vadd.f32 %v5003, %v5176
    %v5213 = vadd.f32 %v5006, %v5179
    %v5214 = vadd.f32 %v5008, %v5181
    %s5215 = scalar_lea.vmem %s3, 4
    %v5216 = vld [vmem:[%s5215] sm:$0x1]
    %v5218 = vperm.slane %v5216, 0
    %v5220 = vadd.f32 %v5183, %v5218
    %v5221 = vadd.f32 %v5184, %v5218
    %v5222 = vadd.f32 %v5185, %v5218
    %v5223 = vadd.f32 %v5186, %v5218
    %v5224 = vadd.f32 %v5187, %v5218
    %v5225 = vadd.f32 %v5188, %v5218
    %v5226 = vadd.f32 %v5189, %v5218
    %v5227 = vadd.f32 %v5190, %v5218
    %v5228 = vadd.f32 %v5191, %v5218
    %v5229 = vadd.f32 %v5192, %v5218
    %v5230 = vadd.f32 %v5193, %v5218
    %v5231 = vadd.f32 %v5194, %v5218
    %v5232 = vadd.f32 %v5195, %v5218
    %v5233 = vadd.f32 %v5196, %v5218
    %v5234 = vadd.f32 %v5197, %v5218
    %v5235 = vadd.f32 %v5198, %v5218
    %v5236 = vadd.f32 %v5199, %v5218
    %v5237 = vadd.f32 %v5200, %v5218
    %v5238 = vadd.f32 %v5201, %v5218
    %v5239 = vadd.f32 %v5202, %v5218
    %v5240 = vadd.f32 %v5203, %v5218
    %v5241 = vadd.f32 %v5204, %v5218
    %v5242 = vadd.f32 %v5205, %v5218
    %v5243 = vadd.f32 %v5206, %v5218
    %v5244 = vadd.f32 %v5207, %v5218
    %v5245 = vadd.f32 %v5208, %v5218
    %v5246 = vadd.f32 %v5209, %v5218
    %v5247 = vadd.f32 %v5210, %v5218
    %v5248 = vadd.f32 %v5211, %v5218
    %v5249 = vadd.f32 %v5212, %v5218
    %v5250 = vadd.f32 %v5213, %v5218
    %v5251 = vadd.f32 %v5214, %v5218
    %v5252 = vmax.f32 %v5220, 0.0
    %v5253 = vmax.f32 %v5221, 0.0
    %v5254 = vmax.f32 %v5222, 0.0
    %v5255 = vmax.f32 %v5223, 0.0
    %v5256 = vmax.f32 %v5224, 0.0
    %v5257 = vmax.f32 %v5225, 0.0
    %v5258 = vmax.f32 %v5226, 0.0
    %v5259 = vmax.f32 %v5227, 0.0
    %v5260 = vmax.f32 %v5228, 0.0
    %v5261 = vmax.f32 %v5229, 0.0
    %v5262 = vmax.f32 %v5230, 0.0
    %v5263 = vmax.f32 %v5231, 0.0
    %v5264 = vmax.f32 %v5232, 0.0
    %v5265 = vmax.f32 %v5233, 0.0
    %v5266 = vmax.f32 %v5234, 0.0
    %v5267 = vmax.f32 %v5235, 0.0
    %v5268 = vmax.f32 %v5236, 0.0
    %v5269 = vmax.f32 %v5237, 0.0
    %v5270 = vmax.f32 %v5238, 0.0
    %v5271 = vmax.f32 %v5239, 0.0
    %v5272 = vmax.f32 %v5240, 0.0
    %v5273 = vmax.f32 %v5241, 0.0
    %v5274 = vmax.f32 %v5242, 0.0
    %v5275 = vmax.f32 %v5243, 0.0
    %v5276 = vmax.f32 %v5244, 0.0
    %v5277 = vmax.f32 %v5245, 0.0
    %v5278 = vmax.f32 %v5246, 0.0
    %v5279 = vmax.f32 %v5247, 0.0
    %v5280 = vmax.f32 %v5248, 0.0
    %v5281 = vmax.f32 %v5249, 0.0
    %v5282 = vmax.f32 %v5250, 0.0
    %v5283 = vmax.f32 %v5251, 0.0
    %v5284 = vmax.f32 %v5252, %v5254
    %v5285 = vmax.f32 %v5253, %v5255
    %v5286 = vmax.f32 %v5254, %v5256
    %v5287 = vmax.f32 %v5255, %v5257
    %v5288 = vmax.f32 %v5256, %v5258
    %v5289 = vmax.f32 %v5257, %v5259
    %v5290 = vmax.f32 %v5258, %v5260
    %v5291 = vmax.f32 %v5259, %v5261
    %v5292 = vmax.f32 %v5260, %v5262
    %v5293 = vmax.f32 %v5261, %v5263
    %v5294 = vmax.f32 %v5262, %v5264
    %v5295 = vmax.f32 %v5263, %v5265
    %v5296 = vmax.f32 %v5264, %v5266
    %v5297 = vmax.f32 %v5265, %v5267
    %v5298 = vmax.f32 %v5266, %v5268
    %v5299 = vmax.f32 %v5267, %v5269
    %v5300 = vmax.f32 %v5268, %v5270
    %v5301 = vmax.f32 %v5269, %v5271
    %v5302 = vmax.f32 %v5270, %v5272
    %v5303 = vmax.f32 %v5271, %v5273
    %v5304 = vmax.f32 %v5272, %v5274
    %v5305 = vmax.f32 %v5273, %v5275
    %v5306 = vmax.f32 %v5274, %v5276
    %v5307 = vmax.f32 %v5275, %v5277
    %v5308 = vmax.f32 %v5276, %v5278
    %v5309 = vmax.f32 %v5277, %v5279
    %v5310 = vmax.f32 %v5278, %v5280
    %v5311 = vmax.f32 %v5279, %v5281
    %v5312 = vmax.f32 %v5280, %v5282
    %v5313 = vmax.f32 %v5281, %v5283
    %v5314 = vmax.f32 %v5282, 0.0
    %v5315 = vmax.f32 %v5283, 0.0
    %v5316 = vsel %vm710, 0.0, %v5284
    %v5317 = vsel %vm711, 0.0, %v5285
    %v5318 = vsel %vm712, 0.0, %v5286
    %v5319 = vsel %vm713, 0.0, %v5287
    %v5320 = vsel %vm714, 0.0, %v5288
    %v5321 = vsel %vm715, 0.0, %v5289
    %v5322 = vsel %vm716, 0.0, %v5290
    %v5323 = vsel %vm717, 0.0, %v5291
    %v5324 = vsel %vm718, 0.0, %v5292
    %v5325 = vsel %vm719, 0.0, %v5293
    %v5326 = vsel %vm720, 0.0, %v5294
    %v5327 = vsel %vm721, 0.0, %v5295
    %v5328 = vsel %vm722, 0.0, %v5296
    %v5329 = vsel %vm723, 0.0, %v5297
    %v5330 = vsel %vm724, 0.0, %v5298
    %v5331 = vsel %vm725, 0.0, %v5299
    %v5332 = vsel %vm726, 0.0, %v5300
    %v5333 = vsel %vm727, 0.0, %v5301
    %v5334 = vsel %vm728, 0.0, %v5302
    %v5335 = vsel %vm729, 0.0, %v5303
    %v5336 = vsel %vm730, 0.0, %v5304
    %v5337 = vsel %vm731, 0.0, %v5305
    %v5338 = vsel %vm732, 0.0, %v5306
    %v5339 = vsel %vm733, 0.0, %v5307
    %v5340 = vsel %vm734, 0.0, %v5308
    %v5341 = vsel %vm735, 0.0, %v5309
    %v5342 = vsel %vm736, 0.0, %v5310
    %v5343 = vsel %vm737, 0.0, %v5311
    %vm5344 = vcmp.eq.s32.totalorder %v416, 96
    %vm5345 = vcmp.eq.s32.totalorder %v417, 96
    %vm5346 = vcmp.eq.s32.totalorder %v418, 96
    %vm5347 = vcmp.eq.s32.totalorder %v419, 96
    %vm5348 = vcmp.eq.s32.totalorder %v420, 96
    %vm5349 = vcmp.eq.s32.totalorder %v421, 96
    %vm5350 = vcmp.eq.s32.totalorder %v422, 96
    %vm5351 = vcmp.eq.s32.totalorder %v423, 96
    %vm5352 = vcmp.eq.s32.totalorder %v424, 96
    %vm5353 = vcmp.eq.s32.totalorder %v425, 96
    %vm5354 = vcmp.eq.s32.totalorder %v426, 96
    %vm5355 = vcmp.eq.s32.totalorder %v427, 96
    %vm5356 = vcmp.eq.s32.totalorder %v428, 96
    %vm5357 = vcmp.eq.s32.totalorder %v429, 96
    %vm5358 = vcmp.eq.s32.totalorder %v430, 96
    %vm5359 = vcmp.eq.s32.totalorder %v431, 96
    %vm5360 = vcmp.eq.s32.totalorder %v432, 96
    %vm5361 = vcmp.eq.s32.totalorder %v433, 96
    %vm5362 = vcmp.eq.s32.totalorder %v434, 96
    %vm5363 = vcmp.eq.s32.totalorder %v435, 96
    %vm5364 = vcmp.eq.s32.totalorder %v436, 96
    %vm5365 = vcmp.eq.s32.totalorder %v437, 96
    %vm5366 = vcmp.eq.s32.totalorder %v438, 96
    %vm5367 = vcmp.eq.s32.totalorder %v439, 96
    %vm5368 = vcmp.eq.s32.totalorder %v440, 96
    %vm5369 = vcmp.eq.s32.totalorder %v441, 96
    %vm5370 = vcmp.eq.s32.totalorder %v442, 96
    %vm5371 = vcmp.eq.s32.totalorder %v443, 96
    %v5372 = vsel %vm5344, 0.0, %v5288
    %v5373 = vsel %vm5345, 0.0, %v5289
    %v5374 = vsel %vm5346, 0.0, %v5290
    %v5375 = vsel %vm5347, 0.0, %v5291
    %v5376 = vsel %vm5348, 0.0, %v5292
    %v5377 = vsel %vm5349, 0.0, %v5293
    %v5378 = vsel %vm5350, 0.0, %v5294
    %v5379 = vsel %vm5351, 0.0, %v5295
    %v5380 = vsel %vm5352, 0.0, %v5296
    %v5381 = vsel %vm5353, 0.0, %v5297
    %v5382 = vsel %vm5354, 0.0, %v5298
    %v5383 = vsel %vm5355, 0.0, %v5299
    %v5384 = vsel %vm5356, 0.0, %v5300
    %v5385 = vsel %vm5357, 0.0, %v5301
    %v5386 = vsel %vm5358, 0.0, %v5302
    %v5387 = vsel %vm5359, 0.0, %v5303
    %v5388 = vsel %vm5360, 0.0, %v5304
    %v5389 = vsel %vm5361, 0.0, %v5305
    %v5390 = vsel %vm5362, 0.0, %v5306
    %v5391 = vsel %vm5363, 0.0, %v5307
    %v5392 = vsel %vm5364, 0.0, %v5308
    %v5393 = vsel %vm5365, 0.0, %v5309
    %v5394 = vsel %vm5366, 0.0, %v5310
    %v5395 = vsel %vm5367, 0.0, %v5311
    %v5396 = vsel %vm5368, 0.0, %v5312
    %v5397 = vsel %vm5369, 0.0, %v5313
    %v5398 = vsel %vm5370, 0.0, %v5314
    %v5399 = vsel %vm5371, 0.0, %v5315
    %s5400 = scalar_lea.vmem %s2, 384
    %v5401 = vld [vmem:[%s5400] sm:$0xf]
    %v5402 = vld [vmem:[%s5400 + $0x4] sm:$0xf]
    %v5403 = vld [vmem:[%s5400 + $0x8] sm:$0xf]
    %v5404 = vld [vmem:[%s5400 + $0xc] sm:$0xf]
    %v5405 = vld [vmem:[%s5400 + $0x10] sm:$0xf]
    %v5406 = vld [vmem:[%s5400 + $0x14] sm:$0xf]
    %v5407 = vld [vmem:[%s5400 + $0x18] sm:$0xf]
    %v5408 = vld [vmem:[%s5400 + $0x1c] sm:$0xf]
    %s5409 = scalar_lea.vmem %s2, 416
    %v5410 = vld [vmem:[%s5409] sm:$0xf]
    %v5411 = vld [vmem:[%s5409 + $0x4] sm:$0xf]
    %v5412 = vld [vmem:[%s5409 + $0x8] sm:$0xf]
    %v5413 = vld [vmem:[%s5409 + $0xc] sm:$0xf]
    %v5414 = vld [vmem:[%s5409 + $0x10] sm:$0xf]
    %v5415 = vld [vmem:[%s5409 + $0x14] sm:$0xf]
    %v5416 = vld [vmem:[%s5409 + $0x18] sm:$0xf]
    %v5417 = vld [vmem:[%s5409 + $0x1c] sm:$0xf]
    %s5418 = scalar_lea.vmem %s2, 448
    %v5419 = vld [vmem:[%s5418] sm:$0xf]
    %v5420 = vld [vmem:[%s5418 + $0x4] sm:$0xf]
    %v5421 = vld [vmem:[%s5418 + $0x8] sm:$0xf]
    %v5422 = vld [vmem:[%s5418 + $0xc] sm:$0xf]
    %v5423 = vld [vmem:[%s5418 + $0x10] sm:$0xf]
    %v5424 = vld [vmem:[%s5418 + $0x14] sm:$0xf]
    %v5425 = vld [vmem:[%s5418 + $0x18] sm:$0xf]
    %v5426 = vld [vmem:[%s5418 + $0x1c] sm:$0xf]
    %v5427 = vpack.c.bf16 %v5317, %v5316
    %v5428 = vpack.c.bf16 %v5319, %v5318
    %v5429 = vpack.c.bf16 %v5321, %v5320
    %v5430 = vpack.c.bf16 %v5323, %v5322
    %v5431 = vpack.c.bf16 %v5325, %v5324
    %v5432 = vpack.c.bf16 %v5327, %v5326
    %v5433 = vpack.c.bf16 %v5329, %v5328
    %v5434 = vpack.c.bf16 %v5331, %v5330
    %v5435 = vpack.c.bf16 %v5333, %v5332
    %v5436 = vpack.c.bf16 %v5335, %v5334
    %v5437 = vpack.c.bf16 %v5337, %v5336
    %v5438 = vpack.c.bf16 %v5339, %v5338
    %v5439 = vpack.c.bf16 %v5341, %v5340
    %v5440 = vpack.c.bf16 %v5343, %v5342
    %v5441 = vpack.c.bf16 %v5285, %v5284
    %v5442 = vpack.c.bf16 %v5287, %v5286
    %v5443 = vpack.c.bf16 %v5289, %v5288
    %v5444 = vpack.c.bf16 %v5291, %v5290
    %v5445 = vpack.c.bf16 %v5293, %v5292
    %v5446 = vpack.c.bf16 %v5295, %v5294
    %v5447 = vpack.c.bf16 %v5297, %v5296
    %v5448 = vpack.c.bf16 %v5299, %v5298
    %v5449 = vpack.c.bf16 %v5301, %v5300
    %v5450 = vpack.c.bf16 %v5303, %v5302
    %v5451 = vpack.c.bf16 %v5305, %v5304
    %v5452 = vpack.c.bf16 %v5307, %v5306
    %v5453 = vpack.c.bf16 %v5309, %v5308
    %v5454 = vpack.c.bf16 %v5311, %v5310
    %v5455 = vpack.c.bf16 %v5313, %v5312
    %v5456 = vpack.c.bf16 %v5315, %v5314
    %v5465 = vunpack.c.l.b16 %v5410
    %v5466 = vunpack.c.l.b16 %v5411
    %v5467 = vunpack.c.l.b16 %v5412
    %v5468 = vunpack.c.l.b16 %v5413
    %v5469 = vunpack.c.l.b16 %v5414
    %v5470 = vunpack.c.l.b16 %v5415
    %v5471 = vunpack.c.l.b16 %v5416
    %v5472 = vunpack.c.l.b16 %v5417
    %v5473 = vpack.c.b16 %v5466, %v5465
    %v5474 = vpack.c.b16 %v5468, %v5467
    %v5475 = vpack.c.b16 %v5470, %v5469
    %v5476 = vpack.c.b16 %v5472, %v5471
    %v5482 = vsel %vm1973, %v5441, 0
    %v5485 = vsel %vm1973, %v5442, 0
    %v5488 = vsel %vm1973, %v5443, 0
    %v5491 = vsel %vm1973, %v5444, 0
    %v5494 = vsel %vm1973, %v5445, 0
    %v5497 = vsel %vm1973, %v5446, 0
    %v5500 = vsel %vm1973, %v5447, 0
    %v5503 = vsel %vm1973, %v5448, 0
    %v5506 = vsel %vm1973, %v5449, 0
    %v5509 = vsel %vm1973, %v5450, 0
    %v5512 = vsel %vm1973, %v5451, 0
    %v5515 = vsel %vm1973, %v5452, 0
    %v5518 = vsel %vm1973, %v5453, 0
    %v5521 = vsel %vm1973, %v5454, 0
    %v5524 = vsel %vm1973, %v5455, 0
    %v5527 = vsel %vm1973, %v5456, 0
    %5529 = vmatpush.bf16.msra.mxu0 0
    %5530 = vmatpush.bf16.msra.mxu0 0
    %5531 = vmatpush.bf16.msra.mxu0 0
    %5532 = vmatpush.bf16.msra.mxu0 0
    %5533 = vmatpush.bf16.msra.mxu0 %v5476
    %5534 = vmatpush.bf16.msra.mxu0 %v5475
    %5535 = vmatpush.bf16.msra.mxu0 %v5474
    %5536 = vmatpush.bf16.msra.mxu0 %v5473
    %5537 = vmatmul.bf16.gmra.mxu0 %v5482
    %v5538 = vpop.f32.mrf.mxu0
    %v5539 = vadd.f32 0.0, %v5538
    %v5540 = vpop.f32.mrf.mxu0
    %v5541 = vadd.f32 0.0, %v5540
    %5542 = vmatmul.bf16.gmra.mxu0 %v5485
    %v5543 = vpop.f32.mrf.mxu0
    %v5544 = vadd.f32 0.0, %v5543
    %v5545 = vpop.f32.mrf.mxu0
    %v5546 = vadd.f32 0.0, %v5545
    %5547 = vmatmul.bf16.gmra.mxu0 %v5488
    %v5548 = vpop.f32.mrf.mxu0
    %v5549 = vadd.f32 0.0, %v5548
    %v5550 = vpop.f32.mrf.mxu0
    %v5551 = vadd.f32 0.0, %v5550
    %5552 = vmatmul.bf16.gmra.mxu0 %v5491
    %v5553 = vpop.f32.mrf.mxu0
    %v5554 = vadd.f32 0.0, %v5553
    %v5555 = vpop.f32.mrf.mxu0
    %v5556 = vadd.f32 0.0, %v5555
    %5557 = vmatmul.bf16.gmra.mxu0 %v5494
    %v5558 = vpop.f32.mrf.mxu0
    %v5559 = vadd.f32 0.0, %v5558
    %v5560 = vpop.f32.mrf.mxu0
    %v5561 = vadd.f32 0.0, %v5560
    %5562 = vmatmul.bf16.gmra.mxu0 %v5497
    %v5563 = vpop.f32.mrf.mxu0
    %v5564 = vadd.f32 0.0, %v5563
    %v5565 = vpop.f32.mrf.mxu0
    %v5566 = vadd.f32 0.0, %v5565
    %5567 = vmatmul.bf16.gmra.mxu0 %v5500
    %v5568 = vpop.f32.mrf.mxu0
    %v5569 = vadd.f32 0.0, %v5568
    %v5570 = vpop.f32.mrf.mxu0
    %v5571 = vadd.f32 0.0, %v5570
    %5572 = vmatmul.bf16.gmra.mxu0 %v5503
    %v5573 = vpop.f32.mrf.mxu0
    %v5574 = vadd.f32 0.0, %v5573
    %v5575 = vpop.f32.mrf.mxu0
    %v5576 = vadd.f32 0.0, %v5575
    %5577 = vmatmul.bf16.gmra.mxu0 %v5506
    %v5578 = vpop.f32.mrf.mxu0
    %v5579 = vadd.f32 0.0, %v5578
    %v5580 = vpop.f32.mrf.mxu0
    %v5581 = vadd.f32 0.0, %v5580
    %5582 = vmatmul.bf16.gmra.mxu0 %v5509
    %v5583 = vpop.f32.mrf.mxu0
    %v5584 = vadd.f32 0.0, %v5583
    %v5585 = vpop.f32.mrf.mxu0
    %v5586 = vadd.f32 0.0, %v5585
    %5587 = vmatmul.bf16.gmra.mxu0 %v5512
    %v5588 = vpop.f32.mrf.mxu0
    %v5589 = vadd.f32 0.0, %v5588
    %v5590 = vpop.f32.mrf.mxu0
    %v5591 = vadd.f32 0.0, %v5590
    %5592 = vmatmul.bf16.gmra.mxu0 %v5515
    %v5593 = vpop.f32.mrf.mxu0
    %v5594 = vadd.f32 0.0, %v5593
    %v5595 = vpop.f32.mrf.mxu0
    %v5596 = vadd.f32 0.0, %v5595
    %5597 = vmatmul.bf16.gmra.mxu0 %v5518
    %v5598 = vpop.f32.mrf.mxu0
    %v5599 = vadd.f32 0.0, %v5598
    %v5600 = vpop.f32.mrf.mxu0
    %v5601 = vadd.f32 0.0, %v5600
    %5602 = vmatmul.bf16.gmra.mxu0 %v5521
    %v5603 = vpop.f32.mrf.mxu0
    %v5604 = vadd.f32 0.0, %v5603
    %v5605 = vpop.f32.mrf.mxu0
    %v5606 = vadd.f32 0.0, %v5605
    %5607 = vmatmul.bf16.gmra.mxu0 %v5524
    %v5608 = vpop.f32.mrf.mxu0
    %v5609 = vadd.f32 0.0, %v5608
    %v5610 = vpop.f32.mrf.mxu0
    %v5611 = vadd.f32 0.0, %v5610
    %5612 = vmatmul.bf16.gmra.mxu0 %v5527
    %v5613 = vpop.f32.mrf.mxu0
    %v5614 = vadd.f32 0.0, %v5613
    %v5615 = vpop.f32.mrf.mxu0
    %v5616 = vadd.f32 0.0, %v5615
    %5617 = vdwg.mxu0
    %v5626 = vunpack.c.l.b16 %v5401
    %v5627 = vunpack.c.l.b16 %v5402
    %v5628 = vunpack.c.l.b16 %v5403
    %v5629 = vunpack.c.l.b16 %v5404
    %v5630 = vunpack.c.l.b16 %v5405
    %v5631 = vunpack.c.l.b16 %v5406
    %v5632 = vunpack.c.l.b16 %v5407
    %v5633 = vunpack.c.l.b16 %v5408
    %v5634 = vpack.c.b16 %v5627, %v5626
    %v5635 = vpack.c.b16 %v5629, %v5628
    %v5636 = vpack.c.b16 %v5631, %v5630
    %v5637 = vpack.c.b16 %v5633, %v5632
    %v5643 = vsel %vm1973, %v5427, 0
    %v5646 = vsel %vm1973, %v5428, 0
    %v5649 = vsel %vm1973, %v5429, 0
    %v5652 = vsel %vm1973, %v5430, 0
    %v5655 = vsel %vm1973, %v5431, 0
    %v5658 = vsel %vm1973, %v5432, 0
    %v5661 = vsel %vm1973, %v5433, 0
    %v5664 = vsel %vm1973, %v5434, 0
    %v5667 = vsel %vm1973, %v5435, 0
    %v5670 = vsel %vm1973, %v5436, 0
    %v5673 = vsel %vm1973, %v5437, 0
    %v5676 = vsel %vm1973, %v5438, 0
    %v5679 = vsel %vm1973, %v5439, 0
    %v5682 = vsel %vm1973, %v5440, 0
    %5684 = vmatpush.bf16.msra.mxu0 0
    %5685 = vmatpush.bf16.msra.mxu0 0
    %5686 = vmatpush.bf16.msra.mxu0 0
    %5687 = vmatpush.bf16.msra.mxu0 0
    %5688 = vmatpush.bf16.msra.mxu0 %v5637
    %5689 = vmatpush.bf16.msra.mxu0 %v5636
    %5690 = vmatpush.bf16.msra.mxu0 %v5635
    %5691 = vmatpush.bf16.msra.mxu0 %v5634
    %5692 = vmatmul.bf16.gmra.mxu0 %v4874
    %v5693 = vpop.f32.mrf.mxu0
    %v5694 = vadd.f32 %v5539, %v5693
    %v5695 = vpop.f32.mrf.mxu0
    %v5696 = vadd.f32 %v5541, %v5695
    %5697 = vmatmul.bf16.gmra.mxu0 %v4874
    %v5698 = vpop.f32.mrf.mxu0
    %v5699 = vadd.f32 %v5544, %v5698
    %v5700 = vpop.f32.mrf.mxu0
    %v5701 = vadd.f32 %v5546, %v5700
    %5702 = vmatmul.bf16.gmra.mxu0 %v5643
    %v5703 = vpop.f32.mrf.mxu0
    %v5704 = vadd.f32 %v5549, %v5703
    %v5705 = vpop.f32.mrf.mxu0
    %v5706 = vadd.f32 %v5551, %v5705
    %5707 = vmatmul.bf16.gmra.mxu0 %v5646
    %v5708 = vpop.f32.mrf.mxu0
    %v5709 = vadd.f32 %v5554, %v5708
    %v5710 = vpop.f32.mrf.mxu0
    %v5711 = vadd.f32 %v5556, %v5710
    %5712 = vmatmul.bf16.gmra.mxu0 %v5649
    %v5713 = vpop.f32.mrf.mxu0
    %v5714 = vadd.f32 %v5559, %v5713
    %v5715 = vpop.f32.mrf.mxu0
    %v5716 = vadd.f32 %v5561, %v5715
    %5717 = vmatmul.bf16.gmra.mxu0 %v5652
    %v5718 = vpop.f32.mrf.mxu0
    %v5719 = vadd.f32 %v5564, %v5718
    %v5720 = vpop.f32.mrf.mxu0
    %v5721 = vadd.f32 %v5566, %v5720
    %5722 = vmatmul.bf16.gmra.mxu0 %v5655
    %v5723 = vpop.f32.mrf.mxu0
    %v5724 = vadd.f32 %v5569, %v5723
    %v5725 = vpop.f32.mrf.mxu0
    %v5726 = vadd.f32 %v5571, %v5725
    %5727 = vmatmul.bf16.gmra.mxu0 %v5658
    %v5728 = vpop.f32.mrf.mxu0
    %v5729 = vadd.f32 %v5574, %v5728
    %v5730 = vpop.f32.mrf.mxu0
    %v5731 = vadd.f32 %v5576, %v5730
    %5732 = vmatmul.bf16.gmra.mxu0 %v5661
    %v5733 = vpop.f32.mrf.mxu0
    %v5734 = vadd.f32 %v5579, %v5733
    %v5735 = vpop.f32.mrf.mxu0
    %v5736 = vadd.f32 %v5581, %v5735
    %5737 = vmatmul.bf16.gmra.mxu0 %v5664
    %v5738 = vpop.f32.mrf.mxu0
    %v5739 = vadd.f32 %v5584, %v5738
    %v5740 = vpop.f32.mrf.mxu0
    %v5741 = vadd.f32 %v5586, %v5740
    %5742 = vmatmul.bf16.gmra.mxu0 %v5667
    %v5743 = vpop.f32.mrf.mxu0
    %v5744 = vadd.f32 %v5589, %v5743
    %v5745 = vpop.f32.mrf.mxu0
    %v5746 = vadd.f32 %v5591, %v5745
    %5747 = vmatmul.bf16.gmra.mxu0 %v5670
    %v5748 = vpop.f32.mrf.mxu0
    %v5749 = vadd.f32 %v5594, %v5748
    %v5750 = vpop.f32.mrf.mxu0
    %v5751 = vadd.f32 %v5596, %v5750
    %5752 = vmatmul.bf16.gmra.mxu0 %v5673
    %v5753 = vpop.f32.mrf.mxu0
    %v5754 = vadd.f32 %v5599, %v5753
    %v5755 = vpop.f32.mrf.mxu0
    %v5756 = vadd.f32 %v5601, %v5755
    %5757 = vmatmul.bf16.gmra.mxu0 %v5676
    %v5758 = vpop.f32.mrf.mxu0
    %v5759 = vadd.f32 %v5604, %v5758
    %v5760 = vpop.f32.mrf.mxu0
    %v5761 = vadd.f32 %v5606, %v5760
    %5762 = vmatmul.bf16.gmra.mxu0 %v5679
    %v5763 = vpop.f32.mrf.mxu0
    %v5764 = vadd.f32 %v5609, %v5763
    %v5765 = vpop.f32.mrf.mxu0
    %v5766 = vadd.f32 %v5611, %v5765
    %5767 = vmatmul.bf16.gmra.mxu0 %v5682
    %v5768 = vpop.f32.mrf.mxu0
    %v5769 = vadd.f32 %v5614, %v5768
    %v5770 = vpop.f32.mrf.mxu0
    %v5771 = vadd.f32 %v5616, %v5770
    %5772 = vdwg.mxu0
    %v5773 = vpack.c.bf16 %v5373, %v5372
    %v5774 = vpack.c.bf16 %v5375, %v5374
    %v5775 = vpack.c.bf16 %v5377, %v5376
    %v5776 = vpack.c.bf16 %v5379, %v5378
    %v5777 = vpack.c.bf16 %v5381, %v5380
    %v5778 = vpack.c.bf16 %v5383, %v5382
    %v5779 = vpack.c.bf16 %v5385, %v5384
    %v5780 = vpack.c.bf16 %v5387, %v5386
    %v5781 = vpack.c.bf16 %v5389, %v5388
    %v5782 = vpack.c.bf16 %v5391, %v5390
    %v5783 = vpack.c.bf16 %v5393, %v5392
    %v5784 = vpack.c.bf16 %v5395, %v5394
    %v5785 = vpack.c.bf16 %v5397, %v5396
    %v5786 = vpack.c.bf16 %v5399, %v5398
    %v5795 = vunpack.c.l.b16 %v5419
    %v5796 = vunpack.c.l.b16 %v5420
    %v5797 = vunpack.c.l.b16 %v5421
    %v5798 = vunpack.c.l.b16 %v5422
    %v5799 = vunpack.c.l.b16 %v5423
    %v5800 = vunpack.c.l.b16 %v5424
    %v5801 = vunpack.c.l.b16 %v5425
    %v5802 = vunpack.c.l.b16 %v5426
    %v5803 = vpack.c.b16 %v5796, %v5795
    %v5804 = vpack.c.b16 %v5798, %v5797
    %v5805 = vpack.c.b16 %v5800, %v5799
    %v5806 = vpack.c.b16 %v5802, %v5801
    %v5812 = vsel %vm1973, %v5773, 0
    %v5815 = vsel %vm1973, %v5774, 0
    %v5818 = vsel %vm1973, %v5775, 0
    %v5821 = vsel %vm1973, %v5776, 0
    %v5824 = vsel %vm1973, %v5777, 0
    %v5827 = vsel %vm1973, %v5778, 0
    %v5830 = vsel %vm1973, %v5779, 0
    %v5833 = vsel %vm1973, %v5780, 0
    %v5836 = vsel %vm1973, %v5781, 0
    %v5839 = vsel %vm1973, %v5782, 0
    %v5842 = vsel %vm1973, %v5783, 0
    %v5845 = vsel %vm1973, %v5784, 0
    %v5848 = vsel %vm1973, %v5785, 0
    %v5851 = vsel %vm1973, %v5786, 0
    %5853 = vmatpush.bf16.msra.mxu0 0
    %5854 = vmatpush.bf16.msra.mxu0 0
    %5855 = vmatpush.bf16.msra.mxu0 0
    %5856 = vmatpush.bf16.msra.mxu0 0
    %5857 = vmatpush.bf16.msra.mxu0 %v5806
    %5858 = vmatpush.bf16.msra.mxu0 %v5805
    %5859 = vmatpush.bf16.msra.mxu0 %v5804
    %5860 = vmatpush.bf16.msra.mxu0 %v5803
    %5861 = vmatmul.bf16.gmra.mxu0 %v5812
    %v5862 = vpop.f32.mrf.mxu0
    %v5863 = vadd.f32 0.0, %v5862
    %v5864 = vpop.f32.mrf.mxu0
    %v5865 = vadd.f32 0.0, %v5864
    %5866 = vmatmul.bf16.gmra.mxu0 %v5815
    %v5867 = vpop.f32.mrf.mxu0
    %v5868 = vadd.f32 0.0, %v5867
    %v5869 = vpop.f32.mrf.mxu0
    %v5870 = vadd.f32 0.0, %v5869
    %5871 = vmatmul.bf16.gmra.mxu0 %v5818
    %v5872 = vpop.f32.mrf.mxu0
    %v5873 = vadd.f32 0.0, %v5872
    %v5874 = vpop.f32.mrf.mxu0
    %v5875 = vadd.f32 0.0, %v5874
    %5876 = vmatmul.bf16.gmra.mxu0 %v5821
    %v5877 = vpop.f32.mrf.mxu0
    %v5878 = vadd.f32 0.0, %v5877
    %v5879 = vpop.f32.mrf.mxu0
    %v5880 = vadd.f32 0.0, %v5879
    %5881 = vmatmul.bf16.gmra.mxu0 %v5824
    %v5882 = vpop.f32.mrf.mxu0
    %v5883 = vadd.f32 0.0, %v5882
    %v5884 = vpop.f32.mrf.mxu0
    %v5885 = vadd.f32 0.0, %v5884
    %5886 = vmatmul.bf16.gmra.mxu0 %v5827
    %v5887 = vpop.f32.mrf.mxu0
    %v5888 = vadd.f32 0.0, %v5887
    %v5889 = vpop.f32.mrf.mxu0
    %v5890 = vadd.f32 0.0, %v5889
    %5891 = vmatmul.bf16.gmra.mxu0 %v5830
    %v5892 = vpop.f32.mrf.mxu0
    %v5893 = vadd.f32 0.0, %v5892
    %v5894 = vpop.f32.mrf.mxu0
    %v5895 = vadd.f32 0.0, %v5894
    %5896 = vmatmul.bf16.gmra.mxu0 %v5833
    %v5897 = vpop.f32.mrf.mxu0
    %v5898 = vadd.f32 0.0, %v5897
    %v5899 = vpop.f32.mrf.mxu0
    %v5900 = vadd.f32 0.0, %v5899
    %5901 = vmatmul.bf16.gmra.mxu0 %v5836
    %v5902 = vpop.f32.mrf.mxu0
    %v5903 = vadd.f32 0.0, %v5902
    %v5904 = vpop.f32.mrf.mxu0
    %v5905 = vadd.f32 0.0, %v5904
    %5906 = vmatmul.bf16.gmra.mxu0 %v5839
    %v5907 = vpop.f32.mrf.mxu0
    %v5908 = vadd.f32 0.0, %v5907
    %v5909 = vpop.f32.mrf.mxu0
    %v5910 = vadd.f32 0.0, %v5909
    %5911 = vmatmul.bf16.gmra.mxu0 %v5842
    %v5912 = vpop.f32.mrf.mxu0
    %v5913 = vadd.f32 0.0, %v5912
    %v5914 = vpop.f32.mrf.mxu0
    %v5915 = vadd.f32 0.0, %v5914
    %5916 = vmatmul.bf16.gmra.mxu0 %v5845
    %v5917 = vpop.f32.mrf.mxu0
    %v5918 = vadd.f32 0.0, %v5917
    %v5919 = vpop.f32.mrf.mxu0
    %v5920 = vadd.f32 0.0, %v5919
    %5921 = vmatmul.bf16.gmra.mxu0 %v5848
    %v5922 = vpop.f32.mrf.mxu0
    %v5923 = vadd.f32 0.0, %v5922
    %v5924 = vpop.f32.mrf.mxu0
    %v5925 = vadd.f32 0.0, %v5924
    %5926 = vmatmul.bf16.gmra.mxu0 %v5851
    %v5927 = vpop.f32.mrf.mxu0
    %v5928 = vadd.f32 0.0, %v5927
    %v5929 = vpop.f32.mrf.mxu0
    %v5930 = vadd.f32 0.0, %v5929
    %5931 = vmatmul.bf16.gmra.mxu0 %v4874
    %v5932 = vpop.f32.mrf.mxu0
    %v5933 = vadd.f32 0.0, %v5932
    %v5934 = vpop.f32.mrf.mxu0
    %v5935 = vadd.f32 0.0, %v5934
    %5936 = vmatmul.bf16.gmra.mxu0 %v4874
    %v5937 = vpop.f32.mrf.mxu0
    %v5938 = vadd.f32 0.0, %v5937
    %v5939 = vpop.f32.mrf.mxu0
    %v5940 = vadd.f32 0.0, %v5939
    %5941 = vdwg.mxu0
    %v5942 = vadd.f32 %v5694, %v5863
    %v5943 = vadd.f32 %v5696, %v5865
    %v5944 = vadd.f32 %v5699, %v5868
    %v5945 = vadd.f32 %v5701, %v5870
    %v5946 = vadd.f32 %v5704, %v5873
    %v5947 = vadd.f32 %v5706, %v5875
    %v5948 = vadd.f32 %v5709, %v5878
    %v5949 = vadd.f32 %v5711, %v5880
    %v5950 = vadd.f32 %v5714, %v5883
    %v5951 = vadd.f32 %v5716, %v5885
    %v5952 = vadd.f32 %v5719, %v5888
    %v5953 = vadd.f32 %v5721, %v5890
    %v5954 = vadd.f32 %v5724, %v5893
    %v5955 = vadd.f32 %v5726, %v5895
    %v5956 = vadd.f32 %v5729, %v5898
    %v5957 = vadd.f32 %v5731, %v5900
    %v5958 = vadd.f32 %v5734, %v5903
    %v5959 = vadd.f32 %v5736, %v5905
    %v5960 = vadd.f32 %v5739, %v5908
    %v5961 = vadd.f32 %v5741, %v5910
    %v5962 = vadd.f32 %v5744, %v5913
    %v5963 = vadd.f32 %v5746, %v5915
    %v5964 = vadd.f32 %v5749, %v5918
    %v5965 = vadd.f32 %v5751, %v5920
    %v5966 = vadd.f32 %v5754, %v5923
    %v5967 = vadd.f32 %v5756, %v5925
    %v5968 = vadd.f32 %v5759, %v5928
    %v5969 = vadd.f32 %v5761, %v5930
    %v5970 = vadd.f32 %v5764, %v5933
    %v5971 = vadd.f32 %v5766, %v5935
    %v5972 = vadd.f32 %v5769, %v5938
    %v5973 = vadd.f32 %v5771, %v5940
    %s5974 = scalar_lea.vmem %s3, 5
    %v5975 = vld [vmem:[%s5974] sm:$0x1]
    %v5977 = vperm.slane %v5975, 0
    %v5979 = vadd.f32 %v5942, %v5977
    %v5980 = vadd.f32 %v5943, %v5977
    %v5981 = vadd.f32 %v5944, %v5977
    %v5982 = vadd.f32 %v5945, %v5977
    %v5983 = vadd.f32 %v5946, %v5977
    %v5984 = vadd.f32 %v5947, %v5977
    %v5985 = vadd.f32 %v5948, %v5977
    %v5986 = vadd.f32 %v5949, %v5977
    %v5987 = vadd.f32 %v5950, %v5977
    %v5988 = vadd.f32 %v5951, %v5977
    %v5989 = vadd.f32 %v5952, %v5977
    %v5990 = vadd.f32 %v5953, %v5977
    %v5991 = vadd.f32 %v5954, %v5977
    %v5992 = vadd.f32 %v5955, %v5977
    %v5993 = vadd.f32 %v5956, %v5977
    %v5994 = vadd.f32 %v5957, %v5977
    %v5995 = vadd.f32 %v5958, %v5977
    %v5996 = vadd.f32 %v5959, %v5977
    %v5997 = vadd.f32 %v5960, %v5977
    %v5998 = vadd.f32 %v5961, %v5977
    %v5999 = vadd.f32 %v5962, %v5977
    %v6000 = vadd.f32 %v5963, %v5977
    %v6001 = vadd.f32 %v5964, %v5977
    %v6002 = vadd.f32 %v5965, %v5977
    %v6003 = vadd.f32 %v5966, %v5977
    %v6004 = vadd.f32 %v5967, %v5977
    %v6005 = vadd.f32 %v5968, %v5977
    %v6006 = vadd.f32 %v5969, %v5977
    %v6007 = vadd.f32 %v5970, %v5977
    %v6008 = vadd.f32 %v5971, %v5977
    %v6009 = vadd.f32 %v5972, %v5977
    %v6010 = vadd.f32 %v5973, %v5977
    %v6011 = vmax.f32 %v5979, 0.0
    %v6012 = vmax.f32 %v5980, 0.0
    %v6013 = vmax.f32 %v5981, 0.0
    %v6014 = vmax.f32 %v5982, 0.0
    %v6015 = vmax.f32 %v5983, 0.0
    %v6016 = vmax.f32 %v5984, 0.0
    %v6017 = vmax.f32 %v5985, 0.0
    %v6018 = vmax.f32 %v5986, 0.0
    %v6019 = vmax.f32 %v5987, 0.0
    %v6020 = vmax.f32 %v5988, 0.0
    %v6021 = vmax.f32 %v5989, 0.0
    %v6022 = vmax.f32 %v5990, 0.0
    %v6023 = vmax.f32 %v5991, 0.0
    %v6024 = vmax.f32 %v5992, 0.0
    %v6025 = vmax.f32 %v5993, 0.0
    %v6026 = vmax.f32 %v5994, 0.0
    %v6027 = vmax.f32 %v5995, 0.0
    %v6028 = vmax.f32 %v5996, 0.0
    %v6029 = vmax.f32 %v5997, 0.0
    %v6030 = vmax.f32 %v5998, 0.0
    %v6031 = vmax.f32 %v5999, 0.0
    %v6032 = vmax.f32 %v6000, 0.0
    %v6033 = vmax.f32 %v6001, 0.0
    %v6034 = vmax.f32 %v6002, 0.0
    %v6035 = vmax.f32 %v6003, 0.0
    %v6036 = vmax.f32 %v6004, 0.0
    %v6037 = vmax.f32 %v6005, 0.0
    %v6038 = vmax.f32 %v6006, 0.0
    %v6039 = vmax.f32 %v6007, 0.0
    %v6040 = vmax.f32 %v6008, 0.0
    %v6041 = vmax.f32 %v6009, 0.0
    %v6042 = vmax.f32 %v6010, 0.0
    %v6043 = vadd.f32 %v6011, %v6015
    %v6044 = vadd.f32 %v6012, %v6016
    %v6045 = vadd.f32 %v6013, %v6017
    %v6046 = vadd.f32 %v6014, %v6018
    %v6047 = vadd.f32 %v6015, %v6019
    %v6048 = vadd.f32 %v6016, %v6020
    %v6049 = vadd.f32 %v6017, %v6021
    %v6050 = vadd.f32 %v6018, %v6022
    %v6051 = vadd.f32 %v6019, %v6023
    %v6052 = vadd.f32 %v6020, %v6024
    %v6053 = vadd.f32 %v6021, %v6025
    %v6054 = vadd.f32 %v6022, %v6026
    %v6055 = vadd.f32 %v6023, %v6027
    %v6056 = vadd.f32 %v6024, %v6028
    %v6057 = vadd.f32 %v6025, %v6029
    %v6058 = vadd.f32 %v6026, %v6030
    %v6059 = vadd.f32 %v6027, %v6031
    %v6060 = vadd.f32 %v6028, %v6032
    %v6061 = vadd.f32 %v6029, %v6033
    %v6062 = vadd.f32 %v6030, %v6034
    %v6063 = vadd.f32 %v6031, %v6035
    %v6064 = vadd.f32 %v6032, %v6036
    %v6065 = vadd.f32 %v6033, %v6037
    %v6066 = vadd.f32 %v6034, %v6038
    %v6067 = vadd.f32 %v6035, %v6039
    %v6068 = vadd.f32 %v6036, %v6040
    %v6069 = vadd.f32 %v6037, %v6041
    %v6070 = vadd.f32 %v6038, %v6042
    %v6071 = vadd.f32 %v6039, 0.0
    %v6072 = vadd.f32 %v6040, 0.0
    %v6073 = vadd.f32 %v6041, 0.0
    %v6074 = vadd.f32 %v6042, 0.0
    %v6075 = vmul.f32 %v6043, 0.5
    %v6076 = vmul.f32 %v6044, 0.5
    %v6077 = vmul.f32 %v6045, 0.5
    %v6078 = vmul.f32 %v6046, 0.5
    %v6079 = vmul.f32 %v6047, 0.5
    %v6080 = vmul.f32 %v6048, 0.5
    %v6081 = vmul.f32 %v6049, 0.5
    %v6082 = vmul.f32 %v6050, 0.5
    %v6083 = vmul.f32 %v6051, 0.5
    %v6084 = vmul.f32 %v6052, 0.5
    %v6085 = vmul.f32 %v6053, 0.5
    %v6086 = vmul.f32 %v6054, 0.5
    %v6087 = vmul.f32 %v6055, 0.5
    %v6088 = vmul.f32 %v6056, 0.5
    %v6089 = vmul.f32 %v6057, 0.5
    %v6090 = vmul.f32 %v6058, 0.5
    %v6091 = vmul.f32 %v6059, 0.5
    %v6092 = vmul.f32 %v6060, 0.5
    %v6093 = vmul.f32 %v6061, 0.5
    %v6094 = vmul.f32 %v6062, 0.5
    %v6095 = vmul.f32 %v6063, 0.5
    %v6096 = vmul.f32 %v6064, 0.5
    %v6097 = vmul.f32 %v6065, 0.5
    %v6098 = vmul.f32 %v6066, 0.5
    %v6099 = vmul.f32 %v6067, 0.5
    %v6100 = vmul.f32 %v6068, 0.5
    %v6101 = vmul.f32 %v6069, 0.5
    %v6102 = vmul.f32 %v6070, 0.5
    %v6103 = vmul.f32 %v6071, 0.5
    %v6104 = vmul.f32 %v6072, 0.5
    %v6105 = vmul.f32 %v6073, 0.5
    %v6106 = vmul.f32 %v6074, 0.5
    %v6107 = vpack.c.bf16 %v6076, %v6075
    %v6108 = vpack.c.bf16 %v6078, %v6077
    %v6109 = vpack.c.bf16 %v6080, %v6079
    %v6110 = vpack.c.bf16 %v6082, %v6081
    %v6111 = vpack.c.bf16 %v6084, %v6083
    %v6112 = vpack.c.bf16 %v6086, %v6085
    %v6113 = vpack.c.bf16 %v6088, %v6087
    %v6114 = vpack.c.bf16 %v6090, %v6089
    %v6115 = vpack.c.bf16 %v6092, %v6091
    %v6116 = vpack.c.bf16 %v6094, %v6093
    %v6117 = vpack.c.bf16 %v6096, %v6095
    %v6118 = vpack.c.bf16 %v6098, %v6097
    %v6119 = vpack.c.bf16 %v6100, %v6099
    %v6120 = vpack.c.bf16 %v6102, %v6101
    %v6121 = vpack.c.bf16 %v6104, %v6103
    %v6122 = vpack.c.bf16 %v6106, %v6105
    %v6123 = vlaneseq
    %v6124 = vand.u32 %v6123, 127
    %v6125 = vadd.s32 %v6124, 128
    %v6126 = vmul.u32 %v32, 128
    %vm6127 = vcmp.eq.s32.totalorder %v6124, %v6126
    %vm6128 = vcmp.eq.s32.totalorder %v6125, %v6126
    %v6129 = vsel %vm6127, 1.0, 0.0
    %v6130 = vsel %vm6128, 1.0, 0.0
    %v6131 = vpack.c.bf16 %v6129, %v6129
    %v6132 = vpack.c.bf16 %v6130, %v6130
    %v6133 = vadd.s32 %v6126, 64
    %vm6134 = vcmp.eq.s32.totalorder %v6124, %v6133
    %vm6135 = vcmp.eq.s32.totalorder %v6125, %v6133
    %v6136 = vsel %vm6134, 1.0, 0.0
    %v6137 = vsel %vm6135, 1.0, 0.0
    %v6138 = vpack.c.bf16 %v6136, %v6136
    %v6139 = vpack.c.bf16 %v6137, %v6137
    %6140 = vmatpush.bf16.msra.mxu0 %v6114
    %6141 = vmatpush.bf16.msra.mxu0 %v6113
    %6142 = vmatpush.bf16.msra.mxu0 %v6112
    %6143 = vmatpush.bf16.msra.mxu0 %v6111
    %6144 = vmatpush.bf16.msra.mxu0 %v6110
    %6145 = vmatpush.bf16.msra.mxu0 %v6109
    %6146 = vmatpush.bf16.msra.mxu0 %v6108
    %6147 = vmatpush.bf16.msra.mxu0 %v6107
    %6148 = vmatmul.bf16.gmra.mxu0 %v6131
    %v6149 = vpop.f32.mrf.mxu0
    %v6150 = vadd.f32 0.0, %v6149
    %v6151 = vpop.f32.mrf.mxu0
    %6152 = vdwg.mxu0
    %6153 = vmatpush.bf16.msra.mxu0 %v6122
    %6154 = vmatpush.bf16.msra.mxu0 %v6121
    %6155 = vmatpush.bf16.msra.mxu0 %v6120
    %6156 = vmatpush.bf16.msra.mxu0 %v6119
    %6157 = vmatpush.bf16.msra.mxu0 %v6118
    %6158 = vmatpush.bf16.msra.mxu0 %v6117
    %6159 = vmatpush.bf16.msra.mxu0 %v6116
    %6160 = vmatpush.bf16.msra.mxu0 %v6115
    %6161 = vmatmul.bf16.gmra.mxu0 %v6132
    %v6162 = vpop.f32.mrf.mxu0
    %v6163 = vadd.f32 %v6150, %v6162
    %v6164 = vpop.f32.mrf.mxu0
    %6165 = vdwg.mxu0
    %v6166 = vpack.c.bf16 %v6163, %v6163
    %6167 = vmatpush.bf16.msra.mxu0 %v6114
    %6168 = vmatpush.bf16.msra.mxu0 %v6113
    %6169 = vmatpush.bf16.msra.mxu0 %v6112
    %6170 = vmatpush.bf16.msra.mxu0 %v6111
    %6171 = vmatpush.bf16.msra.mxu0 %v6110
    %6172 = vmatpush.bf16.msra.mxu0 %v6109
    %6173 = vmatpush.bf16.msra.mxu0 %v6108
    %6174 = vmatpush.bf16.msra.mxu0 %v6107
    %6175 = vmatmul.bf16.gmra.mxu0 %v6138
    %v6176 = vpop.f32.mrf.mxu0
    %v6177 = vadd.f32 0.0, %v6176
    %v6178 = vpop.f32.mrf.mxu0
    %6179 = vdwg.mxu0
    %6180 = vmatpush.bf16.msra.mxu0 %v6122
    %6181 = vmatpush.bf16.msra.mxu0 %v6121
    %6182 = vmatpush.bf16.msra.mxu0 %v6120
    %6183 = vmatpush.bf16.msra.mxu0 %v6119
    %6184 = vmatpush.bf16.msra.mxu0 %v6118
    %6185 = vmatpush.bf16.msra.mxu0 %v6117
    %6186 = vmatpush.bf16.msra.mxu0 %v6116
    %6187 = vmatpush.bf16.msra.mxu0 %v6115
    %6188 = vmatmul.bf16.gmra.mxu0 %v6139
    %v6189 = vpop.f32.mrf.mxu0
    %v6190 = vadd.f32 %v6177, %v6189
    %v6191 = vpop.f32.mrf.mxu0
    %6192 = vdwg.mxu0
    %v6193 = vpack.c.bf16 %v6190, %v6190
    %v6194 = vld [vmem:[%s4] sm:$0xf]
    %v6195 = vld [vmem:[%s4 + $0x4] sm:$0xf]
    %v6196 = vld [vmem:[%s4 + $0x8] sm:$0xf]
    %v6197 = vld [vmem:[%s4 + $0xc] sm:$0xf]
    %v6198 = vld [vmem:[%s4 + $0x10] sm:$0xf]
    %v6199 = vld [vmem:[%s4 + $0x14] sm:$0xf]
    %v6200 = vld [vmem:[%s4 + $0x18] sm:$0xf]
    %v6201 = vld [vmem:[%s4 + $0x1c] sm:$0xf]
    %s6202 = scalar_lea.vmem %s4, 32
    %v6203 = vld [vmem:[%s6202] sm:$0xf]
    %v6204 = vld [vmem:[%s6202 + $0x4] sm:$0xf]
    %v6205 = vld [vmem:[%s6202 + $0x8] sm:$0xf]
    %v6206 = vld [vmem:[%s6202 + $0xc] sm:$0xf]
    %v6207 = vld [vmem:[%s6202 + $0x10] sm:$0xf]
    %v6208 = vld [vmem:[%s6202 + $0x14] sm:$0xf]
    %v6209 = vld [vmem:[%s6202 + $0x18] sm:$0xf]
    %v6210 = vld [vmem:[%s6202 + $0x1c] sm:$0xf]
    %v6219 = vunpack.c.l.b16 %v6203
    %v6220 = vunpack.c.l.b16 %v6204
    %v6221 = vunpack.c.l.b16 %v6205
    %v6222 = vunpack.c.l.b16 %v6206
    %v6223 = vunpack.c.l.b16 %v6207
    %v6224 = vunpack.c.l.b16 %v6208
    %v6225 = vunpack.c.l.b16 %v6209
    %v6226 = vunpack.c.l.b16 %v6210
    %v6227 = vpack.c.b16 %v6220, %v6219
    %v6228 = vpack.c.b16 %v6222, %v6221
    %v6229 = vpack.c.b16 %v6224, %v6223
    %v6230 = vpack.c.b16 %v6226, %v6225
    %v6236 = vsel %vm1973, %v6193, 0
    %6238 = vmatpush.bf16.msra.mxu0 0
    %6239 = vmatpush.bf16.msra.mxu0 0
    %6240 = vmatpush.bf16.msra.mxu0 0
    %6241 = vmatpush.bf16.msra.mxu0 0
    %6242 = vmatpush.bf16.msra.mxu0 %v6230
    %6243 = vmatpush.bf16.msra.mxu0 %v6229
    %6244 = vmatpush.bf16.msra.mxu0 %v6228
    %6245 = vmatpush.bf16.msra.mxu0 %v6227
    %6246 = vmatmul.bf16.gmra.mxu0 %v6236
    %v6247 = vpop.f32.mrf.mxu0
    %v6248 = vadd.f32 0.0, %v6247
    %v6249 = vpop.f32.mrf.mxu0
    %6250 = vdwg.mxu0
    %v6259 = vunpack.c.l.b16 %v6194
    %v6260 = vunpack.c.l.b16 %v6195
    %v6261 = vunpack.c.l.b16 %v6196
    %v6262 = vunpack.c.l.b16 %v6197
    %v6263 = vunpack.c.l.b16 %v6198
    %v6264 = vunpack.c.l.b16 %v6199
    %v6265 = vunpack.c.l.b16 %v6200
    %v6266 = vunpack.c.l.b16 %v6201
    %v6267 = vpack.c.b16 %v6260, %v6259
    %v6268 = vpack.c.b16 %v6262, %v6261
    %v6269 = vpack.c.b16 %v6264, %v6263
    %v6270 = vpack.c.b16 %v6266, %v6265
    %v6276 = vsel %vm1973, %v6166, 0
    %6278 = vmatpush.bf16.msra.mxu0 0
    %6279 = vmatpush.bf16.msra.mxu0 0
    %6280 = vmatpush.bf16.msra.mxu0 0
    %6281 = vmatpush.bf16.msra.mxu0 0
    %6282 = vmatpush.bf16.msra.mxu0 %v6270
    %6283 = vmatpush.bf16.msra.mxu0 %v6269
    %6284 = vmatpush.bf16.msra.mxu0 %v6268
    %6285 = vmatpush.bf16.msra.mxu0 %v6267
    %6286 = vmatmul.bf16.gmra.mxu0 %v6276
    %v6287 = vpop.f32.mrf.mxu0
    %v6288 = vadd.f32 %v6248, %v6287
    %v6289 = vpop.f32.mrf.mxu0
    %6290 = vdwg.mxu0
    %v6291 = vld [vmem:[%s5] sm:$0x1]
    %v6293 = vperm.slane %v6291, 0
    %v6295 = vadd.f32 %v6288, %v6293
    %v6296 = vmax.f32 %v6295, 0.0
    %v6297 = vpack.c.bf16 %v6296, %v6296
    %v6298 = vld [vmem:[%s6] sm:$0xf]
    %v6299 = vld [vmem:[%s6 + $0x4] sm:$0xf]
    %v6300 = vld [vmem:[%s6 + $0x8] sm:$0xf]
    %v6301 = vld [vmem:[%s6 + $0xc] sm:$0xf]
    %v6302 = vld [vmem:[%s6 + $0x10] sm:$0xf]
    %v6303 = vld [vmem:[%s6 + $0x14] sm:$0xf]
    %v6304 = vld [vmem:[%s6 + $0x18] sm:$0xf]
    %v6305 = vld [vmem:[%s6 + $0x1c] sm:$0xf]
    %v6306 = vld [vmem:[%s6 + $0x20] sm:$0xf]
    %v6307 = vld [vmem:[%s6 + $0x24] sm:$0xf]
    %v6308 = vld [vmem:[%s6 + $0x28] sm:$0xf]
    %v6309 = vld [vmem:[%s6 + $0x2c] sm:$0xf]
    %v6310 = vld [vmem:[%s6 + $0x30] sm:$0xf]
    %v6311 = vld [vmem:[%s6 + $0x34] sm:$0xf]
    %v6312 = vld [vmem:[%s6 + $0x38] sm:$0xf]
    %v6313 = vld [vmem:[%s6 + $0x3c] sm:$0xf]
    %v6314 = vld [vmem:[%s7] sm:$0x1]
    %v6316 = vperm.slane %v6314, 0
    %v6334 = vunpack.c.l.b16 %v6298
    %v6335 = vunpack.c.l.b16 %v6299
    %v6336 = vunpack.c.l.b16 %v6300
    %v6337 = vunpack.c.l.b16 %v6301
    %v6338 = vunpack.c.l.b16 %v6302
    %v6339 = vunpack.c.l.b16 %v6303
    %v6340 = vunpack.c.l.b16 %v6304
    %v6341 = vunpack.c.l.b16 %v6305
    %v6342 = vunpack.c.l.b16 %v6306
    %v6343 = vunpack.c.l.b16 %v6307
    %v6344 = vunpack.c.l.b16 %v6308
    %v6345 = vunpack.c.l.b16 %v6309
    %v6346 = vunpack.c.l.b16 %v6310
    %v6347 = vunpack.c.l.b16 %v6311
    %v6348 = vunpack.c.l.b16 %v6312
    %v6349 = vunpack.c.l.b16 %v6313
    %v6350 = vpack.c.b16 %v6335, %v6334
    %v6351 = vpack.c.b16 %v6337, %v6336
    %v6352 = vpack.c.b16 %v6339, %v6338
    %v6353 = vpack.c.b16 %v6341, %v6340
    %v6354 = vpack.c.b16 %v6343, %v6342
    %v6355 = vpack.c.b16 %v6345, %v6344
    %v6356 = vpack.c.b16 %v6347, %v6346
    %v6357 = vpack.c.b16 %v6349, %v6348
    %6366 = vmatpush.bf16.msra.mxu0 %v6357
    %6367 = vmatpush.bf16.msra.mxu0 %v6356
    %6368 = vmatpush.bf16.msra.mxu0 %v6355
    %6369 = vmatpush.bf16.msra.mxu0 %v6354
    %6370 = vmatpush.bf16.msra.mxu0 %v6353
    %6371 = vmatpush.bf16.msra.mxu0 %v6352
    %6372 = vmatpush.bf16.msra.mxu0 %v6351
    %6373 = vmatpush.bf16.msra.mxu0 %v6350
    %6374 = vmatmul.bf16.gmra.mxu0 %v6297
    %v6375 = vpop.f32.mrf.mxu0
    %v6376 = vadd.f32 %v6316, %v6375
    %v6377 = vpop.f32.mrf.mxu0
    %6378 = vdwg.mxu0
    %6379 = vst [vmem:[#allocation2] sm:$0x3] %v6376
    // Predicated region
    $region34: #{_lambda_.1} parent=1 // pred_check
      _
    $region35: #{_lambda_.1} parent=1 // pred_check_branch
      %6381 = sbr.rel (0) target = $region37
    $region36: #{_lambda_.1} parent=1 // pred_region
      %6383 = vsyncadd [#allocation3], 0
      %s6385 = sshll.u32 [#allocation2], 4
      %s6386 = int_to_ptr.vmem [resolvable:$true] %s6385
      %s6387 = sshll.u32 %s8, 4
      %s6388 = int_to_ptr.hbm [resolvable:$true] %s6387
      %6390 = dma.vmem_to_hbm [thread:$0]  %s6386, 32, %s6388, [#allocation3]
    $region37: #{_lambda_.1} parent=1 // pred_fallthru
      _
    // Predicated region
    $region38: #{_lambda_.1} parent=1 // pred_check
      _
    $region39: #{_lambda_.1} parent=1 // pred_check_branch
      %6392 = sbr.rel (0) target = $region41
    $region40: #{_lambda_.1} parent=1 // pred_region
      %6394 = dma.done [#allocation3], 32
    $region41: #{_lambda_.1} parent=1 // pred_fallthru
      _
    %6395 = vsyncpa [#allocation3], 1

</llo_original>
